<compile_context>
chip_gen: v5e
topology: v5e:2x2
jax: 0.10.0
libtpu: 0.0.40
codegen_flags: <defaults>
</compile_context>

<pallas_src>
import functools

import jax
import jax.numpy as jnp
from jax import lax
from jax.experimental import pallas as pl
from jax.experimental.pallas import tpu as pltpu


# ----------------------------------------------------------------------------
# Fused kernel: one grid step = one full InverseImaging (step 0) or
# GradientDescent (step >= 1) update for one block of TB batch images.
# ----------------------------------------------------------------------------

def _net_kernel(xbar_ref, mask_ref,
                pr_w1_ref, pr_b_ref, pr_t_ref, pr_w3_ref,
                ip_w1_ref, ip_b_ref, ip_t_ref, ip_w3_ref,
                out_ref, x_carry, phi_carry, *, C, H, WC):
    step = pl.program_id(1)
    R = x_carry.shape[0]          # TB * H rows (TB images stacked along sublanes)
    W2 = 2 * WC                   # fused Phi|Rho branch width

    x_bar_v = xbar_ref[0]

    # Seed the carried state from (x_bar, mask) at the first step of each
    # batch block (InverseImaging input).
    @pl.when(step == 0)
    def _():
        x_carry[...] = x_bar_v
        phi_carry[...] = mask_ref[0]

    a = x_carry[...]              # current x            (x_bar at step 0)
    b = phi_carry[...]            # current degradation  (mask at 0, phi after)

    # --- edge masks, hoisted: built once per step, reused by all dw3x3 calls.
    def make_masks(width):
        rid = lax.broadcasted_iota(jnp.int32, (R, width), 0) % H
        lid = lax.broadcasted_iota(jnp.int32, (R, width), 1) % WC
        return (rid < H - 1, rid >= 1, lid < WC - C, lid >= C)

    masks1 = make_masks(WC)       # InversePhi branch width
    masks2 = make_masks(W2)       # fused Phi|Rho branch width

    def dw3x3(x, taps, bias, masks):
        # Depthwise Conv2d(C, C, 3, 1, 1, groups=C) on the lane-folded layout,
        # via sublane/lane rolls (XLU) plus per-image edge masks.
        m_up, m_dn, m_lt, m_rt = masks
        width = x.shape[1]
        tap = [taps[k:k + 1, :] for k in range(9)]        # pre-sliced (1, width)
        acc = jnp.zeros((R, width), jnp.float32)
        for dh in (-1, 0, 1):
            if dh == 0:
                xh = x
            else:
                xh = pltpu.roll(x, shift=(-dh) % R, axis=0)
                xh = jnp.where(m_up if dh == 1 else m_dn, xh, 0.0)
            for dw in (-1, 0, 1):
                if dw == 0:
                    xw = xh
                else:
                    xw = pltpu.roll(xh, shift=(-dw * C) % width, axis=1)
                    xw = jnp.where(m_lt if dw == 1 else m_rt, xw, 0.0)
                acc = acc + xw * tap[(dh + 1) * 3 + (dw + 1)]
        return acc + bias

    lrelu = lambda v: jnp.where(v > 0, v, 0.2 * v)

    # ---- fused Phi | (InverseNoise / Rho) branch: width 2*WC, shared input ----
    prb = pr_b_ref[step]                                  # (8, 2WC), rows 0..3 used
    h = (jnp.dot(a, pr_w1_ref[2 * step], preferred_element_type=jnp.float32)
         + jnp.dot(b, pr_w1_ref[2 * step + 1], preferred_element_type=jnp.float32)
         + prb[0:1])
    h = dw3x3(h, pr_t_ref[2 * step], prb[1:2], masks2)
    h = lrelu(h)
    h = jnp.dot(h, pr_w3_ref[step], preferred_element_type=jnp.float32) + prb[2:3]
    h = dw3x3(h, pr_t_ref[2 * step + 1], prb[3:4], masks2)
    phi_new = h[:, :WC]           # Phi([x, deg])
    third = h[:, WC:]             # InverseNoise (step 0) / Rho (steps >= 1)

    # ---- InversePhi branch: width WC, fed by phi_new only (no zero-padded K) --
    ipb = ip_b_ref[step]                                  # (8, WC), rows 0..3 used
    g = jnp.dot(phi_new, ip_w1_ref[step],
                preferred_element_type=jnp.float32) + ipb[0:1]
    g = dw3x3(g, ip_t_ref[2 * step], ipb[1:2], masks1)
    g = lrelu(g)
    g = jnp.dot(g, ip_w3_ref[step],
                preferred_element_type=jnp.float32) + ipb[2:3]
    inv_phi = dw3x3(g, ip_t_ref[2 * step + 1], ipb[3:4], masks1)

    # ---- fused combine epilogue (single store path) ----
    x_init = inv_phi * (a + third)                              # InverseImaging
    # TODO(synk): the DAFNet denoiser referenced by Phase is not defined in the
    # provided source; identity pass-through is used (x_k = v).
    x_gd = a - third * inv_phi * (phi_new * a - x_bar_v)        # GradientDescent
    t = (step == 0).astype(jnp.float32)
    x_new = x_gd + t * (x_init - x_gd)

    x_carry[...] = x_new
    phi_carry[...] = phi_new
    out_ref[0, 0] = x_new.astype(out_ref.dtype)


# ----------------------------------------------------------------------------
# Wrapper: one pallas_call for the whole forward pass.
# ----------------------------------------------------------------------------

def net_forward(x_bar, mask, packed, *, stage, tb=None):
    """x_bar, mask: (B, H, W, C) NHWC float32.  Returns x_list (stage+1 arrays)."""
    B, H, W, C = x_bar.shape
    WC = W * C
    n_steps = stage + 1
    if tb is None:  # largest batch tile <= 8 that divides B
        tb = max(d for d in range(1, min(B, 8) + 1) if B % d == 0)
    assert B % tb == 0
    n_bb = B // tb
    R = tb * H

    xb = x_bar.reshape(n_bb, R, WC)   # lane-folded, TB images stacked on sublanes
    mk = mask.reshape(n_bb, R, WC)

    def full_spec(arr):
        # Whole array resident in VMEM for the entire grid (constant block idx).
        nd = arr.ndim
        return pl.BlockSpec(arr.shape, lambda bb, s, _n=nd: (0,) * _n)

    act_spec = pl.BlockSpec((1, R, WC), lambda bb, s: (bb, 0, 0))
    in_specs = [act_spec, act_spec] + [full_spec(w) for w in packed]

    out = pl.pallas_call(
        functools.partial(_net_kernel, C=C, H=H, WC=WC),
        out_shape=jax.ShapeDtypeStruct((n_steps, n_bb, R, WC), jnp.float32),
        grid=(n_bb, n_steps),
        in_specs=in_specs,
        out_specs=pl.BlockSpec((1, 1, R, WC), lambda bb, s: (s, bb, 0, 0)),
        scratch_shapes=[pltpu.VMEM((R, WC), jnp.float32),    # x carry
                        pltpu.VMEM((R, WC), jnp.float32)],   # phi carry
        compiler_params=pltpu.CompilerParams(
            # Batch-block axis is independent; step axis carries VMEM state.
            # TODO(synk): on v7x, pltpu.CORE_PARALLEL on the batch axis (with
            # n_bb >= 2) would shard the work across the two TensorCores.
            dimension_semantics=("parallel", "arbitrary")),
    )(xb, mk, *packed)

    out = out.reshape(n_steps, B, H, W, C)
    return [out[s] for s in range(n_steps)]


# ----------------------------------------------------------------------------
# Parameter packing: natural layout -> lane-folded, branch-fused kernel layout.
# ----------------------------------------------------------------------------

def pack_params(params, *, W, C):
    """1x1 conv weights -> block-diagonal (per W-group) matrices with the Phi and
    Rho/InverseNoise branches fused along the output dim; dw3x3 taps and biases
    lane-tiled; everything stacked over steps for VMEM residency."""
    WC = W * C
    eye = jnp.eye(W, dtype=jnp.float32)
    kron = lambda m: jnp.kron(eye, m)                       # block-diag per W group
    tile_b = lambda v: jnp.tile(v.reshape(1, C), (1, W))    # (1, WC)
    tile_t = lambda v: jnp.tile(v.reshape(9, C), (1, W))    # (9, WC)

    def pad_rows(x, rows):  # sublane-pad small slabs to a tile-aligned height
        return jnp.concatenate(
            [x, jnp.zeros((rows - x.shape[0], x.shape[1]), jnp.float32)], axis=0)

    def pack_fused(pp, pr):
        # 1x1 #1: split 2C input into x-half / degradation-half, fuse Phi|Rho
        # along the output dim (N = 2*WC).
        w1_top = jnp.concatenate([kron(pp["w1"][:C]), kron(pr["w1"][:C])], axis=1)
        w1_bot = jnp.concatenate([kron(pp["w1"][C:]), kron(pr["w1"][C:])], axis=1)
        z = jnp.zeros((WC, WC), jnp.float32)
        w3 = jnp.concatenate(
            [jnp.concatenate([kron(pp["w3"]), z], axis=1),
             jnp.concatenate([z, kron(pr["w3"])], axis=1)], axis=0)   # (2WC, 2WC)
        cat2 = lambda f: jnp.concatenate([f(pp), f(pr)], axis=1)
        taps1 = pad_rows(cat2(lambda p: tile_t(p["w2"])), 16)
        taps2 = pad_rows(cat2(lambda p: tile_t(p["w4"])), 16)
        bias = pad_rows(jnp.concatenate(
            [cat2(lambda p, k=k: tile_b(p[k])) for k in ("b1", "b2", "b3", "b4")],
            axis=0), 8)                                               # (8, 2WC)
        return w1_top, w1_bot, w3, taps1, taps2, bias

    def pack_ip(p):
        taps1 = pad_rows(tile_t(p["w2"]), 16)
        taps2 = pad_rows(tile_t(p["w4"]), 16)
        bias = pad_rows(jnp.concatenate(
            [tile_b(p[k]) for k in ("b1", "b2", "b3", "b4")], axis=0), 8)
        return kron(p["w1"]), kron(p["w3"]), taps1, taps2, bias

    steps = [(params["Inint"]["Phi"], params["Inint"]["InverseNoise"],
              params["Inint"]["InversePhi"])]
    for ph in params["Phases"]:
        g = ph["GP"]
        steps.append((g["Phi"], g["Rho"], g["InversePhi"]))

    pr_w1, pr_b, pr_t, pr_w3 = [], [], [], []
    ip_w1, ip_b, ip_t, ip_w3 = [], [], [], []
    for pp, prh, pin in steps:
        w1t, w1b, w3, t1, t2, bias = pack_fused(pp, prh)
        pr_w1 += [w1t, w1b]
        pr_w3.append(w3)
        pr_t += [t1, t2]
        pr_b.append(bias)
        iw1, iw3, it1, it2, ib = pack_ip(pin)
        ip_w1.append(iw1)
        ip_w3.append(iw3)
        ip_t += [it1, it2]
        ip_b.append(ib)

    return (jnp.stack(pr_w1), jnp.stack(pr_b), jnp.stack(pr_t), jnp.stack(pr_w3),
            jnp.stack(ip_w1), jnp.stack(ip_b), jnp.stack(ip_t), jnp.stack(ip_w3))


# ----------------------------------------------------------------------------
# Pure-JAX reference (NHWC) mirroring the PyTorch Net.forward, for validation.
# ----------------------------------------------------------------------------

def _ref_pointwise(x, w, b):
    return jnp.einsum("bhwi,io->bhwo", x, w,
                      precision=lax.Precision.HIGHEST) + b


def _ref_dw3x3(x, w, b):
    B, H, W, C = x.shape
    xp = jnp.pad(x, ((0, 0), (1, 1), (1, 1), (0, 0)))
    acc = jnp.zeros_like(x)
    for kh in range(3):
        for kw in range(3):
            acc = acc + xp[:, kh:kh + H, kw:kw + W, :] * w[kh, kw]
    return acc + b


def _ref_branch(x, p):
    h = _ref_pointwise(x, p["w1"], p["b1"])
    h = _ref_dw3x3(h, p["w2"], p["b2"])
    h = jnp.where(h > 0, h, 0.2 * h)
    h = _ref_pointwise(h, p["w3"], p["b3"])
    h = _ref_dw3x3(h, p["w4"], p["b4"])
    return h


def net_forward_ref(x_bar, mask, params):
    ii = params["Inint"]
    cat = jnp.concatenate([x_bar, mask], axis=-1)
    phi = _ref_branch(cat, ii["Phi"])
    inv_phi = _ref_branch(phi, ii["InversePhi"])
    inv_noise = _ref_branch(cat, ii["InverseNoise"])
    x = inv_phi * (x_bar + inv_noise)
    xs = [x]
    for ph in params["Phases"]:
        g = ph["GP"]
        cat = jnp.concatenate([x, phi], axis=-1)
        phi_new = _ref_branch(cat, g["Phi"])
        inv_phi = _ref_branch(phi_new, g["InversePhi"])
        rho = _ref_branch(cat, g["Rho"])
        x = x - rho * inv_phi * (phi_new * x - x_bar)   # identity denoiser
        phi = phi_new
        xs.append(x)
    return xs


# ----------------------------------------------------------------------------
# Deterministic synthetic parameters (natural layout).
# ----------------------------------------------------------------------------

def _init_estimator(key, cin, c):
    ks = jax.random.split(key, 8)
    s = 0.2
    return {
        "w1": s * jax.random.normal(ks[0], (cin, c), jnp.float32),
        "b1": s * jax.random.normal(ks[1], (c,), jnp.float32),
        "w2": s * jax.random.normal(ks[2], (3, 3, c), jnp.float32),
        "b2": s * jax.random.normal(ks[3], (c,), jnp.float32),
        "w3": s * jax.random.normal(ks[4], (c, c), jnp.float32),
        "b3": s * jax.random.normal(ks[5], (c,), jnp.float32),
        "w4": s * jax.random.normal(ks[6], (3, 3, c), jnp.float32),
        "b4": s * jax.random.normal(ks[7], (c,), jnp.float32),
    }


def init_net(key, dim, stage):
    keys = jax.random.split(key, 3 + 3 * stage)
    params = {
        "Inint": {
            "Phi": _init_estimator(keys[0], 2 * dim, dim),
            "InversePhi": _init_estimator(keys[1], dim, dim),
            "InverseNoise": _init_estimator(keys[2], 2 * dim, dim),
        },
        "Phases": [],
    }
    for i in range(stage):
        params["Phases"].append({
            "GP": {
                "Phi": _init_estimator(keys[3 + 3 * i], 2 * dim, dim),
                "InversePhi": _init_estimator(keys[4 + 3 * i], dim, dim),
                "Rho": _init_estimator(keys[5 + 3 * i], 2 * dim, dim),
            }
        })
    return params


if __name__ == "__main__":
    dim, stage = 8, 2
    B, H, W = 2, 16, 16

    key = jax.random.PRNGKey(0)
    kx, km, kp = jax.random.split(key, 3)
    x_bar = jax.random.normal(kx, (B, H, W, dim), jnp.float32)   # NHWC
    mask = jax.random.normal(km, (B, H, W, dim), jnp.float32)
    params = init_net(kp, dim, stage)
    packed = pack_params(params, W=W, C=dim)

    fwd = jax.jit(functools.partial(net_forward, stage=stage))
    x_list = jax.block_until_ready(fwd(x_bar, mask, packed))

    assert len(x_list) == stage + 1
    assert all(xi.shape == (B, H, W, dim) for xi in x_list)
    assert all(bool(jnp.all(jnp.isfinite(xi))) for xi in x_list)

    # Validate the fused kernel against the straightforward pure-JAX reference.
    ref_list = jax.block_until_ready(jax.jit(net_forward_ref)(x_bar, mask, params))
    max_err = max(float(jnp.max(jnp.abs(a - r))) for a, r in zip(x_list, ref_list))
    assert max_err < 2e-2, f"kernel/reference mismatch: max |diff| = {max_err}"

    print("KERNEL_OK")
</pallas_src>

<mosaic_0001>
module attributes {stable_mosaic.version = 11 : i64} {
  func.func @_net_kernel(%arg0: i32, %arg1: i32, %arg2: memref<1x32x128xf32, #tpu.memory_space<vmem>>, %arg3: memref<1x32x128xf32, #tpu.memory_space<vmem>>, %arg4: memref<6x128x256xf32, #tpu.memory_space<vmem>>, %arg5: memref<3x8x256xf32, #tpu.memory_space<vmem>>, %arg6: memref<6x16x256xf32, #tpu.memory_space<vmem>>, %arg7: memref<3x256x256xf32, #tpu.memory_space<vmem>>, %arg8: memref<3x128x128xf32, #tpu.memory_space<vmem>>, %arg9: memref<3x8x128xf32, #tpu.memory_space<vmem>>, %arg10: memref<6x16x128xf32, #tpu.memory_space<vmem>>, %arg11: memref<3x128x128xf32, #tpu.memory_space<vmem>>, %arg12: memref<1x1x32x128xf32, #tpu.memory_space<vmem>>, %arg13: memref<32x128xf32, #tpu.memory_space<vmem>>, %arg14: memref<32x128xf32, #tpu.memory_space<vmem>>) attributes {dimension_semantics = [#tpu.dimension_semantics<parallel>, #tpu.dimension_semantics<arbitrary>], iteration_bounds = array<i64: 1, 3>, scalar_prefetch = 0 : i64, scratch_operands = 2 : i64, tpu.core_type = #tpu.core_type<tc>, window_params = [{transform_indices = @transform_0, window_bounds = array<i64: 1, 32, 128>}, {transform_indices = @transform_1, window_bounds = array<i64: 1, 32, 128>}, {pipeline_mode = #tpu.pipeline_mode<synchronous>, transform_indices = @transform_2, window_bounds = array<i64: 6, 128, 256>}, {pipeline_mode = #tpu.pipeline_mode<synchronous>, transform_indices = @transform_3, window_bounds = array<i64: 3, 8, 256>}, {pipeline_mode = #tpu.pipeline_mode<synchronous>, transform_indices = @transform_4, window_bounds = array<i64: 6, 16, 256>}, {pipeline_mode = #tpu.pipeline_mode<synchronous>, transform_indices = @transform_5, window_bounds = array<i64: 3, 256, 256>}, {pipeline_mode = #tpu.pipeline_mode<synchronous>, transform_indices = @transform_6, window_bounds = array<i64: 3, 128, 128>}, {pipeline_mode = #tpu.pipeline_mode<synchronous>, transform_indices = @transform_7, window_bounds = array<i64: 3, 8, 128>}, {pipeline_mode = #tpu.pipeline_mode<synchronous>, transform_indices = @transform_8, window_bounds = array<i64: 6, 16, 128>}, {pipeline_mode = #tpu.pipeline_mode<synchronous>, transform_indices = @transform_9, window_bounds = array<i64: 3, 128, 128>}, {transform_indices = @transform_10, window_bounds = array<i64: 1, 1, 32, 128>}]} {
    %c0 = arith.constant 0 : index
    %c0_0 = arith.constant 0 : index
    %c0_1 = arith.constant 0 : index
    %0 = vector.load %arg2[%c0, %c0_0, %c0_1] : memref<1x32x128xf32, #tpu.memory_space<vmem>>, vector<1x32x128xf32>
    %1 = vector.shape_cast %0 : vector<1x32x128xf32> to vector<32x128xf32>
    %c0_i32 = arith.constant 0 : i32
    %2 = arith.cmpi eq, %arg1, %c0_i32 : i32
    %3 = arith.extui %2 : i1 to i32
    %c0_i32_2 = arith.constant 0 : i32
    %4 = arith.cmpi ne, %3, %c0_i32_2 : i32
    scf.if %4 {
      %c0_146 = arith.constant 0 : index
      %c0_147 = arith.constant 0 : index
      %438 = vector.load %arg13[%c0_146, %c0_147] : memref<32x128xf32, #tpu.memory_space<vmem>>, vector<32x128xf32>
      tpu.vector_store %arg13[%c0_146, %c0_147], %1 {strides = array<i32>} : memref<32x128xf32, #tpu.memory_space<vmem>>, vector<32x128xf32>,
      %c0_148 = arith.constant 0 : index
      %c0_149 = arith.constant 0 : index
      %c0_150 = arith.constant 0 : index
      %439 = vector.load %arg3[%c0_148, %c0_149, %c0_150] : memref<1x32x128xf32, #tpu.memory_space<vmem>>, vector<1x32x128xf32>
      %440 = vector.shape_cast %439 : vector<1x32x128xf32> to vector<32x128xf32>
      %c0_151 = arith.constant 0 : index
      %c0_152 = arith.constant 0 : index
      %441 = vector.load %arg14[%c0_151, %c0_152] : memref<32x128xf32, #tpu.memory_space<vmem>>, vector<32x128xf32>
      tpu.vector_store %arg14[%c0_151, %c0_152], %440 {strides = array<i32>} : memref<32x128xf32, #tpu.memory_space<vmem>>, vector<32x128xf32>,
    } else {
    }
    %c0_3 = arith.constant 0 : index
    %c0_4 = arith.constant 0 : index
    %5 = vector.load %arg13[%c0_3, %c0_4] : memref<32x128xf32, #tpu.memory_space<vmem>>, vector<32x128xf32>
    %c0_5 = arith.constant 0 : index
    %c0_6 = arith.constant 0 : index
    %6 = vector.load %arg14[%c0_5, %c0_6] : memref<32x128xf32, #tpu.memory_space<vmem>>, vector<32x128xf32>
    %7 = tpu.iota {dimensions = array<i32: 0>} : vector<32x128xi32>
    %c16_i32 = arith.constant 16 : i32
    %c0_i32_7 = arith.constant 0 : i32
    %8 = arith.cmpi eq, %c16_i32, %c0_i32_7 : i32
    %c1_i32 = arith.constant 1 : i32
    %9 = arith.select %8, %c1_i32, %c16_i32 : i32
    %10 = vector.broadcast %9 : i32 to vector<32x128xi32>
    %11 = arith.remsi %7, %10 : vector<32x128xi32>
    %c0_i32_8 = arith.constant 0 : i32
    %12 = vector.broadcast %c0_i32_8 : i32 to vector<32x128xi32>
    %13 = arith.cmpi ne, %11, %12 : vector<32x128xi32>
    %c0_i32_9 = arith.constant 0 : i32
    %14 = vector.broadcast %c0_i32_9 : i32 to vector<32x128xi32>
    %15 = arith.cmpi slt, %11, %14 : vector<32x128xi32>
    %c0_i32_10 = arith.constant 0 : i32
    %16 = arith.cmpi slt, %9, %c0_i32_10 : i32
    %17 = vector.broadcast %16 : i1 to vector<32x128xi1>
    %18 = vector.broadcast %17 : vector<32x128xi1> to vector<32x128xi1>
    %19 = arith.xori %15, %18 : vector<32x128xi1>
    %20 = arith.andi %19, %13 : vector<32x128xi1>
    %21 = vector.broadcast %9 : i32 to vector<32x128xi32>
    %22 = arith.addi %11, %21 : vector<32x128xi32>
    %23 = arith.select %20, %22, %11 : vector<32x128xi1>, vector<32x128xi32>
    %24 = tpu.iota {dimensions = array<i32: 1>} : vector<32x128xi32>
    %c128_i32 = arith.constant 128 : i32
    %c0_i32_11 = arith.constant 0 : i32
    %25 = arith.cmpi eq, %c128_i32, %c0_i32_11 : i32
    %c1_i32_12 = arith.constant 1 : i32
    %26 = arith.select %25, %c1_i32_12, %c128_i32 : i32
    %27 = vector.broadcast %26 : i32 to vector<32x128xi32>
    %28 = arith.remsi %24, %27 : vector<32x128xi32>
    %c0_i32_13 = arith.constant 0 : i32
    %29 = vector.broadcast %c0_i32_13 : i32 to vector<32x128xi32>
    %30 = arith.cmpi ne, %28, %29 : vector<32x128xi32>
    %c0_i32_14 = arith.constant 0 : i32
    %31 = vector.broadcast %c0_i32_14 : i32 to vector<32x128xi32>
    %32 = arith.cmpi slt, %28, %31 : vector<32x128xi32>
    %c0_i32_15 = arith.constant 0 : i32
    %33 = arith.cmpi slt, %26, %c0_i32_15 : i32
    %34 = vector.broadcast %33 : i1 to vector<32x128xi1>
    %35 = vector.broadcast %34 : vector<32x128xi1> to vector<32x128xi1>
    %36 = arith.xori %32, %35 : vector<32x128xi1>
    %37 = arith.andi %36, %30 : vector<32x128xi1>
    %38 = vector.broadcast %26 : i32 to vector<32x128xi32>
    %39 = arith.addi %28, %38 : vector<32x128xi32>
    %40 = arith.select %37, %39, %28 : vector<32x128xi1>, vector<32x128xi32>
    %c15_i32 = arith.constant 15 : i32
    %41 = vector.broadcast %c15_i32 : i32 to vector<32x128xi32>
    %42 = arith.cmpi slt, %23, %41 : vector<32x128xi32>
    %c1_i32_16 = arith.constant 1 : i32
    %43 = vector.broadcast %c1_i32_16 : i32 to vector<32x128xi32>
    %44 = arith.cmpi sge, %23, %43 : vector<32x128xi32>
    %c120_i32 = arith.constant 120 : i32
    %45 = vector.broadcast %c120_i32 : i32 to vector<32x128xi32>
    %46 = arith.cmpi slt, %40, %45 : vector<32x128xi32>
    %c8_i32 = arith.constant 8 : i32
    %47 = vector.broadcast %c8_i32 : i32 to vector<32x128xi32>
    %48 = arith.cmpi sge, %40, %47 : vector<32x128xi32>
    %49 = tpu.iota {dimensions = array<i32: 0>} : vector<32x256xi32>
    %c16_i32_17 = arith.constant 16 : i32
    %c0_i32_18 = arith.constant 0 : i32
    %50 = arith.cmpi eq, %c16_i32_17, %c0_i32_18 : i32
    %c1_i32_19 = arith.constant 1 : i32
    %51 = arith.select %50, %c1_i32_19, %c16_i32_17 : i32
    %52 = vector.broadcast %51 : i32 to vector<32x256xi32>
    %53 = arith.remsi %49, %52 : vector<32x256xi32>
    %c0_i32_20 = arith.constant 0 : i32
    %54 = vector.broadcast %c0_i32_20 : i32 to vector<32x256xi32>
    %55 = arith.cmpi ne, %53, %54 : vector<32x256xi32>
    %c0_i32_21 = arith.constant 0 : i32
    %56 = vector.broadcast %c0_i32_21 : i32 to vector<32x256xi32>
    %57 = arith.cmpi slt, %53, %56 : vector<32x256xi32>
    %c0_i32_22 = arith.constant 0 : i32
    %58 = arith.cmpi slt, %51, %c0_i32_22 : i32
    %59 = vector.broadcast %58 : i1 to vector<32x256xi1>
    %60 = vector.broadcast %59 : vector<32x256xi1> to vector<32x256xi1>
    %61 = arith.xori %57, %60 : vector<32x256xi1>
    %62 = arith.andi %61, %55 : vector<32x256xi1>
    %63 = vector.broadcast %51 : i32 to vector<32x256xi32>
    %64 = arith.addi %53, %63 : vector<32x256xi32>
    %65 = arith.select %62, %64, %53 : vector<32x256xi1>, vector<32x256xi32>
    %66 = tpu.iota {dimensions = array<i32: 1>} : vector<32x256xi32>
    %c128_i32_23 = arith.constant 128 : i32
    %c0_i32_24 = arith.constant 0 : i32
    %67 = arith.cmpi eq, %c128_i32_23, %c0_i32_24 : i32
    %c1_i32_25 = arith.constant 1 : i32
    %68 = arith.select %67, %c1_i32_25, %c128_i32_23 : i32
    %69 = vector.broadcast %68 : i32 to vector<32x256xi32>
    %70 = arith.remsi %66, %69 : vector<32x256xi32>
    %c0_i32_26 = arith.constant 0 : i32
    %71 = vector.broadcast %c0_i32_26 : i32 to vector<32x256xi32>
    %72 = arith.cmpi ne, %70, %71 : vector<32x256xi32>
    %c0_i32_27 = arith.constant 0 : i32
    %73 = vector.broadcast %c0_i32_27 : i32 to vector<32x256xi32>
    %74 = arith.cmpi slt, %70, %73 : vector<32x256xi32>
    %c0_i32_28 = arith.constant 0 : i32
    %75 = arith.cmpi slt, %68, %c0_i32_28 : i32
    %76 = vector.broadcast %75 : i1 to vector<32x256xi1>
    %77 = vector.broadcast %76 : vector<32x256xi1> to vector<32x256xi1>
    %78 = arith.xori %74, %77 : vector<32x256xi1>
    %79 = arith.andi %78, %72 : vector<32x256xi1>
    %80 = vector.broadcast %68 : i32 to vector<32x256xi32>
    %81 = arith.addi %70, %80 : vector<32x256xi32>
    %82 = arith.select %79, %81, %70 : vector<32x256xi1>, vector<32x256xi32>
    %c15_i32_29 = arith.constant 15 : i32
    %83 = vector.broadcast %c15_i32_29 : i32 to vector<32x256xi32>
    %84 = arith.cmpi slt, %65, %83 : vector<32x256xi32>
    %c1_i32_30 = arith.constant 1 : i32
    %85 = vector.broadcast %c1_i32_30 : i32 to vector<32x256xi32>
    %86 = arith.cmpi sge, %65, %85 : vector<32x256xi32>
    %c120_i32_31 = arith.constant 120 : i32
    %87 = vector.broadcast %c120_i32_31 : i32 to vector<32x256xi32>
    %88 = arith.cmpi slt, %82, %87 : vector<32x256xi32>
    %c8_i32_32 = arith.constant 8 : i32
    %89 = vector.broadcast %c8_i32_32 : i32 to vector<32x256xi32>
    %90 = arith.cmpi sge, %82, %89 : vector<32x256xi32>
    %91 = arith.index_cast %arg1 : i32 to index
    %c0_33 = arith.constant 0 : index
    %c0_34 = arith.constant 0 : index
    %92 = vector.load %arg5[%91, %c0_33, %c0_34] : memref<3x8x256xf32, #tpu.memory_space<vmem>>, vector<1x8x256xf32>
    %93 = vector.shape_cast %92 : vector<1x8x256xf32> to vector<8x256xf32>
    %c2_i32 = arith.constant 2 : i32
    %94 = arith.muli %c2_i32, %arg1 : i32
    %95 = arith.index_cast %94 : i32 to index
    %c0_35 = arith.constant 0 : index
    %c0_36 = arith.constant 0 : index
    %96 = vector.load %arg4[%95, %c0_35, %c0_36] : memref<6x128x256xf32, #tpu.memory_space<vmem>>, vector<1x128x256xf32>
    %97 = vector.shape_cast %96 : vector<1x128x256xf32> to vector<128x256xf32>
    %cst = arith.constant dense<0.000000e+00> : vector<32x256xf32>
    %98 = tpu.matmul %5, %97, %cst {dimension_numbers = #tpu.dot_dimension_numbers<[1], [0], [0], [1], [0, 0, 1, 1], [], []>} : vector<32x128xf32>, vector<128x256xf32>, vector<32x256xf32> -> vector<32x256xf32>
    %c2_i32_37 = arith.constant 2 : i32
    %99 = arith.muli %c2_i32_37, %arg1 : i32
    %c1_i32_38 = arith.constant 1 : i32
    %100 = arith.addi %99, %c1_i32_38 : i32
    %101 = arith.index_cast %100 : i32 to index
    %c0_39 = arith.constant 0 : index
    %c0_40 = arith.constant 0 : index
    %102 = vector.load %arg4[%101, %c0_39, %c0_40] : memref<6x128x256xf32, #tpu.memory_space<vmem>>, vector<1x128x256xf32>
    %103 = vector.shape_cast %102 : vector<1x128x256xf32> to vector<128x256xf32>
    %cst_41 = arith.constant dense<0.000000e+00> : vector<32x256xf32>
    %104 = tpu.matmul %6, %103, %cst_41 {dimension_numbers = #tpu.dot_dimension_numbers<[1], [0], [0], [1], [0, 0, 1, 1], [], []>} : vector<32x128xf32>, vector<128x256xf32>, vector<32x256xf32> -> vector<32x256xf32>
    %105 = arith.addf %98, %104 : vector<32x256xf32>
    %106 = vector.extract_strided_slice %93 {offsets = [0, 0], sizes = [1, 256], strides = [1, 1]} : vector<8x256xf32> to vector<1x256xf32>
    %107 = vector.broadcast %106 : vector<1x256xf32> to vector<32x256xf32>
    %108 = arith.addf %105, %107 : vector<32x256xf32>
    %c2_i32_42 = arith.constant 2 : i32
    %109 = arith.muli %c2_i32_42, %arg1 : i32
    %110 = arith.index_cast %109 : i32 to index
    %c0_43 = arith.constant 0 : index
    %c0_44 = arith.constant 0 : index
    %111 = vector.load %arg6[%110, %c0_43, %c0_44] : memref<6x16x256xf32, #tpu.memory_space<vmem>>, vector<1x16x256xf32>
    %112 = vector.shape_cast %111 : vector<1x16x256xf32> to vector<16x256xf32>
    %113 = vector.extract_strided_slice %93 {offsets = [1, 0], sizes = [1, 256], strides = [1, 1]} : vector<8x256xf32> to vector<1x256xf32>
    %114 = vector.extract_strided_slice %112 {offsets = [0, 0], sizes = [1, 256], strides = [1, 1]} : vector<16x256xf32> to vector<1x256xf32>
    %115 = vector.extract_strided_slice %112 {offsets = [1, 0], sizes = [1, 256], strides = [1, 1]} : vector<16x256xf32> to vector<1x256xf32>
    %116 = vector.extract_strided_slice %112 {offsets = [2, 0], sizes = [1, 256], strides = [1, 1]} : vector<16x256xf32> to vector<1x256xf32>
    %117 = vector.extract_strided_slice %112 {offsets = [3, 0], sizes = [1, 256], strides = [1, 1]} : vector<16x256xf32> to vector<1x256xf32>
    %118 = vector.extract_strided_slice %112 {offsets = [4, 0], sizes = [1, 256], strides = [1, 1]} : vector<16x256xf32> to vector<1x256xf32>
    %119 = vector.extract_strided_slice %112 {offsets = [5, 0], sizes = [1, 256], strides = [1, 1]} : vector<16x256xf32> to vector<1x256xf32>
    %120 = vector.extract_strided_slice %112 {offsets = [6, 0], sizes = [1, 256], strides = [1, 1]} : vector<16x256xf32> to vector<1x256xf32>
    %121 = vector.extract_strided_slice %112 {offsets = [7, 0], sizes = [1, 256], strides = [1, 1]} : vector<16x256xf32> to vector<1x256xf32>
    %122 = vector.extract_strided_slice %112 {offsets = [8, 0], sizes = [1, 256], strides = [1, 1]} : vector<16x256xf32> to vector<1x256xf32>
    %cst_45 = arith.constant 0.000000e+00 : f32
    %123 = vector.broadcast %cst_45 : f32 to vector<32x256xf32>
    %c1_i32_46 = arith.constant 1 : i32
    %124 = tpu.dynamic_rotate %108 by %c1_i32_46 dim 0 : vector<32x256xf32>, i32 -> vector<32x256xf32>
    %cst_47 = arith.constant 0.000000e+00 : f32
    %125 = vector.broadcast %cst_47 : f32 to vector<32x256xf32>
    %126 = arith.select %86, %124, %125 : vector<32x256xi1>, vector<32x256xf32>
    %c8_i32_48 = arith.constant 8 : i32
    %127 = tpu.dynamic_rotate %126 by %c8_i32_48 dim 1 : vector<32x256xf32>, i32 -> vector<32x256xf32>
    %cst_49 = arith.constant 0.000000e+00 : f32
    %128 = vector.broadcast %cst_49 : f32 to vector<32x256xf32>
    %129 = arith.select %90, %127, %128 : vector<32x256xi1>, vector<32x256xf32>
    %130 = vector.broadcast %114 : vector<1x256xf32> to vector<32x256xf32>
    %131 = arith.mulf %129, %130 : vector<32x256xf32>
    %132 = arith.addf %123, %131 : vector<32x256xf32>
    %133 = vector.broadcast %115 : vector<1x256xf32> to vector<32x256xf32>
    %134 = arith.mulf %126, %133 : vector<32x256xf32>
    %135 = arith.addf %132, %134 : vector<32x256xf32>
    %c248_i32 = arith.constant 248 : i32
    %136 = tpu.dynamic_rotate %126 by %c248_i32 dim 1 : vector<32x256xf32>, i32 -> vector<32x256xf32>
    %cst_50 = arith.constant 0.000000e+00 : f32
    %137 = vector.broadcast %cst_50 : f32 to vector<32x256xf32>
    %138 = arith.select %88, %136, %137 : vector<32x256xi1>, vector<32x256xf32>
    %139 = vector.broadcast %116 : vector<1x256xf32> to vector<32x256xf32>
    %140 = arith.mulf %138, %139 : vector<32x256xf32>
    %141 = arith.addf %135, %140 : vector<32x256xf32>
    %c8_i32_51 = arith.constant 8 : i32
    %142 = tpu.dynamic_rotate %108 by %c8_i32_51 dim 1 : vector<32x256xf32>, i32 -> vector<32x256xf32>
    %cst_52 = arith.constant 0.000000e+00 : f32
    %143 = vector.broadcast %cst_52 : f32 to vector<32x256xf32>
    %144 = arith.select %90, %142, %143 : vector<32x256xi1>, vector<32x256xf32>
    %145 = vector.broadcast %117 : vector<1x256xf32> to vector<32x256xf32>
    %146 = arith.mulf %144, %145 : vector<32x256xf32>
    %147 = arith.addf %141, %146 : vector<32x256xf32>
    %148 = vector.broadcast %118 : vector<1x256xf32> to vector<32x256xf32>
    %149 = arith.mulf %108, %148 : vector<32x256xf32>
    %150 = arith.addf %147, %149 : vector<32x256xf32>
    %c248_i32_53 = arith.constant 248 : i32
    %151 = tpu.dynamic_rotate %108 by %c248_i32_53 dim 1 : vector<32x256xf32>, i32 -> vector<32x256xf32>
    %cst_54 = arith.constant 0.000000e+00 : f32
    %152 = vector.broadcast %cst_54 : f32 to vector<32x256xf32>
    %153 = arith.select %88, %151, %152 : vector<32x256xi1>, vector<32x256xf32>
    %154 = vector.broadcast %119 : vector<1x256xf32> to vector<32x256xf32>
    %155 = arith.mulf %153, %154 : vector<32x256xf32>
    %156 = arith.addf %150, %155 : vector<32x256xf32>
    %c31_i32 = arith.constant 31 : i32
    %157 = tpu.dynamic_rotate %108 by %c31_i32 dim 0 : vector<32x256xf32>, i32 -> vector<32x256xf32>
    %cst_55 = arith.constant 0.000000e+00 : f32
    %158 = vector.broadcast %cst_55 : f32 to vector<32x256xf32>
    %159 = arith.select %84, %157, %158 : vector<32x256xi1>, vector<32x256xf32>
    %c8_i32_56 = arith.constant 8 : i32
    %160 = tpu.dynamic_rotate %159 by %c8_i32_56 dim 1 : vector<32x256xf32>, i32 -> vector<32x256xf32>
    %cst_57 = arith.constant 0.000000e+00 : f32
    %161 = vector.broadcast %cst_57 : f32 to vector<32x256xf32>
    %162 = arith.select %90, %160, %161 : vector<32x256xi1>, vector<32x256xf32>
    %163 = vector.broadcast %120 : vector<1x256xf32> to vector<32x256xf32>
    %164 = arith.mulf %162, %163 : vector<32x256xf32>
    %165 = arith.addf %156, %164 : vector<32x256xf32>
    %166 = vector.broadcast %121 : vector<1x256xf32> to vector<32x256xf32>
    %167 = arith.mulf %159, %166 : vector<32x256xf32>
    %168 = arith.addf %165, %167 : vector<32x256xf32>
    %c248_i32_58 = arith.constant 248 : i32
    %169 = tpu.dynamic_rotate %159 by %c248_i32_58 dim 1 : vector<32x256xf32>, i32 -> vector<32x256xf32>
    %cst_59 = arith.constant 0.000000e+00 : f32
    %170 = vector.broadcast %cst_59 : f32 to vector<32x256xf32>
    %171 = arith.select %88, %169, %170 : vector<32x256xi1>, vector<32x256xf32>
    %172 = vector.broadcast %122 : vector<1x256xf32> to vector<32x256xf32>
    %173 = arith.mulf %171, %172 : vector<32x256xf32>
    %174 = arith.addf %168, %173 : vector<32x256xf32>
    %175 = vector.broadcast %113 : vector<1x256xf32> to vector<32x256xf32>
    %176 = arith.addf %174, %175 : vector<32x256xf32>
    %cst_60 = arith.constant 0.000000e+00 : f32
    %177 = vector.broadcast %cst_60 : f32 to vector<32x256xf32>
    %178 = arith.cmpf ogt, %176, %177 : vector<32x256xf32>
    %cst_61 = arith.constant 2.000000e-01 : f32
    %179 = vector.broadcast %cst_61 : f32 to vector<32x256xf32>
    %180 = arith.mulf %179, %176 : vector<32x256xf32>
    %181 = arith.select %178, %176, %180 : vector<32x256xi1>, vector<32x256xf32>
    %182 = arith.index_cast %arg1 : i32 to index
    %c0_62 = arith.constant 0 : index
    %c0_63 = arith.constant 0 : index
    %183 = vector.load %arg7[%182, %c0_62, %c0_63] : memref<3x256x256xf32, #tpu.memory_space<vmem>>, vector<1x256x256xf32>
    %184 = vector.shape_cast %183 : vector<1x256x256xf32> to vector<256x256xf32>
    %cst_64 = arith.constant dense<0.000000e+00> : vector<32x256xf32>
    %185 = tpu.matmul %181, %184, %cst_64 {dimension_numbers = #tpu.dot_dimension_numbers<[1], [0], [0], [1], [0, 0, 1, 1], [], []>} : vector<32x256xf32>, vector<256x256xf32>, vector<32x256xf32> -> vector<32x256xf32>
    %186 = vector.extract_strided_slice %93 {offsets = [2, 0], sizes = [1, 256], strides = [1, 1]} : vector<8x256xf32> to vector<1x256xf32>
    %187 = vector.broadcast %186 : vector<1x256xf32> to vector<32x256xf32>
    %188 = arith.addf %185, %187 : vector<32x256xf32>
    %c2_i32_65 = arith.constant 2 : i32
    %189 = arith.muli %c2_i32_65, %arg1 : i32
    %c1_i32_66 = arith.constant 1 : i32
    %190 = arith.addi %189, %c1_i32_66 : i32
    %191 = arith.index_cast %190 : i32 to index
    %c0_67 = arith.constant 0 : index
    %c0_68 = arith.constant 0 : index
    %192 = vector.load %arg6[%191, %c0_67, %c0_68] : memref<6x16x256xf32, #tpu.memory_space<vmem>>, vector<1x16x256xf32>
    %193 = vector.shape_cast %192 : vector<1x16x256xf32> to vector<16x256xf32>
    %194 = vector.extract_strided_slice %93 {offsets = [3, 0], sizes = [1, 256], strides = [1, 1]} : vector<8x256xf32> to vector<1x256xf32>
    %195 = vector.extract_strided_slice %193 {offsets = [0, 0], sizes = [1, 256], strides = [1, 1]} : vector<16x256xf32> to vector<1x256xf32>
    %196 = vector.extract_strided_slice %193 {offsets = [1, 0], sizes = [1, 256], strides = [1, 1]} : vector<16x256xf32> to vector<1x256xf32>
    %197 = vector.extract_strided_slice %193 {offsets = [2, 0], sizes = [1, 256], strides = [1, 1]} : vector<16x256xf32> to vector<1x256xf32>
    %198 = vector.extract_strided_slice %193 {offsets = [3, 0], sizes = [1, 256], strides = [1, 1]} : vector<16x256xf32> to vector<1x256xf32>
    %199 = vector.extract_strided_slice %193 {offsets = [4, 0], sizes = [1, 256], strides = [1, 1]} : vector<16x256xf32> to vector<1x256xf32>
    %200 = vector.extract_strided_slice %193 {offsets = [5, 0], sizes = [1, 256], strides = [1, 1]} : vector<16x256xf32> to vector<1x256xf32>
    %201 = vector.extract_strided_slice %193 {offsets = [6, 0], sizes = [1, 256], strides = [1, 1]} : vector<16x256xf32> to vector<1x256xf32>
    %202 = vector.extract_strided_slice %193 {offsets = [7, 0], sizes = [1, 256], strides = [1, 1]} : vector<16x256xf32> to vector<1x256xf32>
    %203 = vector.extract_strided_slice %193 {offsets = [8, 0], sizes = [1, 256], strides = [1, 1]} : vector<16x256xf32> to vector<1x256xf32>
    %cst_69 = arith.constant 0.000000e+00 : f32
    %204 = vector.broadcast %cst_69 : f32 to vector<32x256xf32>
    %c1_i32_70 = arith.constant 1 : i32
    %205 = tpu.dynamic_rotate %188 by %c1_i32_70 dim 0 : vector<32x256xf32>, i32 -> vector<32x256xf32>
    %cst_71 = arith.constant 0.000000e+00 : f32
    %206 = vector.broadcast %cst_71 : f32 to vector<32x256xf32>
    %207 = arith.select %86, %205, %206 : vector<32x256xi1>, vector<32x256xf32>
    %c8_i32_72 = arith.constant 8 : i32
    %208 = tpu.dynamic_rotate %207 by %c8_i32_72 dim 1 : vector<32x256xf32>, i32 -> vector<32x256xf32>
    %cst_73 = arith.constant 0.000000e+00 : f32
    %209 = vector.broadcast %cst_73 : f32 to vector<32x256xf32>
    %210 = arith.select %90, %208, %209 : vector<32x256xi1>, vector<32x256xf32>
    %211 = vector.broadcast %195 : vector<1x256xf32> to vector<32x256xf32>
    %212 = arith.mulf %210, %211 : vector<32x256xf32>
    %213 = arith.addf %204, %212 : vector<32x256xf32>
    %214 = vector.broadcast %196 : vector<1x256xf32> to vector<32x256xf32>
    %215 = arith.mulf %207, %214 : vector<32x256xf32>
    %216 = arith.addf %213, %215 : vector<32x256xf32>
    %c248_i32_74 = arith.constant 248 : i32
    %217 = tpu.dynamic_rotate %207 by %c248_i32_74 dim 1 : vector<32x256xf32>, i32 -> vector<32x256xf32>
    %cst_75 = arith.constant 0.000000e+00 : f32
    %218 = vector.broadcast %cst_75 : f32 to vector<32x256xf32>
    %219 = arith.select %88, %217, %218 : vector<32x256xi1>, vector<32x256xf32>
    %220 = vector.broadcast %197 : vector<1x256xf32> to vector<32x256xf32>
    %221 = arith.mulf %219, %220 : vector<32x256xf32>
    %222 = arith.addf %216, %221 : vector<32x256xf32>
    %c8_i32_76 = arith.constant 8 : i32
    %223 = tpu.dynamic_rotate %188 by %c8_i32_76 dim 1 : vector<32x256xf32>, i32 -> vector<32x256xf32>
    %cst_77 = arith.constant 0.000000e+00 : f32
    %224 = vector.broadcast %cst_77 : f32 to vector<32x256xf32>
    %225 = arith.select %90, %223, %224 : vector<32x256xi1>, vector<32x256xf32>
    %226 = vector.broadcast %198 : vector<1x256xf32> to vector<32x256xf32>
    %227 = arith.mulf %225, %226 : vector<32x256xf32>
    %228 = arith.addf %222, %227 : vector<32x256xf32>
    %229 = vector.broadcast %199 : vector<1x256xf32> to vector<32x256xf32>
    %230 = arith.mulf %188, %229 : vector<32x256xf32>
    %231 = arith.addf %228, %230 : vector<32x256xf32>
    %c248_i32_78 = arith.constant 248 : i32
    %232 = tpu.dynamic_rotate %188 by %c248_i32_78 dim 1 : vector<32x256xf32>, i32 -> vector<32x256xf32>
    %cst_79 = arith.constant 0.000000e+00 : f32
    %233 = vector.broadcast %cst_79 : f32 to vector<32x256xf32>
    %234 = arith.select %88, %232, %233 : vector<32x256xi1>, vector<32x256xf32>
    %235 = vector.broadcast %200 : vector<1x256xf32> to vector<32x256xf32>
    %236 = arith.mulf %234, %235 : vector<32x256xf32>
    %237 = arith.addf %231, %236 : vector<32x256xf32>
    %c31_i32_80 = arith.constant 31 : i32
    %238 = tpu.dynamic_rotate %188 by %c31_i32_80 dim 0 : vector<32x256xf32>, i32 -> vector<32x256xf32>
    %cst_81 = arith.constant 0.000000e+00 : f32
    %239 = vector.broadcast %cst_81 : f32 to vector<32x256xf32>
    %240 = arith.select %84, %238, %239 : vector<32x256xi1>, vector<32x256xf32>
    %c8_i32_82 = arith.constant 8 : i32
    %241 = tpu.dynamic_rotate %240 by %c8_i32_82 dim 1 : vector<32x256xf32>, i32 -> vector<32x256xf32>
    %cst_83 = arith.constant 0.000000e+00 : f32
    %242 = vector.broadcast %cst_83 : f32 to vector<32x256xf32>
    %243 = arith.select %90, %241, %242 : vector<32x256xi1>, vector<32x256xf32>
    %244 = vector.broadcast %201 : vector<1x256xf32> to vector<32x256xf32>
    %245 = arith.mulf %243, %244 : vector<32x256xf32>
    %246 = arith.addf %237, %245 : vector<32x256xf32>
    %247 = vector.broadcast %202 : vector<1x256xf32> to vector<32x256xf32>
    %248 = arith.mulf %240, %247 : vector<32x256xf32>
    %249 = arith.addf %246, %248 : vector<32x256xf32>
    %c248_i32_84 = arith.constant 248 : i32
    %250 = tpu.dynamic_rotate %240 by %c248_i32_84 dim 1 : vector<32x256xf32>, i32 -> vector<32x256xf32>
    %cst_85 = arith.constant 0.000000e+00 : f32
    %251 = vector.broadcast %cst_85 : f32 to vector<32x256xf32>
    %252 = arith.select %88, %250, %251 : vector<32x256xi1>, vector<32x256xf32>
    %253 = vector.broadcast %203 : vector<1x256xf32> to vector<32x256xf32>
    %254 = arith.mulf %252, %253 : vector<32x256xf32>
    %255 = arith.addf %249, %254 : vector<32x256xf32>
    %256 = vector.broadcast %194 : vector<1x256xf32> to vector<32x256xf32>
    %257 = arith.addf %255, %256 : vector<32x256xf32>
    %258 = vector.extract_strided_slice %257 {offsets = [0, 0], sizes = [32, 128], strides = [1, 1]} : vector<32x256xf32> to vector<32x128xf32>
    %259 = vector.extract_strided_slice %257 {offsets = [0, 128], sizes = [32, 128], strides = [1, 1]} : vector<32x256xf32> to vector<32x128xf32>
    %260 = arith.index_cast %arg1 : i32 to index
    %c0_86 = arith.constant 0 : index
    %c0_87 = arith.constant 0 : index
    %261 = vector.load %arg9[%260, %c0_86, %c0_87] : memref<3x8x128xf32, #tpu.memory_space<vmem>>, vector<1x8x128xf32>
    %262 = vector.shape_cast %261 : vector<1x8x128xf32> to vector<8x128xf32>
    %263 = arith.index_cast %arg1 : i32 to index
    %c0_88 = arith.constant 0 : index
    %c0_89 = arith.constant 0 : index
    %264 = vector.load %arg8[%263, %c0_88, %c0_89] : memref<3x128x128xf32, #tpu.memory_space<vmem>>, vector<1x128x128xf32>
    %265 = vector.shape_cast %264 : vector<1x128x128xf32> to vector<128x128xf32>
    %cst_90 = arith.constant dense<0.000000e+00> : vector<32x128xf32>
    %266 = tpu.matmul %258, %265, %cst_90 {dimension_numbers = #tpu.dot_dimension_numbers<[1], [0], [0], [1], [0, 0, 1, 1], [], []>} : vector<32x128xf32>, vector<128x128xf32>, vector<32x128xf32> -> vector<32x128xf32>
    %267 = vector.extract_strided_slice %262 {offsets = [0, 0], sizes = [1, 128], strides = [1, 1]} : vector<8x128xf32> to vector<1x128xf32>
    %268 = vector.broadcast %267 : vector<1x128xf32> to vector<32x128xf32>
    %269 = arith.addf %266, %268 : vector<32x128xf32>
    %c2_i32_91 = arith.constant 2 : i32
    %270 = arith.muli %c2_i32_91, %arg1 : i32
    %271 = arith.index_cast %270 : i32 to index
    %c0_92 = arith.constant 0 : index
    %c0_93 = arith.constant 0 : index
    %272 = vector.load %arg10[%271, %c0_92, %c0_93] : memref<6x16x128xf32, #tpu.memory_space<vmem>>, vector<1x16x128xf32>
    %273 = vector.shape_cast %272 : vector<1x16x128xf32> to vector<16x128xf32>
    %274 = vector.extract_strided_slice %262 {offsets = [1, 0], sizes = [1, 128], strides = [1, 1]} : vector<8x128xf32> to vector<1x128xf32>
    %275 = vector.extract_strided_slice %273 {offsets = [0, 0], sizes = [1, 128], strides = [1, 1]} : vector<16x128xf32> to vector<1x128xf32>
    %276 = vector.extract_strided_slice %273 {offsets = [1, 0], sizes = [1, 128], strides = [1, 1]} : vector<16x128xf32> to vector<1x128xf32>
    %277 = vector.extract_strided_slice %273 {offsets = [2, 0], sizes = [1, 128], strides = [1, 1]} : vector<16x128xf32> to vector<1x128xf32>
    %278 = vector.extract_strided_slice %273 {offsets = [3, 0], sizes = [1, 128], strides = [1, 1]} : vector<16x128xf32> to vector<1x128xf32>
    %279 = vector.extract_strided_slice %273 {offsets = [4, 0], sizes = [1, 128], strides = [1, 1]} : vector<16x128xf32> to vector<1x128xf32>
    %280 = vector.extract_strided_slice %273 {offsets = [5, 0], sizes = [1, 128], strides = [1, 1]} : vector<16x128xf32> to vector<1x128xf32>
    %281 = vector.extract_strided_slice %273 {offsets = [6, 0], sizes = [1, 128], strides = [1, 1]} : vector<16x128xf32> to vector<1x128xf32>
    %282 = vector.extract_strided_slice %273 {offsets = [7, 0], sizes = [1, 128], strides = [1, 1]} : vector<16x128xf32> to vector<1x128xf32>
    %283 = vector.extract_strided_slice %273 {offsets = [8, 0], sizes = [1, 128], strides = [1, 1]} : vector<16x128xf32> to vector<1x128xf32>
    %cst_94 = arith.constant 0.000000e+00 : f32
    %284 = vector.broadcast %cst_94 : f32 to vector<32x128xf32>
    %c1_i32_95 = arith.constant 1 : i32
    %285 = tpu.dynamic_rotate %269 by %c1_i32_95 dim 0 : vector<32x128xf32>, i32 -> vector<32x128xf32>
    %cst_96 = arith.constant 0.000000e+00 : f32
    %286 = vector.broadcast %cst_96 : f32 to vector<32x128xf32>
    %287 = arith.select %44, %285, %286 : vector<32x128xi1>, vector<32x128xf32>
    %c8_i32_97 = arith.constant 8 : i32
    %288 = tpu.dynamic_rotate %287 by %c8_i32_97 dim 1 : vector<32x128xf32>, i32 -> vector<32x128xf32>
    %cst_98 = arith.constant 0.000000e+00 : f32
    %289 = vector.broadcast %cst_98 : f32 to vector<32x128xf32>
    %290 = arith.select %48, %288, %289 : vector<32x128xi1>, vector<32x128xf32>
    %291 = vector.broadcast %275 : vector<1x128xf32> to vector<32x128xf32>
    %292 = arith.mulf %290, %291 : vector<32x128xf32>
    %293 = arith.addf %284, %292 : vector<32x128xf32>
    %294 = vector.broadcast %276 : vector<1x128xf32> to vector<32x128xf32>
    %295 = arith.mulf %287, %294 : vector<32x128xf32>
    %296 = arith.addf %293, %295 : vector<32x128xf32>
    %c120_i32_99 = arith.constant 120 : i32
    %297 = tpu.dynamic_rotate %287 by %c120_i32_99 dim 1 : vector<32x128xf32>, i32 -> vector<32x128xf32>
    %cst_100 = arith.constant 0.000000e+00 : f32
    %298 = vector.broadcast %cst_100 : f32 to vector<32x128xf32>
    %299 = arith.select %46, %297, %298 : vector<32x128xi1>, vector<32x128xf32>
    %300 = vector.broadcast %277 : vector<1x128xf32> to vector<32x128xf32>
    %301 = arith.mulf %299, %300 : vector<32x128xf32>
    %302 = arith.addf %296, %301 : vector<32x128xf32>
    %c8_i32_101 = arith.constant 8 : i32
    %303 = tpu.dynamic_rotate %269 by %c8_i32_101 dim 1 : vector<32x128xf32>, i32 -> vector<32x128xf32>
    %cst_102 = arith.constant 0.000000e+00 : f32
    %304 = vector.broadcast %cst_102 : f32 to vector<32x128xf32>
    %305 = arith.select %48, %303, %304 : vector<32x128xi1>, vector<32x128xf32>
    %306 = vector.broadcast %278 : vector<1x128xf32> to vector<32x128xf32>
    %307 = arith.mulf %305, %306 : vector<32x128xf32>
    %308 = arith.addf %302, %307 : vector<32x128xf32>
    %309 = vector.broadcast %279 : vector<1x128xf32> to vector<32x128xf32>
    %310 = arith.mulf %269, %309 : vector<32x128xf32>
    %311 = arith.addf %308, %310 : vector<32x128xf32>
    %c120_i32_103 = arith.constant 120 : i32
    %312 = tpu.dynamic_rotate %269 by %c120_i32_103 dim 1 : vector<32x128xf32>, i32 -> vector<32x128xf32>
    %cst_104 = arith.constant 0.000000e+00 : f32
    %313 = vector.broadcast %cst_104 : f32 to vector<32x128xf32>
    %314 = arith.select %46, %312, %313 : vector<32x128xi1>, vector<32x128xf32>
    %315 = vector.broadcast %280 : vector<1x128xf32> to vector<32x128xf32>
    %316 = arith.mulf %314, %315 : vector<32x128xf32>
    %317 = arith.addf %311, %316 : vector<32x128xf32>
    %c31_i32_105 = arith.constant 31 : i32
    %318 = tpu.dynamic_rotate %269 by %c31_i32_105 dim 0 : vector<32x128xf32>, i32 -> vector<32x128xf32>
    %cst_106 = arith.constant 0.000000e+00 : f32
    %319 = vector.broadcast %cst_106 : f32 to vector<32x128xf32>
    %320 = arith.select %42, %318, %319 : vector<32x128xi1>, vector<32x128xf32>
    %c8_i32_107 = arith.constant 8 : i32
    %321 = tpu.dynamic_rotate %320 by %c8_i32_107 dim 1 : vector<32x128xf32>, i32 -> vector<32x128xf32>
    %cst_108 = arith.constant 0.000000e+00 : f32
    %322 = vector.broadcast %cst_108 : f32 to vector<32x128xf32>
    %323 = arith.select %48, %321, %322 : vector<32x128xi1>, vector<32x128xf32>
    %324 = vector.broadcast %281 : vector<1x128xf32> to vector<32x128xf32>
    %325 = arith.mulf %323, %324 : vector<32x128xf32>
    %326 = arith.addf %317, %325 : vector<32x128xf32>
    %327 = vector.broadcast %282 : vector<1x128xf32> to vector<32x128xf32>
    %328 = arith.mulf %320, %327 : vector<32x128xf32>
    %329 = arith.addf %326, %328 : vector<32x128xf32>
    %c120_i32_109 = arith.constant 120 : i32
    %330 = tpu.dynamic_rotate %320 by %c120_i32_109 dim 1 : vector<32x128xf32>, i32 -> vector<32x128xf32>
    %cst_110 = arith.constant 0.000000e+00 : f32
    %331 = vector.broadcast %cst_110 : f32 to vector<32x128xf32>
    %332 = arith.select %46, %330, %331 : vector<32x128xi1>, vector<32x128xf32>
    %333 = vector.broadcast %283 : vector<1x128xf32> to vector<32x128xf32>
    %334 = arith.mulf %332, %333 : vector<32x128xf32>
    %335 = arith.addf %329, %334 : vector<32x128xf32>
    %336 = vector.broadcast %274 : vector<1x128xf32> to vector<32x128xf32>
    %337 = arith.addf %335, %336 : vector<32x128xf32>
    %cst_111 = arith.constant 0.000000e+00 : f32
    %338 = vector.broadcast %cst_111 : f32 to vector<32x128xf32>
    %339 = arith.cmpf ogt, %337, %338 : vector<32x128xf32>
    %cst_112 = arith.constant 2.000000e-01 : f32
    %340 = vector.broadcast %cst_112 : f32 to vector<32x128xf32>
    %341 = arith.mulf %340, %337 : vector<32x128xf32>
    %342 = arith.select %339, %337, %341 : vector<32x128xi1>, vector<32x128xf32>
    %343 = arith.index_cast %arg1 : i32 to index
    %c0_113 = arith.constant 0 : index
    %c0_114 = arith.constant 0 : index
    %344 = vector.load %arg11[%343, %c0_113, %c0_114] : memref<3x128x128xf32, #tpu.memory_space<vmem>>, vector<1x128x128xf32>
    %345 = vector.shape_cast %344 : vector<1x128x128xf32> to vector<128x128xf32>
    %cst_115 = arith.constant dense<0.000000e+00> : vector<32x128xf32>
    %346 = tpu.matmul %342, %345, %cst_115 {dimension_numbers = #tpu.dot_dimension_numbers<[1], [0], [0], [1], [0, 0, 1, 1], [], []>} : vector<32x128xf32>, vector<128x128xf32>, vector<32x128xf32> -> vector<32x128xf32>
    %347 = vector.extract_strided_slice %262 {offsets = [2, 0], sizes = [1, 128], strides = [1, 1]} : vector<8x128xf32> to vector<1x128xf32>
    %348 = vector.broadcast %347 : vector<1x128xf32> to vector<32x128xf32>
    %349 = arith.addf %346, %348 : vector<32x128xf32>
    %c2_i32_116 = arith.constant 2 : i32
    %350 = arith.muli %c2_i32_116, %arg1 : i32
    %c1_i32_117 = arith.constant 1 : i32
    %351 = arith.addi %350, %c1_i32_117 : i32
    %352 = arith.index_cast %351 : i32 to index
    %c0_118 = arith.constant 0 : index
    %c0_119 = arith.constant 0 : index
    %353 = vector.load %arg10[%352, %c0_118, %c0_119] : memref<6x16x128xf32, #tpu.memory_space<vmem>>, vector<1x16x128xf32>
    %354 = vector.shape_cast %353 : vector<1x16x128xf32> to vector<16x128xf32>
    %355 = vector.extract_strided_slice %262 {offsets = [3, 0], sizes = [1, 128], strides = [1, 1]} : vector<8x128xf32> to vector<1x128xf32>
    %356 = vector.extract_strided_slice %354 {offsets = [0, 0], sizes = [1, 128], strides = [1, 1]} : vector<16x128xf32> to vector<1x128xf32>
    %357 = vector.extract_strided_slice %354 {offsets = [1, 0], sizes = [1, 128], strides = [1, 1]} : vector<16x128xf32> to vector<1x128xf32>
    %358 = vector.extract_strided_slice %354 {offsets = [2, 0], sizes = [1, 128], strides = [1, 1]} : vector<16x128xf32> to vector<1x128xf32>
    %359 = vector.extract_strided_slice %354 {offsets = [3, 0], sizes = [1, 128], strides = [1, 1]} : vector<16x128xf32> to vector<1x128xf32>
    %360 = vector.extract_strided_slice %354 {offsets = [4, 0], sizes = [1, 128], strides = [1, 1]} : vector<16x128xf32> to vector<1x128xf32>
    %361 = vector.extract_strided_slice %354 {offsets = [5, 0], sizes = [1, 128], strides = [1, 1]} : vector<16x128xf32> to vector<1x128xf32>
    %362 = vector.extract_strided_slice %354 {offsets = [6, 0], sizes = [1, 128], strides = [1, 1]} : vector<16x128xf32> to vector<1x128xf32>
    %363 = vector.extract_strided_slice %354 {offsets = [7, 0], sizes = [1, 128], strides = [1, 1]} : vector<16x128xf32> to vector<1x128xf32>
    %364 = vector.extract_strided_slice %354 {offsets = [8, 0], sizes = [1, 128], strides = [1, 1]} : vector<16x128xf32> to vector<1x128xf32>
    %cst_120 = arith.constant 0.000000e+00 : f32
    %365 = vector.broadcast %cst_120 : f32 to vector<32x128xf32>
    %c1_i32_121 = arith.constant 1 : i32
    %366 = tpu.dynamic_rotate %349 by %c1_i32_121 dim 0 : vector<32x128xf32>, i32 -> vector<32x128xf32>
    %cst_122 = arith.constant 0.000000e+00 : f32
    %367 = vector.broadcast %cst_122 : f32 to vector<32x128xf32>
    %368 = arith.select %44, %366, %367 : vector<32x128xi1>, vector<32x128xf32>
    %c8_i32_123 = arith.constant 8 : i32
    %369 = tpu.dynamic_rotate %368 by %c8_i32_123 dim 1 : vector<32x128xf32>, i32 -> vector<32x128xf32>
    %cst_124 = arith.constant 0.000000e+00 : f32
    %370 = vector.broadcast %cst_124 : f32 to vector<32x128xf32>
    %371 = arith.select %48, %369, %370 : vector<32x128xi1>, vector<32x128xf32>
    %372 = vector.broadcast %356 : vector<1x128xf32> to vector<32x128xf32>
    %373 = arith.mulf %371, %372 : vector<32x128xf32>
    %374 = arith.addf %365, %373 : vector<32x128xf32>
    %375 = vector.broadcast %357 : vector<1x128xf32> to vector<32x128xf32>
    %376 = arith.mulf %368, %375 : vector<32x128xf32>
    %377 = arith.addf %374, %376 : vector<32x128xf32>
    %c120_i32_125 = arith.constant 120 : i32
    %378 = tpu.dynamic_rotate %368 by %c120_i32_125 dim 1 : vector<32x128xf32>, i32 -> vector<32x128xf32>
    %cst_126 = arith.constant 0.000000e+00 : f32
    %379 = vector.broadcast %cst_126 : f32 to vector<32x128xf32>
    %380 = arith.select %46, %378, %379 : vector<32x128xi1>, vector<32x128xf32>
    %381 = vector.broadcast %358 : vector<1x128xf32> to vector<32x128xf32>
    %382 = arith.mulf %380, %381 : vector<32x128xf32>
    %383 = arith.addf %377, %382 : vector<32x128xf32>
    %c8_i32_127 = arith.constant 8 : i32
    %384 = tpu.dynamic_rotate %349 by %c8_i32_127 dim 1 : vector<32x128xf32>, i32 -> vector<32x128xf32>
    %cst_128 = arith.constant 0.000000e+00 : f32
    %385 = vector.broadcast %cst_128 : f32 to vector<32x128xf32>
    %386 = arith.select %48, %384, %385 : vector<32x128xi1>, vector<32x128xf32>
    %387 = vector.broadcast %359 : vector<1x128xf32> to vector<32x128xf32>
    %388 = arith.mulf %386, %387 : vector<32x128xf32>
    %389 = arith.addf %383, %388 : vector<32x128xf32>
    %390 = vector.broadcast %360 : vector<1x128xf32> to vector<32x128xf32>
    %391 = arith.mulf %349, %390 : vector<32x128xf32>
    %392 = arith.addf %389, %391 : vector<32x128xf32>
    %c120_i32_129 = arith.constant 120 : i32
    %393 = tpu.dynamic_rotate %349 by %c120_i32_129 dim 1 : vector<32x128xf32>, i32 -> vector<32x128xf32>
    %cst_130 = arith.constant 0.000000e+00 : f32
    %394 = vector.broadcast %cst_130 : f32 to vector<32x128xf32>
    %395 = arith.select %46, %393, %394 : vector<32x128xi1>, vector<32x128xf32>
    %396 = vector.broadcast %361 : vector<1x128xf32> to vector<32x128xf32>
    %397 = arith.mulf %395, %396 : vector<32x128xf32>
    %398 = arith.addf %392, %397 : vector<32x128xf32>
    %c31_i32_131 = arith.constant 31 : i32
    %399 = tpu.dynamic_rotate %349 by %c31_i32_131 dim 0 : vector<32x128xf32>, i32 -> vector<32x128xf32>
    %cst_132 = arith.constant 0.000000e+00 : f32
    %400 = vector.broadcast %cst_132 : f32 to vector<32x128xf32>
    %401 = arith.select %42, %399, %400 : vector<32x128xi1>, vector<32x128xf32>
    %c8_i32_133 = arith.constant 8 : i32
    %402 = tpu.dynamic_rotate %401 by %c8_i32_133 dim 1 : vector<32x128xf32>, i32 -> vector<32x128xf32>
    %cst_134 = arith.constant 0.000000e+00 : f32
    %403 = vector.broadcast %cst_134 : f32 to vector<32x128xf32>
    %404 = arith.select %48, %402, %403 : vector<32x128xi1>, vector<32x128xf32>
    %405 = vector.broadcast %362 : vector<1x128xf32> to vector<32x128xf32>
    %406 = arith.mulf %404, %405 : vector<32x128xf32>
    %407 = arith.addf %398, %406 : vector<32x128xf32>
    %408 = vector.broadcast %363 : vector<1x128xf32> to vector<32x128xf32>
    %409 = arith.mulf %401, %408 : vector<32x128xf32>
    %410 = arith.addf %407, %409 : vector<32x128xf32>
    %c120_i32_135 = arith.constant 120 : i32
    %411 = tpu.dynamic_rotate %401 by %c120_i32_135 dim 1 : vector<32x128xf32>, i32 -> vector<32x128xf32>
    %cst_136 = arith.constant 0.000000e+00 : f32
    %412 = vector.broadcast %cst_136 : f32 to vector<32x128xf32>
    %413 = arith.select %46, %411, %412 : vector<32x128xi1>, vector<32x128xf32>
    %414 = vector.broadcast %364 : vector<1x128xf32> to vector<32x128xf32>
    %415 = arith.mulf %413, %414 : vector<32x128xf32>
    %416 = arith.addf %410, %415 : vector<32x128xf32>
    %417 = vector.broadcast %355 : vector<1x128xf32> to vector<32x128xf32>
    %418 = arith.addf %416, %417 : vector<32x128xf32>
    %419 = arith.addf %5, %259 : vector<32x128xf32>
    %420 = arith.mulf %418, %419 : vector<32x128xf32>
    %421 = arith.mulf %259, %418 : vector<32x128xf32>
    %422 = arith.mulf %258, %5 : vector<32x128xf32>
    %423 = arith.subf %422, %1 : vector<32x128xf32>
    %424 = arith.mulf %421, %423 : vector<32x128xf32>
    %425 = arith.subf %5, %424 : vector<32x128xf32>
    %c0_i32_137 = arith.constant 0 : i32
    %426 = arith.cmpi eq, %arg1, %c0_i32_137 : i32
    %427 = arith.extui %426 : i1 to i32
    %428 = arith.sitofp %427 : i32 to f32
    %429 = arith.subf %420, %425 : vector<32x128xf32>
    %430 = vector.broadcast %428 : f32 to vector<32x128xf32>
    %431 = arith.mulf %430, %429 : vector<32x128xf32>
    %432 = arith.addf %425, %431 : vector<32x128xf32>
    %c0_138 = arith.constant 0 : index
    %c0_139 = arith.constant 0 : index
    %433 = vector.load %arg13[%c0_138, %c0_139] : memref<32x128xf32, #tpu.memory_space<vmem>>, vector<32x128xf32>
    tpu.vector_store %arg13[%c0_138, %c0_139], %432 {strides = array<i32>} : memref<32x128xf32, #tpu.memory_space<vmem>>, vector<32x128xf32>,
    %c0_140 = arith.constant 0 : index
    %c0_141 = arith.constant 0 : index
    %434 = vector.load %arg14[%c0_140, %c0_141] : memref<32x128xf32, #tpu.memory_space<vmem>>, vector<32x128xf32>
    tpu.vector_store %arg14[%c0_140, %c0_141], %258 {strides = array<i32>} : memref<32x128xf32, #tpu.memory_space<vmem>>, vector<32x128xf32>,
    %c0_142 = arith.constant 0 : index
    %c0_143 = arith.constant 0 : index
    %c0_144 = arith.constant 0 : index
    %c0_145 = arith.constant 0 : index
    %435 = vector.load %arg12[%c0_142, %c0_143, %c0_144, %c0_145] : memref<1x1x32x128xf32, #tpu.memory_space<vmem>>, vector<1x1x32x128xf32>
    %436 = vector.shape_cast %435 : vector<1x1x32x128xf32> to vector<32x128xf32>
    %437 = vector.shape_cast %432 : vector<32x128xf32> to vector<1x1x32x128xf32>
    tpu.vector_store %arg12[%c0_142, %c0_143, %c0_144, %c0_145], %437 {strides = array<i32>} : memref<1x1x32x128xf32, #tpu.memory_space<vmem>>, vector<1x1x32x128xf32>,
    return
  }
  func.func @transform_0(%arg0: i32, %arg1: i32) -> (i32, i32, i32) {
    %c0_i32 = arith.constant 0 : i32
    %c0_i32_0 = arith.constant 0 : i32
    %c0_i32_1 = arith.constant 0 : i32
    return %arg0, %c0_i32, %c0_i32_0 : i32, i32, i32
  }
  func.func @transform_1(%arg0: i32, %arg1: i32) -> (i32, i32, i32) {
    %c0_i32 = arith.constant 0 : i32
    %c0_i32_0 = arith.constant 0 : i32
    %c0_i32_1 = arith.constant 0 : i32
    return %arg0, %c0_i32, %c0_i32_0 : i32, i32, i32
  }
  func.func @transform_2(%arg0: i32, %arg1: i32) -> (i32, i32, i32) {
    %c0_i32 = arith.constant 0 : i32
    %c0_i32_0 = arith.constant 0 : i32
    %c0_i32_1 = arith.constant 0 : i32
    %c0_i32_2 = arith.constant 0 : i32
    return %c0_i32, %c0_i32_0, %c0_i32_1 : i32, i32, i32
  }
  func.func @transform_3(%arg0: i32, %arg1: i32) -> (i32, i32, i32) {
    %c0_i32 = arith.constant 0 : i32
    %c0_i32_0 = arith.constant 0 : i32
    %c0_i32_1 = arith.constant 0 : i32
    %c0_i32_2 = arith.constant 0 : i32
    return %c0_i32, %c0_i32_0, %c0_i32_1 : i32, i32, i32
  }
  func.func @transform_4(%arg0: i32, %arg1: i32) -> (i32, i32, i32) {
    %c0_i32 = arith.constant 0 : i32
    %c0_i32_0 = arith.constant 0 : i32
    %c0_i32_1 = arith.constant 0 : i32
    %c0_i32_2 = arith.constant 0 : i32
    return %c0_i32, %c0_i32_0, %c0_i32_1 : i32, i32, i32
  }
  func.func @transform_5(%arg0: i32, %arg1: i32) -> (i32, i32, i32) {
    %c0_i32 = arith.constant 0 : i32
    %c0_i32_0 = arith.constant 0 : i32
    %c0_i32_1 = arith.constant 0 : i32
    %c0_i32_2 = arith.constant 0 : i32
    return %c0_i32, %c0_i32_0, %c0_i32_1 : i32, i32, i32
  }
  func.func @transform_6(%arg0: i32, %arg1: i32) -> (i32, i32, i32) {
    %c0_i32 = arith.constant 0 : i32
    %c0_i32_0 = arith.constant 0 : i32
    %c0_i32_1 = arith.constant 0 : i32
    %c0_i32_2 = arith.constant 0 : i32
    return %c0_i32, %c0_i32_0, %c0_i32_1 : i32, i32, i32
  }
  func.func @transform_7(%arg0: i32, %arg1: i32) -> (i32, i32, i32) {
    %c0_i32 = arith.constant 0 : i32
    %c0_i32_0 = arith.constant 0 : i32
    %c0_i32_1 = arith.constant 0 : i32
    %c0_i32_2 = arith.constant 0 : i32
    return %c0_i32, %c0_i32_0, %c0_i32_1 : i32, i32, i32
  }
  func.func @transform_8(%arg0: i32, %arg1: i32) -> (i32, i32, i32) {
    %c0_i32 = arith.constant 0 : i32
    %c0_i32_0 = arith.constant 0 : i32
    %c0_i32_1 = arith.constant 0 : i32
    %c0_i32_2 = arith.constant 0 : i32
    return %c0_i32, %c0_i32_0, %c0_i32_1 : i32, i32, i32
  }
  func.func @transform_9(%arg0: i32, %arg1: i32) -> (i32, i32, i32) {
    %c0_i32 = arith.constant 0 : i32
    %c0_i32_0 = arith.constant 0 : i32
    %c0_i32_1 = arith.constant 0 : i32
    %c0_i32_2 = arith.constant 0 : i32
    return %c0_i32, %c0_i32_0, %c0_i32_1 : i32, i32, i32
  }
  func.func @transform_10(%arg0: i32, %arg1: i32) -> (i32, i32, i32, i32) {
    %c0_i32 = arith.constant 0 : i32
    %c0_i32_0 = arith.constant 0 : i32
    %c0_i32_1 = arith.constant 0 : i32
    return %arg1, %arg0, %c0_i32, %c0_i32_0 : i32, i32, i32, i32
  }
}

</mosaic_0001>

<llo_original>
// kernel: squeeze.3
$region0: #{squeeze.3}
  %s0 = inlined_call_operand.vmem [shape: f32[1,1,32,128], index: 0, kind: input, shape index: {}]
  %s1 = inlined_call_operand.vmem [shape: f32[2,16,16,8], index: 1, kind: output, shape index: {}]
  $region1: #{squeeze.3} parent=0
    #allocation0 [shape = 'u8[524288]{0}', space=vmem, size = 0x80000, scoped, tag = 'scoped mem for output reshape']
    %v2 = vld [vmem:[%s0] sm:$0xff]
    %vm3 = vcmask 130048
    %4 = vst.msk [vmem:[#allocation0] ss:$8 sm:$0xf] %vm3, %v2
    %5 = vst.msk [vmem:[#allocation0] ss:$8 sm:$0xf0] %vm3, %v2
    %s6 = scalar_lea.vmem %s0, 8
    %v7 = vld [vmem:[%s6] sm:$0xff]
    %vm8 = vcmask 130048
    %s9 = scalar_lea.vmem [#allocation0], 64
    %10 = vst.msk [vmem:[%s9] ss:$8 sm:$0xf] %vm8, %v7
    %s11 = scalar_lea.vmem [#allocation0], 64
    %12 = vst.msk [vmem:[%s11] ss:$8 sm:$0xf0] %vm8, %v7
    %s13 = scalar_lea.vmem %s0, 16
    %v14 = vld [vmem:[%s13] sm:$0xff]
    %vm15 = vcmask 130048
    %s16 = scalar_lea.vmem [#allocation0], 128
    %17 = vst.msk [vmem:[%s16] ss:$8 sm:$0xf] %vm15, %v14
    %s18 = scalar_lea.vmem [#allocation0], 128
    %19 = vst.msk [vmem:[%s18] ss:$8 sm:$0xf0] %vm15, %v14
    %s20 = scalar_lea.vmem %s0, 24
    %v21 = vld [vmem:[%s20] sm:$0xff]
    %vm22 = vcmask 130048
    %s23 = scalar_lea.vmem [#allocation0], 192
    %24 = vst.msk [vmem:[%s23] ss:$8 sm:$0xf] %vm22, %v21
    %s25 = scalar_lea.vmem [#allocation0], 192
    %26 = vst.msk [vmem:[%s25] ss:$8 sm:$0xf0] %vm22, %v21
    %s27 = scalar_lea.vmem %s0, 32
    %v28 = vld [vmem:[%s27] sm:$0xff]
    %vm29 = vcmask 130048
    %s30 = scalar_lea.vmem [#allocation0], 256
    %31 = vst.msk [vmem:[%s30] ss:$8 sm:$0xf] %vm29, %v28
    %s32 = scalar_lea.vmem [#allocation0], 256
    %33 = vst.msk [vmem:[%s32] ss:$8 sm:$0xf0] %vm29, %v28
    %s34 = scalar_lea.vmem %s0, 40
    %v35 = vld [vmem:[%s34] sm:$0xff]
    %vm36 = vcmask 130048
    %s37 = scalar_lea.vmem [#allocation0], 320
    %38 = vst.msk [vmem:[%s37] ss:$8 sm:$0xf] %vm36, %v35
    %s39 = scalar_lea.vmem [#allocation0], 320
    %40 = vst.msk [vmem:[%s39] ss:$8 sm:$0xf0] %vm36, %v35
    %s41 = scalar_lea.vmem %s0, 48
    %v42 = vld [vmem:[%s41] sm:$0xff]
    %vm43 = vcmask 130048
    %s44 = scalar_lea.vmem [#allocation0], 384
    %45 = vst.msk [vmem:[%s44] ss:$8 sm:$0xf] %vm43, %v42
    %s46 = scalar_lea.vmem [#allocation0], 384
    %47 = vst.msk [vmem:[%s46] ss:$8 sm:$0xf0] %vm43, %v42
    %s48 = scalar_lea.vmem %s0, 56
    %v49 = vld [vmem:[%s48] sm:$0xff]
    %vm50 = vcmask 130048
    %s51 = scalar_lea.vmem [#allocation0], 448
    %52 = vst.msk [vmem:[%s51] ss:$8 sm:$0xf] %vm50, %v49
    %s53 = scalar_lea.vmem [#allocation0], 448
    %54 = vst.msk [vmem:[%s53] ss:$8 sm:$0xf0] %vm50, %v49
    %s55 = scalar_lea.vmem %s0, 64
    %v56 = vld [vmem:[%s55] sm:$0xff]
    %vm57 = vcmask 130048
    %s58 = scalar_lea.vmem [#allocation0], 512
    %59 = vst.msk [vmem:[%s58] ss:$8 sm:$0xf] %vm57, %v56
    %s60 = scalar_lea.vmem [#allocation0], 512
    %61 = vst.msk [vmem:[%s60] ss:$8 sm:$0xf0] %vm57, %v56
    %s62 = scalar_lea.vmem %s0, 72
    %v63 = vld [vmem:[%s62] sm:$0xff]
    %vm64 = vcmask 130048
    %s65 = scalar_lea.vmem [#allocation0], 576
    %66 = vst.msk [vmem:[%s65] ss:$8 sm:$0xf] %vm64, %v63
    %s67 = scalar_lea.vmem [#allocation0], 576
    %68 = vst.msk [vmem:[%s67] ss:$8 sm:$0xf0] %vm64, %v63
    %s69 = scalar_lea.vmem %s0, 80
    %v70 = vld [vmem:[%s69] sm:$0xff]
    %vm71 = vcmask 130048
    %s72 = scalar_lea.vmem [#allocation0], 640
    %73 = vst.msk [vmem:[%s72] ss:$8 sm:$0xf] %vm71, %v70
    %s74 = scalar_lea.vmem [#allocation0], 640
    %75 = vst.msk [vmem:[%s74] ss:$8 sm:$0xf0] %vm71, %v70
    %s76 = scalar_lea.vmem %s0, 88
    %v77 = vld [vmem:[%s76] sm:$0xff]
    %vm78 = vcmask 130048
    %s79 = scalar_lea.vmem [#allocation0], 704
    %80 = vst.msk [vmem:[%s79] ss:$8 sm:$0xf] %vm78, %v77
    %s81 = scalar_lea.vmem [#allocation0], 704
    %82 = vst.msk [vmem:[%s81] ss:$8 sm:$0xf0] %vm78, %v77
    %s83 = scalar_lea.vmem %s0, 96
    %v84 = vld [vmem:[%s83] sm:$0xff]
    %vm85 = vcmask 130048
    %s86 = scalar_lea.vmem [#allocation0], 768
    %87 = vst.msk [vmem:[%s86] ss:$8 sm:$0xf] %vm85, %v84
    %s88 = scalar_lea.vmem [#allocation0], 768
    %89 = vst.msk [vmem:[%s88] ss:$8 sm:$0xf0] %vm85, %v84
    %s90 = scalar_lea.vmem %s0, 104
    %v91 = vld [vmem:[%s90] sm:$0xff]
    %vm92 = vcmask 130048
    %s93 = scalar_lea.vmem [#allocation0], 832
    %94 = vst.msk [vmem:[%s93] ss:$8 sm:$0xf] %vm92, %v91
    %s95 = scalar_lea.vmem [#allocation0], 832
    %96 = vst.msk [vmem:[%s95] ss:$8 sm:$0xf0] %vm92, %v91
    %s97 = scalar_lea.vmem %s0, 112
    %v98 = vld [vmem:[%s97] sm:$0xff]
    %vm99 = vcmask 130048
    %s100 = scalar_lea.vmem [#allocation0], 896
    %101 = vst.msk [vmem:[%s100] ss:$8 sm:$0xf] %vm99, %v98
    %s102 = scalar_lea.vmem [#allocation0], 896
    %103 = vst.msk [vmem:[%s102] ss:$8 sm:$0xf0] %vm99, %v98
    %s104 = scalar_lea.vmem %s0, 120
    %v105 = vld [vmem:[%s104] sm:$0xff]
    %vm106 = vcmask 130048
    %s107 = scalar_lea.vmem [#allocation0], 960
    %108 = vst.msk [vmem:[%s107] ss:$8 sm:$0xf] %vm106, %v105
    %s109 = scalar_lea.vmem [#allocation0], 960
    %110 = vst.msk [vmem:[%s109] ss:$8 sm:$0xf0] %vm106, %v105
    %v111 = vld [vmem:[%s0] sm:$0xff]
    %112 = vrot.lane.b32.xlu0 %v111, 112
    %v113 = vpop.permute.xlu0 %112
    %vm114 = vcmask 130048
    %s115 = scalar_lea.vmem [#allocation0], 1
    %116 = vst.msk [vmem:[%s115] ss:$8 sm:$0xf] %vm114, %v113
    %s117 = scalar_lea.vmem [#allocation0], 1
    %118 = vst.msk [vmem:[%s117] ss:$8 sm:$0xf0] %vm114, %v113
    %s119 = scalar_lea.vmem %s0, 8
    %v120 = vld [vmem:[%s119] sm:$0xff]
    %121 = vrot.lane.b32.xlu0 %v120, 112
    %v122 = vpop.permute.xlu0 %121
    %vm123 = vcmask 130048
    %s124 = scalar_lea.vmem [#allocation0], 65
    %125 = vst.msk [vmem:[%s124] ss:$8 sm:$0xf] %vm123, %v122
    %s126 = scalar_lea.vmem [#allocation0], 65
    %127 = vst.msk [vmem:[%s126] ss:$8 sm:$0xf0] %vm123, %v122
    %s128 = scalar_lea.vmem %s0, 16
    %v129 = vld [vmem:[%s128] sm:$0xff]
    %130 = vrot.lane.b32.xlu0 %v129, 112
    %v131 = vpop.permute.xlu0 %130
    %vm132 = vcmask 130048
    %s133 = scalar_lea.vmem [#allocation0], 129
    %134 = vst.msk [vmem:[%s133] ss:$8 sm:$0xf] %vm132, %v131
    %s135 = scalar_lea.vmem [#allocation0], 129
    %136 = vst.msk [vmem:[%s135] ss:$8 sm:$0xf0] %vm132, %v131
    %s137 = scalar_lea.vmem %s0, 24
    %v138 = vld [vmem:[%s137] sm:$0xff]
    %139 = vrot.lane.b32.xlu0 %v138, 112
    %v140 = vpop.permute.xlu0 %139
    %vm141 = vcmask 130048
    %s142 = scalar_lea.vmem [#allocation0], 193
    %143 = vst.msk [vmem:[%s142] ss:$8 sm:$0xf] %vm141, %v140
    %s144 = scalar_lea.vmem [#allocation0], 193
    %145 = vst.msk [vmem:[%s144] ss:$8 sm:$0xf0] %vm141, %v140
    %s146 = scalar_lea.vmem %s0, 32
    %v147 = vld [vmem:[%s146] sm:$0xff]
    %148 = vrot.lane.b32.xlu0 %v147, 112
    %v149 = vpop.permute.xlu0 %148
    %vm150 = vcmask 130048
    %s151 = scalar_lea.vmem [#allocation0], 257
    %152 = vst.msk [vmem:[%s151] ss:$8 sm:$0xf] %vm150, %v149
    %s153 = scalar_lea.vmem [#allocation0], 257
    %154 = vst.msk [vmem:[%s153] ss:$8 sm:$0xf0] %vm150, %v149
    %s155 = scalar_lea.vmem %s0, 40
    %v156 = vld [vmem:[%s155] sm:$0xff]
    %157 = vrot.lane.b32.xlu0 %v156, 112
    %v158 = vpop.permute.xlu0 %157
    %vm159 = vcmask 130048
    %s160 = scalar_lea.vmem [#allocation0], 321
    %161 = vst.msk [vmem:[%s160] ss:$8 sm:$0xf] %vm159, %v158
    %s162 = scalar_lea.vmem [#allocation0], 321
    %163 = vst.msk [vmem:[%s162] ss:$8 sm:$0xf0] %vm159, %v158
    %s164 = scalar_lea.vmem %s0, 48
    %v165 = vld [vmem:[%s164] sm:$0xff]
    %166 = vrot.lane.b32.xlu0 %v165, 112
    %v167 = vpop.permute.xlu0 %166
    %vm168 = vcmask 130048
    %s169 = scalar_lea.vmem [#allocation0], 385
    %170 = vst.msk [vmem:[%s169] ss:$8 sm:$0xf] %vm168, %v167
    %s171 = scalar_lea.vmem [#allocation0], 385
    %172 = vst.msk [vmem:[%s171] ss:$8 sm:$0xf0] %vm168, %v167
    %s173 = scalar_lea.vmem %s0, 56
    %v174 = vld [vmem:[%s173] sm:$0xff]
    %175 = vrot.lane.b32.xlu0 %v174, 112
    %v176 = vpop.permute.xlu0 %175
    %vm177 = vcmask 130048
    %s178 = scalar_lea.vmem [#allocation0], 449
    %179 = vst.msk [vmem:[%s178] ss:$8 sm:$0xf] %vm177, %v176
    %s180 = scalar_lea.vmem [#allocation0], 449
    %181 = vst.msk [vmem:[%s180] ss:$8 sm:$0xf0] %vm177, %v176
    %s182 = scalar_lea.vmem %s0, 64
    %v183 = vld [vmem:[%s182] sm:$0xff]
    %184 = vrot.lane.b32.xlu0 %v183, 112
    %v185 = vpop.permute.xlu0 %184
    %vm186 = vcmask 130048
    %s187 = scalar_lea.vmem [#allocation0], 513
    %188 = vst.msk [vmem:[%s187] ss:$8 sm:$0xf] %vm186, %v185
    %s189 = scalar_lea.vmem [#allocation0], 513
    %190 = vst.msk [vmem:[%s189] ss:$8 sm:$0xf0] %vm186, %v185
    %s191 = scalar_lea.vmem %s0, 72
    %v192 = vld [vmem:[%s191] sm:$0xff]
    %193 = vrot.lane.b32.xlu0 %v192, 112
    %v194 = vpop.permute.xlu0 %193
    %vm195 = vcmask 130048
    %s196 = scalar_lea.vmem [#allocation0], 577
    %197 = vst.msk [vmem:[%s196] ss:$8 sm:$0xf] %vm195, %v194
    %s198 = scalar_lea.vmem [#allocation0], 577
    %199 = vst.msk [vmem:[%s198] ss:$8 sm:$0xf0] %vm195, %v194
    %s200 = scalar_lea.vmem %s0, 80
    %v201 = vld [vmem:[%s200] sm:$0xff]
    %202 = vrot.lane.b32.xlu0 %v201, 112
    %v203 = vpop.permute.xlu0 %202
    %vm204 = vcmask 130048
    %s205 = scalar_lea.vmem [#allocation0], 641
    %206 = vst.msk [vmem:[%s205] ss:$8 sm:$0xf] %vm204, %v203
    %s207 = scalar_lea.vmem [#allocation0], 641
    %208 = vst.msk [vmem:[%s207] ss:$8 sm:$0xf0] %vm204, %v203
    %s209 = scalar_lea.vmem %s0, 88
    %v210 = vld [vmem:[%s209] sm:$0xff]
    %211 = vrot.lane.b32.xlu0 %v210, 112
    %v212 = vpop.permute.xlu0 %211
    %vm213 = vcmask 130048
    %s214 = scalar_lea.vmem [#allocation0], 705
    %215 = vst.msk [vmem:[%s214] ss:$8 sm:$0xf] %vm213, %v212
    %s216 = scalar_lea.vmem [#allocation0], 705
    %217 = vst.msk [vmem:[%s216] ss:$8 sm:$0xf0] %vm213, %v212
    %s218 = scalar_lea.vmem %s0, 96
    %v219 = vld [vmem:[%s218] sm:$0xff]
    %220 = vrot.lane.b32.xlu0 %v219, 112
    %v221 = vpop.permute.xlu0 %220
    %vm222 = vcmask 130048
    %s223 = scalar_lea.vmem [#allocation0], 769
    %224 = vst.msk [vmem:[%s223] ss:$8 sm:$0xf] %vm222, %v221
    %s225 = scalar_lea.vmem [#allocation0], 769
    %226 = vst.msk [vmem:[%s225] ss:$8 sm:$0xf0] %vm222, %v221
    %s227 = scalar_lea.vmem %s0, 104
    %v228 = vld [vmem:[%s227] sm:$0xff]
    %229 = vrot.lane.b32.xlu0 %v228, 112
    %v230 = vpop.permute.xlu0 %229
    %vm231 = vcmask 130048
    %s232 = scalar_lea.vmem [#allocation0], 833
    %233 = vst.msk [vmem:[%s232] ss:$8 sm:$0xf] %vm231, %v230
    %s234 = scalar_lea.vmem [#allocation0], 833
    %235 = vst.msk [vmem:[%s234] ss:$8 sm:$0xf0] %vm231, %v230
    %s236 = scalar_lea.vmem %s0, 112
    %v237 = vld [vmem:[%s236] sm:$0xff]
    %238 = vrot.lane.b32.xlu0 %v237, 112
    %v239 = vpop.permute.xlu0 %238
    %vm240 = vcmask 130048
    %s241 = scalar_lea.vmem [#allocation0], 897
    %242 = vst.msk [vmem:[%s241] ss:$8 sm:$0xf] %vm240, %v239
    %s243 = scalar_lea.vmem [#allocation0], 897
    %244 = vst.msk [vmem:[%s243] ss:$8 sm:$0xf0] %vm240, %v239
    %s245 = scalar_lea.vmem %s0, 120
    %v246 = vld [vmem:[%s245] sm:$0xff]
    %247 = vrot.lane.b32.xlu0 %v246, 112
    %v248 = vpop.permute.xlu0 %247
    %vm249 = vcmask 130048
    %s250 = scalar_lea.vmem [#allocation0], 961
    %251 = vst.msk [vmem:[%s250] ss:$8 sm:$0xf] %vm249, %v248
    %s252 = scalar_lea.vmem [#allocation0], 961
    %253 = vst.msk [vmem:[%s252] ss:$8 sm:$0xf0] %vm249, %v248
    %s255 = ssub.s32 4, 1
    %v256 = vld [vmem:[#allocation0] sm:%s255]
    %s258 = ssub.s32 4, 1
    %259 = vst [vmem:[%s1] sm:%s258] %v256
    %s260 = scalar_lea.vmem [#allocation0], 8
    %v261 = vld [vmem:[%s260] sm:%s255]
    %s263 = ssub.s32 4, 1
    %s264 = scalar_lea.vmem %s1, 2
    %265 = vst [vmem:[%s264] sm:%s263] %v261
    %s266 = scalar_lea.vmem [#allocation0], 16
    %v267 = vld [vmem:[%s266] sm:%s255]
    %s269 = ssub.s32 4, 1
    %s270 = scalar_lea.vmem %s1, 4
    %271 = vst [vmem:[%s270] sm:%s269] %v267
    %s272 = scalar_lea.vmem [#allocation0], 24
    %v273 = vld [vmem:[%s272] sm:%s255]
    %s275 = ssub.s32 4, 1
    %s276 = scalar_lea.vmem %s1, 6
    %277 = vst [vmem:[%s276] sm:%s275] %v273
    %s278 = scalar_lea.vmem [#allocation0], 32
    %v279 = vld [vmem:[%s278] sm:%s255]
    %s281 = ssub.s32 4, 1
    %s282 = scalar_lea.vmem %s1, 8
    %283 = vst [vmem:[%s282] sm:%s281] %v279
    %s284 = scalar_lea.vmem [#allocation0], 40
    %v285 = vld [vmem:[%s284] sm:%s255]
    %s287 = ssub.s32 4, 1
    %s288 = scalar_lea.vmem %s1, 10
    %289 = vst [vmem:[%s288] sm:%s287] %v285
    %s290 = scalar_lea.vmem [#allocation0], 48
    %v291 = vld [vmem:[%s290] sm:%s255]
    %s293 = ssub.s32 4, 1
    %s294 = scalar_lea.vmem %s1, 12
    %295 = vst [vmem:[%s294] sm:%s293] %v291
    %s296 = scalar_lea.vmem [#allocation0], 56
    %v297 = vld [vmem:[%s296] sm:%s255]
    %s299 = ssub.s32 4, 1
    %s300 = scalar_lea.vmem %s1, 14
    %301 = vst [vmem:[%s300] sm:%s299] %v297
    %s302 = scalar_lea.vmem [#allocation0], 64
    %v303 = vld [vmem:[%s302] sm:%s255]
    %s305 = ssub.s32 4, 1
    %s306 = scalar_lea.vmem %s1, 16
    %307 = vst [vmem:[%s306] sm:%s305] %v303
    %s308 = scalar_lea.vmem [#allocation0], 72
    %v309 = vld [vmem:[%s308] sm:%s255]
    %s311 = ssub.s32 4, 1
    %s312 = scalar_lea.vmem %s1, 18
    %313 = vst [vmem:[%s312] sm:%s311] %v309
    %s314 = scalar_lea.vmem [#allocation0], 80
    %v315 = vld [vmem:[%s314] sm:%s255]
    %s317 = ssub.s32 4, 1
    %s318 = scalar_lea.vmem %s1, 20
    %319 = vst [vmem:[%s318] sm:%s317] %v315
    %s320 = scalar_lea.vmem [#allocation0], 88
    %v321 = vld [vmem:[%s320] sm:%s255]
    %s323 = ssub.s32 4, 1
    %s324 = scalar_lea.vmem %s1, 22
    %325 = vst [vmem:[%s324] sm:%s323] %v321
    %s326 = scalar_lea.vmem [#allocation0], 96
    %v327 = vld [vmem:[%s326] sm:%s255]
    %s329 = ssub.s32 4, 1
    %s330 = scalar_lea.vmem %s1, 24
    %331 = vst [vmem:[%s330] sm:%s329] %v327
    %s332 = scalar_lea.vmem [#allocation0], 104
    %v333 = vld [vmem:[%s332] sm:%s255]
    %s335 = ssub.s32 4, 1
    %s336 = scalar_lea.vmem %s1, 26
    %337 = vst [vmem:[%s336] sm:%s335] %v333
    %s338 = scalar_lea.vmem [#allocation0], 112
    %v339 = vld [vmem:[%s338] sm:%s255]
    %s341 = ssub.s32 4, 1
    %s342 = scalar_lea.vmem %s1, 28
    %343 = vst [vmem:[%s342] sm:%s341] %v339
    %s344 = scalar_lea.vmem [#allocation0], 120
    %v345 = vld [vmem:[%s344] sm:%s255]
    %s347 = ssub.s32 4, 1
    %s348 = scalar_lea.vmem %s1, 30
    %349 = vst [vmem:[%s348] sm:%s347] %v345
    %s350 = scalar_lea.vmem [#allocation0], 128
    %v351 = vld [vmem:[%s350] sm:%s255]
    %s353 = ssub.s32 4, 1
    %s354 = scalar_lea.vmem %s1, 32
    %355 = vst [vmem:[%s354] sm:%s353] %v351
    %s356 = scalar_lea.vmem [#allocation0], 136
    %v357 = vld [vmem:[%s356] sm:%s255]
    %s359 = ssub.s32 4, 1
    %s360 = scalar_lea.vmem %s1, 34
    %361 = vst [vmem:[%s360] sm:%s359] %v357
    %s362 = scalar_lea.vmem [#allocation0], 144
    %v363 = vld [vmem:[%s362] sm:%s255]
    %s365 = ssub.s32 4, 1
    %s366 = scalar_lea.vmem %s1, 36
    %367 = vst [vmem:[%s366] sm:%s365] %v363
    %s368 = scalar_lea.vmem [#allocation0], 152
    %v369 = vld [vmem:[%s368] sm:%s255]
    %s371 = ssub.s32 4, 1
    %s372 = scalar_lea.vmem %s1, 38
    %373 = vst [vmem:[%s372] sm:%s371] %v369
    %s374 = scalar_lea.vmem [#allocation0], 160
    %v375 = vld [vmem:[%s374] sm:%s255]
    %s377 = ssub.s32 4, 1
    %s378 = scalar_lea.vmem %s1, 40
    %379 = vst [vmem:[%s378] sm:%s377] %v375
    %s380 = scalar_lea.vmem [#allocation0], 168
    %v381 = vld [vmem:[%s380] sm:%s255]
    %s383 = ssub.s32 4, 1
    %s384 = scalar_lea.vmem %s1, 42
    %385 = vst [vmem:[%s384] sm:%s383] %v381
    %s386 = scalar_lea.vmem [#allocation0], 176
    %v387 = vld [vmem:[%s386] sm:%s255]
    %s389 = ssub.s32 4, 1
    %s390 = scalar_lea.vmem %s1, 44
    %391 = vst [vmem:[%s390] sm:%s389] %v387
    %s392 = scalar_lea.vmem [#allocation0], 184
    %v393 = vld [vmem:[%s392] sm:%s255]
    %s395 = ssub.s32 4, 1
    %s396 = scalar_lea.vmem %s1, 46
    %397 = vst [vmem:[%s396] sm:%s395] %v393
    %s398 = scalar_lea.vmem [#allocation0], 192
    %v399 = vld [vmem:[%s398] sm:%s255]
    %s401 = ssub.s32 4, 1
    %s402 = scalar_lea.vmem %s1, 48
    %403 = vst [vmem:[%s402] sm:%s401] %v399
    %s404 = scalar_lea.vmem [#allocation0], 200
    %v405 = vld [vmem:[%s404] sm:%s255]
    %s407 = ssub.s32 4, 1
    %s408 = scalar_lea.vmem %s1, 50
    %409 = vst [vmem:[%s408] sm:%s407] %v405
    %s410 = scalar_lea.vmem [#allocation0], 208
    %v411 = vld [vmem:[%s410] sm:%s255]
    %s413 = ssub.s32 4, 1
    %s414 = scalar_lea.vmem %s1, 52
    %415 = vst [vmem:[%s414] sm:%s413] %v411
    %s416 = scalar_lea.vmem [#allocation0], 216
    %v417 = vld [vmem:[%s416] sm:%s255]
    %s419 = ssub.s32 4, 1
    %s420 = scalar_lea.vmem %s1, 54
    %421 = vst [vmem:[%s420] sm:%s419] %v417
    %s422 = scalar_lea.vmem [#allocation0], 224
    %v423 = vld [vmem:[%s422] sm:%s255]
    %s425 = ssub.s32 4, 1
    %s426 = scalar_lea.vmem %s1, 56
    %427 = vst [vmem:[%s426] sm:%s425] %v423
    %s428 = scalar_lea.vmem [#allocation0], 232
    %v429 = vld [vmem:[%s428] sm:%s255]
    %s431 = ssub.s32 4, 1
    %s432 = scalar_lea.vmem %s1, 58
    %433 = vst [vmem:[%s432] sm:%s431] %v429
    %s434 = scalar_lea.vmem [#allocation0], 240
    %v435 = vld [vmem:[%s434] sm:%s255]
    %s437 = ssub.s32 4, 1
    %s438 = scalar_lea.vmem %s1, 60
    %439 = vst [vmem:[%s438] sm:%s437] %v435
    %s440 = scalar_lea.vmem [#allocation0], 248
    %v441 = vld [vmem:[%s440] sm:%s255]
    %s443 = ssub.s32 4, 1
    %s444 = scalar_lea.vmem %s1, 62
    %445 = vst [vmem:[%s444] sm:%s443] %v441
    %s446 = scalar_lea.vmem [#allocation0], 256
    %v447 = vld [vmem:[%s446] sm:%s255]
    %s449 = ssub.s32 4, 1
    %s450 = scalar_lea.vmem %s1, 64
    %451 = vst [vmem:[%s450] sm:%s449] %v447
    %s452 = scalar_lea.vmem [#allocation0], 264
    %v453 = vld [vmem:[%s452] sm:%s255]
    %s455 = ssub.s32 4, 1
    %s456 = scalar_lea.vmem %s1, 66
    %457 = vst [vmem:[%s456] sm:%s455] %v453
    %s458 = scalar_lea.vmem [#allocation0], 272
    %v459 = vld [vmem:[%s458] sm:%s255]
    %s461 = ssub.s32 4, 1
    %s462 = scalar_lea.vmem %s1, 68
    %463 = vst [vmem:[%s462] sm:%s461] %v459
    %s464 = scalar_lea.vmem [#allocation0], 280
    %v465 = vld [vmem:[%s464] sm:%s255]
    %s467 = ssub.s32 4, 1
    %s468 = scalar_lea.vmem %s1, 70
    %469 = vst [vmem:[%s468] sm:%s467] %v465
    %s470 = scalar_lea.vmem [#allocation0], 288
    %v471 = vld [vmem:[%s470] sm:%s255]
    %s473 = ssub.s32 4, 1
    %s474 = scalar_lea.vmem %s1, 72
    %475 = vst [vmem:[%s474] sm:%s473] %v471
    %s476 = scalar_lea.vmem [#allocation0], 296
    %v477 = vld [vmem:[%s476] sm:%s255]
    %s479 = ssub.s32 4, 1
    %s480 = scalar_lea.vmem %s1, 74
    %481 = vst [vmem:[%s480] sm:%s479] %v477
    %s482 = scalar_lea.vmem [#allocation0], 304
    %v483 = vld [vmem:[%s482] sm:%s255]
    %s485 = ssub.s32 4, 1
    %s486 = scalar_lea.vmem %s1, 76
    %487 = vst [vmem:[%s486] sm:%s485] %v483
    %s488 = scalar_lea.vmem [#allocation0], 312
    %v489 = vld [vmem:[%s488] sm:%s255]
    %s491 = ssub.s32 4, 1
    %s492 = scalar_lea.vmem %s1, 78
    %493 = vst [vmem:[%s492] sm:%s491] %v489
    %s494 = scalar_lea.vmem [#allocation0], 320
    %v495 = vld [vmem:[%s494] sm:%s255]
    %s497 = ssub.s32 4, 1
    %s498 = scalar_lea.vmem %s1, 80
    %499 = vst [vmem:[%s498] sm:%s497] %v495
    %s500 = scalar_lea.vmem [#allocation0], 328
    %v501 = vld [vmem:[%s500] sm:%s255]
    %s503 = ssub.s32 4, 1
    %s504 = scalar_lea.vmem %s1, 82
    %505 = vst [vmem:[%s504] sm:%s503] %v501
    %s506 = scalar_lea.vmem [#allocation0], 336
    %v507 = vld [vmem:[%s506] sm:%s255]
    %s509 = ssub.s32 4, 1
    %s510 = scalar_lea.vmem %s1, 84
    %511 = vst [vmem:[%s510] sm:%s509] %v507
    %s512 = scalar_lea.vmem [#allocation0], 344
    %v513 = vld [vmem:[%s512] sm:%s255]
    %s515 = ssub.s32 4, 1
    %s516 = scalar_lea.vmem %s1, 86
    %517 = vst [vmem:[%s516] sm:%s515] %v513
    %s518 = scalar_lea.vmem [#allocation0], 352
    %v519 = vld [vmem:[%s518] sm:%s255]
    %s521 = ssub.s32 4, 1
    %s522 = scalar_lea.vmem %s1, 88
    %523 = vst [vmem:[%s522] sm:%s521] %v519
    %s524 = scalar_lea.vmem [#allocation0], 360
    %v525 = vld [vmem:[%s524] sm:%s255]
    %s527 = ssub.s32 4, 1
    %s528 = scalar_lea.vmem %s1, 90
    %529 = vst [vmem:[%s528] sm:%s527] %v525
    %s530 = scalar_lea.vmem [#allocation0], 368
    %v531 = vld [vmem:[%s530] sm:%s255]
    %s533 = ssub.s32 4, 1
    %s534 = scalar_lea.vmem %s1, 92
    %535 = vst [vmem:[%s534] sm:%s533] %v531
    %s536 = scalar_lea.vmem [#allocation0], 376
    %v537 = vld [vmem:[%s536] sm:%s255]
    %s539 = ssub.s32 4, 1
    %s540 = scalar_lea.vmem %s1, 94
    %541 = vst [vmem:[%s540] sm:%s539] %v537
    %s542 = scalar_lea.vmem [#allocation0], 384
    %v543 = vld [vmem:[%s542] sm:%s255]
    %s545 = ssub.s32 4, 1
    %s546 = scalar_lea.vmem %s1, 96
    %547 = vst [vmem:[%s546] sm:%s545] %v543
    %s548 = scalar_lea.vmem [#allocation0], 392
    %v549 = vld [vmem:[%s548] sm:%s255]
    %s551 = ssub.s32 4, 1
    %s552 = scalar_lea.vmem %s1, 98
    %553 = vst [vmem:[%s552] sm:%s551] %v549
    %s554 = scalar_lea.vmem [#allocation0], 400
    %v555 = vld [vmem:[%s554] sm:%s255]
    %s557 = ssub.s32 4, 1
    %s558 = scalar_lea.vmem %s1, 100
    %559 = vst [vmem:[%s558] sm:%s557] %v555
    %s560 = scalar_lea.vmem [#allocation0], 408
    %v561 = vld [vmem:[%s560] sm:%s255]
    %s563 = ssub.s32 4, 1
    %s564 = scalar_lea.vmem %s1, 102
    %565 = vst [vmem:[%s564] sm:%s563] %v561
    %s566 = scalar_lea.vmem [#allocation0], 416
    %v567 = vld [vmem:[%s566] sm:%s255]
    %s569 = ssub.s32 4, 1
    %s570 = scalar_lea.vmem %s1, 104
    %571 = vst [vmem:[%s570] sm:%s569] %v567
    %s572 = scalar_lea.vmem [#allocation0], 424
    %v573 = vld [vmem:[%s572] sm:%s255]
    %s575 = ssub.s32 4, 1
    %s576 = scalar_lea.vmem %s1, 106
    %577 = vst [vmem:[%s576] sm:%s575] %v573
    %s578 = scalar_lea.vmem [#allocation0], 432
    %v579 = vld [vmem:[%s578] sm:%s255]
    %s581 = ssub.s32 4, 1
    %s582 = scalar_lea.vmem %s1, 108
    %583 = vst [vmem:[%s582] sm:%s581] %v579
    %s584 = scalar_lea.vmem [#allocation0], 440
    %v585 = vld [vmem:[%s584] sm:%s255]
    %s587 = ssub.s32 4, 1
    %s588 = scalar_lea.vmem %s1, 110
    %589 = vst [vmem:[%s588] sm:%s587] %v585
    %s590 = scalar_lea.vmem [#allocation0], 448
    %v591 = vld [vmem:[%s590] sm:%s255]
    %s593 = ssub.s32 4, 1
    %s594 = scalar_lea.vmem %s1, 112
    %595 = vst [vmem:[%s594] sm:%s593] %v591
    %s596 = scalar_lea.vmem [#allocation0], 456
    %v597 = vld [vmem:[%s596] sm:%s255]
    %s599 = ssub.s32 4, 1
    %s600 = scalar_lea.vmem %s1, 114
    %601 = vst [vmem:[%s600] sm:%s599] %v597
    %s602 = scalar_lea.vmem [#allocation0], 464
    %v603 = vld [vmem:[%s602] sm:%s255]
    %s605 = ssub.s32 4, 1
    %s606 = scalar_lea.vmem %s1, 116
    %607 = vst [vmem:[%s606] sm:%s605] %v603
    %s608 = scalar_lea.vmem [#allocation0], 472
    %v609 = vld [vmem:[%s608] sm:%s255]
    %s611 = ssub.s32 4, 1
    %s612 = scalar_lea.vmem %s1, 118
    %613 = vst [vmem:[%s612] sm:%s611] %v609
    %s614 = scalar_lea.vmem [#allocation0], 480
    %v615 = vld [vmem:[%s614] sm:%s255]
    %s617 = ssub.s32 4, 1
    %s618 = scalar_lea.vmem %s1, 120
    %619 = vst [vmem:[%s618] sm:%s617] %v615
    %s620 = scalar_lea.vmem [#allocation0], 488
    %v621 = vld [vmem:[%s620] sm:%s255]
    %s623 = ssub.s32 4, 1
    %s624 = scalar_lea.vmem %s1, 122
    %625 = vst [vmem:[%s624] sm:%s623] %v621
    %s626 = scalar_lea.vmem [#allocation0], 496
    %v627 = vld [vmem:[%s626] sm:%s255]
    %s629 = ssub.s32 4, 1
    %s630 = scalar_lea.vmem %s1, 124
    %631 = vst [vmem:[%s630] sm:%s629] %v627
    %s632 = scalar_lea.vmem [#allocation0], 504
    %v633 = vld [vmem:[%s632] sm:%s255]
    %s635 = ssub.s32 4, 1
    %s636 = scalar_lea.vmem %s1, 126
    %637 = vst [vmem:[%s636] sm:%s635] %v633
    %s638 = scalar_lea.vmem [#allocation0], 512
    %v639 = vld [vmem:[%s638] sm:%s255]
    %s641 = ssub.s32 4, 1
    %s642 = scalar_lea.vmem %s1, 128
    %643 = vst [vmem:[%s642] sm:%s641] %v639
    %s644 = scalar_lea.vmem [#allocation0], 520
    %v645 = vld [vmem:[%s644] sm:%s255]
    %s647 = ssub.s32 4, 1
    %s648 = scalar_lea.vmem %s1, 130
    %649 = vst [vmem:[%s648] sm:%s647] %v645
    %s650 = scalar_lea.vmem [#allocation0], 528
    %v651 = vld [vmem:[%s650] sm:%s255]
    %s653 = ssub.s32 4, 1
    %s654 = scalar_lea.vmem %s1, 132
    %655 = vst [vmem:[%s654] sm:%s653] %v651
    %s656 = scalar_lea.vmem [#allocation0], 536
    %v657 = vld [vmem:[%s656] sm:%s255]
    %s659 = ssub.s32 4, 1
    %s660 = scalar_lea.vmem %s1, 134
    %661 = vst [vmem:[%s660] sm:%s659] %v657
    %s662 = scalar_lea.vmem [#allocation0], 544
    %v663 = vld [vmem:[%s662] sm:%s255]
    %s665 = ssub.s32 4, 1
    %s666 = scalar_lea.vmem %s1, 136
    %667 = vst [vmem:[%s666] sm:%s665] %v663
    %s668 = scalar_lea.vmem [#allocation0], 552
    %v669 = vld [vmem:[%s668] sm:%s255]
    %s671 = ssub.s32 4, 1
    %s672 = scalar_lea.vmem %s1, 138
    %673 = vst [vmem:[%s672] sm:%s671] %v669
    %s674 = scalar_lea.vmem [#allocation0], 560
    %v675 = vld [vmem:[%s674] sm:%s255]
    %s677 = ssub.s32 4, 1
    %s678 = scalar_lea.vmem %s1, 140
    %679 = vst [vmem:[%s678] sm:%s677] %v675
    %s680 = scalar_lea.vmem [#allocation0], 568
    %v681 = vld [vmem:[%s680] sm:%s255]
    %s683 = ssub.s32 4, 1
    %s684 = scalar_lea.vmem %s1, 142
    %685 = vst [vmem:[%s684] sm:%s683] %v681
    %s686 = scalar_lea.vmem [#allocation0], 576
    %v687 = vld [vmem:[%s686] sm:%s255]
    %s689 = ssub.s32 4, 1
    %s690 = scalar_lea.vmem %s1, 144
    %691 = vst [vmem:[%s690] sm:%s689] %v687
    %s692 = scalar_lea.vmem [#allocation0], 584
    %v693 = vld [vmem:[%s692] sm:%s255]
    %s695 = ssub.s32 4, 1
    %s696 = scalar_lea.vmem %s1, 146
    %697 = vst [vmem:[%s696] sm:%s695] %v693
    %s698 = scalar_lea.vmem [#allocation0], 592
    %v699 = vld [vmem:[%s698] sm:%s255]
    %s701 = ssub.s32 4, 1
    %s702 = scalar_lea.vmem %s1, 148
    %703 = vst [vmem:[%s702] sm:%s701] %v699
    %s704 = scalar_lea.vmem [#allocation0], 600
    %v705 = vld [vmem:[%s704] sm:%s255]
    %s707 = ssub.s32 4, 1
    %s708 = scalar_lea.vmem %s1, 150
    %709 = vst [vmem:[%s708] sm:%s707] %v705
    %s710 = scalar_lea.vmem [#allocation0], 608
    %v711 = vld [vmem:[%s710] sm:%s255]
    %s713 = ssub.s32 4, 1
    %s714 = scalar_lea.vmem %s1, 152
    %715 = vst [vmem:[%s714] sm:%s713] %v711
    %s716 = scalar_lea.vmem [#allocation0], 616
    %v717 = vld [vmem:[%s716] sm:%s255]
    %s719 = ssub.s32 4, 1
    %s720 = scalar_lea.vmem %s1, 154
    %721 = vst [vmem:[%s720] sm:%s719] %v717
    %s722 = scalar_lea.vmem [#allocation0], 624
    %v723 = vld [vmem:[%s722] sm:%s255]
    %s725 = ssub.s32 4, 1
    %s726 = scalar_lea.vmem %s1, 156
    %727 = vst [vmem:[%s726] sm:%s725] %v723
    %s728 = scalar_lea.vmem [#allocation0], 632
    %v729 = vld [vmem:[%s728] sm:%s255]
    %s731 = ssub.s32 4, 1
    %s732 = scalar_lea.vmem %s1, 158
    %733 = vst [vmem:[%s732] sm:%s731] %v729
    %s734 = scalar_lea.vmem [#allocation0], 640
    %v735 = vld [vmem:[%s734] sm:%s255]
    %s737 = ssub.s32 4, 1
    %s738 = scalar_lea.vmem %s1, 160
    %739 = vst [vmem:[%s738] sm:%s737] %v735
    %s740 = scalar_lea.vmem [#allocation0], 648
    %v741 = vld [vmem:[%s740] sm:%s255]
    %s743 = ssub.s32 4, 1
    %s744 = scalar_lea.vmem %s1, 162
    %745 = vst [vmem:[%s744] sm:%s743] %v741
    %s746 = scalar_lea.vmem [#allocation0], 656
    %v747 = vld [vmem:[%s746] sm:%s255]
    %s749 = ssub.s32 4, 1
    %s750 = scalar_lea.vmem %s1, 164
    %751 = vst [vmem:[%s750] sm:%s749] %v747
    %s752 = scalar_lea.vmem [#allocation0], 664
    %v753 = vld [vmem:[%s752] sm:%s255]
    %s755 = ssub.s32 4, 1
    %s756 = scalar_lea.vmem %s1, 166
    %757 = vst [vmem:[%s756] sm:%s755] %v753
    %s758 = scalar_lea.vmem [#allocation0], 672
    %v759 = vld [vmem:[%s758] sm:%s255]
    %s761 = ssub.s32 4, 1
    %s762 = scalar_lea.vmem %s1, 168
    %763 = vst [vmem:[%s762] sm:%s761] %v759
    %s764 = scalar_lea.vmem [#allocation0], 680
    %v765 = vld [vmem:[%s764] sm:%s255]
    %s767 = ssub.s32 4, 1
    %s768 = scalar_lea.vmem %s1, 170
    %769 = vst [vmem:[%s768] sm:%s767] %v765
    %s770 = scalar_lea.vmem [#allocation0], 688
    %v771 = vld [vmem:[%s770] sm:%s255]
    %s773 = ssub.s32 4, 1
    %s774 = scalar_lea.vmem %s1, 172
    %775 = vst [vmem:[%s774] sm:%s773] %v771
    %s776 = scalar_lea.vmem [#allocation0], 696
    %v777 = vld [vmem:[%s776] sm:%s255]
    %s779 = ssub.s32 4, 1
    %s780 = scalar_lea.vmem %s1, 174
    %781 = vst [vmem:[%s780] sm:%s779] %v777
    %s782 = scalar_lea.vmem [#allocation0], 704
    %v783 = vld [vmem:[%s782] sm:%s255]
    %s785 = ssub.s32 4, 1
    %s786 = scalar_lea.vmem %s1, 176
    %787 = vst [vmem:[%s786] sm:%s785] %v783
    %s788 = scalar_lea.vmem [#allocation0], 712
    %v789 = vld [vmem:[%s788] sm:%s255]
    %s791 = ssub.s32 4, 1
    %s792 = scalar_lea.vmem %s1, 178
    %793 = vst [vmem:[%s792] sm:%s791] %v789
    %s794 = scalar_lea.vmem [#allocation0], 720
    %v795 = vld [vmem:[%s794] sm:%s255]
    %s797 = ssub.s32 4, 1
    %s798 = scalar_lea.vmem %s1, 180
    %799 = vst [vmem:[%s798] sm:%s797] %v795
    %s800 = scalar_lea.vmem [#allocation0], 728
    %v801 = vld [vmem:[%s800] sm:%s255]
    %s803 = ssub.s32 4, 1
    %s804 = scalar_lea.vmem %s1, 182
    %805 = vst [vmem:[%s804] sm:%s803] %v801
    %s806 = scalar_lea.vmem [#allocation0], 736
    %v807 = vld [vmem:[%s806] sm:%s255]
    %s809 = ssub.s32 4, 1
    %s810 = scalar_lea.vmem %s1, 184
    %811 = vst [vmem:[%s810] sm:%s809] %v807
    %s812 = scalar_lea.vmem [#allocation0], 744
    %v813 = vld [vmem:[%s812] sm:%s255]
    %s815 = ssub.s32 4, 1
    %s816 = scalar_lea.vmem %s1, 186
    %817 = vst [vmem:[%s816] sm:%s815] %v813
    %s818 = scalar_lea.vmem [#allocation0], 752
    %v819 = vld [vmem:[%s818] sm:%s255]
    %s821 = ssub.s32 4, 1
    %s822 = scalar_lea.vmem %s1, 188
    %823 = vst [vmem:[%s822] sm:%s821] %v819
    %s824 = scalar_lea.vmem [#allocation0], 760
    %v825 = vld [vmem:[%s824] sm:%s255]
    %s827 = ssub.s32 4, 1
    %s828 = scalar_lea.vmem %s1, 190
    %829 = vst [vmem:[%s828] sm:%s827] %v825
    %s830 = scalar_lea.vmem [#allocation0], 768
    %v831 = vld [vmem:[%s830] sm:%s255]
    %s833 = ssub.s32 4, 1
    %s834 = scalar_lea.vmem %s1, 192
    %835 = vst [vmem:[%s834] sm:%s833] %v831
    %s836 = scalar_lea.vmem [#allocation0], 776
    %v837 = vld [vmem:[%s836] sm:%s255]
    %s839 = ssub.s32 4, 1
    %s840 = scalar_lea.vmem %s1, 194
    %841 = vst [vmem:[%s840] sm:%s839] %v837
    %s842 = scalar_lea.vmem [#allocation0], 784
    %v843 = vld [vmem:[%s842] sm:%s255]
    %s845 = ssub.s32 4, 1
    %s846 = scalar_lea.vmem %s1, 196
    %847 = vst [vmem:[%s846] sm:%s845] %v843
    %s848 = scalar_lea.vmem [#allocation0], 792
    %v849 = vld [vmem:[%s848] sm:%s255]
    %s851 = ssub.s32 4, 1
    %s852 = scalar_lea.vmem %s1, 198
    %853 = vst [vmem:[%s852] sm:%s851] %v849
    %s854 = scalar_lea.vmem [#allocation0], 800
    %v855 = vld [vmem:[%s854] sm:%s255]
    %s857 = ssub.s32 4, 1
    %s858 = scalar_lea.vmem %s1, 200
    %859 = vst [vmem:[%s858] sm:%s857] %v855
    %s860 = scalar_lea.vmem [#allocation0], 808
    %v861 = vld [vmem:[%s860] sm:%s255]
    %s863 = ssub.s32 4, 1
    %s864 = scalar_lea.vmem %s1, 202
    %865 = vst [vmem:[%s864] sm:%s863] %v861
    %s866 = scalar_lea.vmem [#allocation0], 816
    %v867 = vld [vmem:[%s866] sm:%s255]
    %s869 = ssub.s32 4, 1
    %s870 = scalar_lea.vmem %s1, 204
    %871 = vst [vmem:[%s870] sm:%s869] %v867
    %s872 = scalar_lea.vmem [#allocation0], 824
    %v873 = vld [vmem:[%s872] sm:%s255]
    %s875 = ssub.s32 4, 1
    %s876 = scalar_lea.vmem %s1, 206
    %877 = vst [vmem:[%s876] sm:%s875] %v873
    %s878 = scalar_lea.vmem [#allocation0], 832
    %v879 = vld [vmem:[%s878] sm:%s255]
    %s881 = ssub.s32 4, 1
    %s882 = scalar_lea.vmem %s1, 208
    %883 = vst [vmem:[%s882] sm:%s881] %v879
    %s884 = scalar_lea.vmem [#allocation0], 840
    %v885 = vld [vmem:[%s884] sm:%s255]
    %s887 = ssub.s32 4, 1
    %s888 = scalar_lea.vmem %s1, 210
    %889 = vst [vmem:[%s888] sm:%s887] %v885
    %s890 = scalar_lea.vmem [#allocation0], 848
    %v891 = vld [vmem:[%s890] sm:%s255]
    %s893 = ssub.s32 4, 1
    %s894 = scalar_lea.vmem %s1, 212
    %895 = vst [vmem:[%s894] sm:%s893] %v891
    %s896 = scalar_lea.vmem [#allocation0], 856
    %v897 = vld [vmem:[%s896] sm:%s255]
    %s899 = ssub.s32 4, 1
    %s900 = scalar_lea.vmem %s1, 214
    %901 = vst [vmem:[%s900] sm:%s899] %v897
    %s902 = scalar_lea.vmem [#allocation0], 864
    %v903 = vld [vmem:[%s902] sm:%s255]
    %s905 = ssub.s32 4, 1
    %s906 = scalar_lea.vmem %s1, 216
    %907 = vst [vmem:[%s906] sm:%s905] %v903
    %s908 = scalar_lea.vmem [#allocation0], 872
    %v909 = vld [vmem:[%s908] sm:%s255]
    %s911 = ssub.s32 4, 1
    %s912 = scalar_lea.vmem %s1, 218
    %913 = vst [vmem:[%s912] sm:%s911] %v909
    %s914 = scalar_lea.vmem [#allocation0], 880
    %v915 = vld [vmem:[%s914] sm:%s255]
    %s917 = ssub.s32 4, 1
    %s918 = scalar_lea.vmem %s1, 220
    %919 = vst [vmem:[%s918] sm:%s917] %v915
    %s920 = scalar_lea.vmem [#allocation0], 888
    %v921 = vld [vmem:[%s920] sm:%s255]
    %s923 = ssub.s32 4, 1
    %s924 = scalar_lea.vmem %s1, 222
    %925 = vst [vmem:[%s924] sm:%s923] %v921
    %s926 = scalar_lea.vmem [#allocation0], 896
    %v927 = vld [vmem:[%s926] sm:%s255]
    %s929 = ssub.s32 4, 1
    %s930 = scalar_lea.vmem %s1, 224
    %931 = vst [vmem:[%s930] sm:%s929] %v927
    %s932 = scalar_lea.vmem [#allocation0], 904
    %v933 = vld [vmem:[%s932] sm:%s255]
    %s935 = ssub.s32 4, 1
    %s936 = scalar_lea.vmem %s1, 226
    %937 = vst [vmem:[%s936] sm:%s935] %v933
    %s938 = scalar_lea.vmem [#allocation0], 912
    %v939 = vld [vmem:[%s938] sm:%s255]
    %s941 = ssub.s32 4, 1
    %s942 = scalar_lea.vmem %s1, 228
    %943 = vst [vmem:[%s942] sm:%s941] %v939
    %s944 = scalar_lea.vmem [#allocation0], 920
    %v945 = vld [vmem:[%s944] sm:%s255]
    %s947 = ssub.s32 4, 1
    %s948 = scalar_lea.vmem %s1, 230
    %949 = vst [vmem:[%s948] sm:%s947] %v945
    %s950 = scalar_lea.vmem [#allocation0], 928
    %v951 = vld [vmem:[%s950] sm:%s255]
    %s953 = ssub.s32 4, 1
    %s954 = scalar_lea.vmem %s1, 232
    %955 = vst [vmem:[%s954] sm:%s953] %v951
    %s956 = scalar_lea.vmem [#allocation0], 936
    %v957 = vld [vmem:[%s956] sm:%s255]
    %s959 = ssub.s32 4, 1
    %s960 = scalar_lea.vmem %s1, 234
    %961 = vst [vmem:[%s960] sm:%s959] %v957
    %s962 = scalar_lea.vmem [#allocation0], 944
    %v963 = vld [vmem:[%s962] sm:%s255]
    %s965 = ssub.s32 4, 1
    %s966 = scalar_lea.vmem %s1, 236
    %967 = vst [vmem:[%s966] sm:%s965] %v963
    %s968 = scalar_lea.vmem [#allocation0], 952
    %v969 = vld [vmem:[%s968] sm:%s255]
    %s971 = ssub.s32 4, 1
    %s972 = scalar_lea.vmem %s1, 238
    %973 = vst [vmem:[%s972] sm:%s971] %v969
    %s974 = scalar_lea.vmem [#allocation0], 960
    %v975 = vld [vmem:[%s974] sm:%s255]
    %s977 = ssub.s32 4, 1
    %s978 = scalar_lea.vmem %s1, 240
    %979 = vst [vmem:[%s978] sm:%s977] %v975
    %s980 = scalar_lea.vmem [#allocation0], 968
    %v981 = vld [vmem:[%s980] sm:%s255]
    %s983 = ssub.s32 4, 1
    %s984 = scalar_lea.vmem %s1, 242
    %985 = vst [vmem:[%s984] sm:%s983] %v981
    %s986 = scalar_lea.vmem [#allocation0], 976
    %v987 = vld [vmem:[%s986] sm:%s255]
    %s989 = ssub.s32 4, 1
    %s990 = scalar_lea.vmem %s1, 244
    %991 = vst [vmem:[%s990] sm:%s989] %v987
    %s992 = scalar_lea.vmem [#allocation0], 984
    %v993 = vld [vmem:[%s992] sm:%s255]
    %s995 = ssub.s32 4, 1
    %s996 = scalar_lea.vmem %s1, 246
    %997 = vst [vmem:[%s996] sm:%s995] %v993
    %s998 = scalar_lea.vmem [#allocation0], 992
    %v999 = vld [vmem:[%s998] sm:%s255]
    %s1001 = ssub.s32 4, 1
    %s1002 = scalar_lea.vmem %s1, 248
    %1003 = vst [vmem:[%s1002] sm:%s1001] %v999
    %s1004 = scalar_lea.vmem [#allocation0], 1000
    %v1005 = vld [vmem:[%s1004] sm:%s255]
    %s1007 = ssub.s32 4, 1
    %s1008 = scalar_lea.vmem %s1, 250
    %1009 = vst [vmem:[%s1008] sm:%s1007] %v1005
    %s1010 = scalar_lea.vmem [#allocation0], 1008
    %v1011 = vld [vmem:[%s1010] sm:%s255]
    %s1013 = ssub.s32 4, 1
    %s1014 = scalar_lea.vmem %s1, 252
    %1015 = vst [vmem:[%s1014] sm:%s1013] %v1011
    %s1016 = scalar_lea.vmem [#allocation0], 1016
    %v1017 = vld [vmem:[%s1016] sm:%s255]
    %s1019 = ssub.s32 4, 1
    %s1020 = scalar_lea.vmem %s1, 254
    %1021 = vst [vmem:[%s1020] sm:%s1019] %v1017

// kernel: net_forward.1
$region0: #{net_forward.1}
  #allocation0 [shape = 'u32[]', space=smem, size = 0x4, offset = 0x4, fixed_abs, tag = 'smem constant byte address 0x4 - core index']
  #allocation1 [shape = 'u32[72,128]{1,0:T(1,128)}', space=vmem, size = 0x9000, scoped, tag = 'internal scratch']
  #allocation2 [shape = 'f32[32,128]{1,0:T(8,128)}', space=vmem, size = 0x4000, scoped, tag = 'scratch operand']
  #allocation3 [shape = 'f32[32,128]{1,0:T(8,128)}', space=vmem, size = 0x4000, scoped, tag = 'scratch operand']
  %s0 = inlined_call_operand.vmem [shape: f32[1,32,128], index: 0, kind: input, shape index: {}]
  %s1 = inlined_call_operand.vmem [shape: f32[1,32,128], index: 1, kind: input, shape index: {}]
  %s2 = inlined_call_operand.hbm [shape: f32[6,128,256], index: 2, kind: input, shape index: {}]
  %s3 = inlined_call_operand.vmem [shape: f32[3,8,256], index: 3, kind: input, shape index: {}]
  %s4 = inlined_call_operand.vmem [shape: f32[6,16,256], index: 4, kind: input, shape index: {}]
  %s5 = inlined_call_operand.hbm [shape: f32[3,256,256], index: 5, kind: input, shape index: {}]
  %s6 = inlined_call_operand.vmem [shape: f32[3,128,128], index: 6, kind: input, shape index: {}]
  %s7 = inlined_call_operand.vmem [shape: f32[3,8,128], index: 7, kind: input, shape index: {}]
  %s8 = inlined_call_operand.vmem [shape: f32[6,16,128], index: 8, kind: input, shape index: {}]
  %s9 = inlined_call_operand.vmem [shape: f32[3,128,128], index: 9, kind: input, shape index: {}]
  %s10 = inlined_call_operand.vmem [shape: f32[3,1,32,128], index: 10, kind: output, shape index: {}]
  %s11 = sld [smem:[#allocation0]]
  $region85: #{net_forward.1} parent=0
    _
  %s13 = ssub.s32 1, %s11
  %s14 = scalar_select 0, %s13, %s11
  $region1: #{net_forward.1} parent=0
    #allocation4 [shape = 'u8[786432]{0}', space=vmem, size = 0xc0000, scoped, tag = 'input window, operand 2, single buffered']
    #allocation5 [shape = 's32[2]{0}', space=sflag, size = 0x8, scoped, tag = 'scoped memory for net_forward.1']
    #allocation6 [shape = 'u8[786432]{0}', space=vmem, size = 0xc0000, scoped, tag = 'input window, operand 5, single buffered']
    #allocation7 [shape = 's32[1]{0}', space=sflag, size = 0x4, scoped, tag = 'scoped memory for net_forward.1']
    %15 = vsyncpa [#allocation5], 0
    %16 = vsyncpa [#allocation7], 0
    loop: start=0, step=1, limit=5
    $region2: #{net_forward.1} parent=1 // loop_pre_header
      _
    $region3: #{net_forward.1} parent=1 // loop_header
      %s18 = sphi 0, %s22
      %p19 = scmp.ge.s32.totalorder %s18, 5
      %s25 = sphi 0, %s37
      %s26 = sphi 0, %s33
      %s27 = sphi 0, %s25
      %s28 = sphi 0, %s26
      %s29 = sphi 0, %s27
      %s30 = sphi 0, %s28
      %s40 = sphi 0, %s42
      %s43 = sphi 0, %s40
      %s44 = sphi 0, %s43
      %s60 = sphi 0, %s44
      %s66 = sphi 0, %s68
      %s69 = sphi 0, %s66
      %s70 = sphi 0, %s69
      %s86 = sphi 0, %s70
      %s90 = sphi 0, %s90
      %s92 = sphi 0, %s90
      %s93 = sphi 0, %s92
      %s107 = sphi 0, %s93
      %s111 = sphi 0, %s111
      %s113 = sphi 0, %s111
      %s114 = sphi 0, %s113
      %s128 = sphi 0, %s114
      %s132 = sphi 0, %s132
      %s134 = sphi 0, %s132
      %s135 = sphi 0, %s134
      %s149 = sphi 0, %s135
      %s153 = sphi 0, %s153
      %s155 = sphi 0, %s153
      %s156 = sphi 0, %s155
      %s170 = sphi 0, %s156
      %s174 = sphi 0, %s174
      %s176 = sphi 0, %s174
      %s177 = sphi 0, %s176
      %s191 = sphi 0, %s177
      %s195 = sphi 0, %s195
      %s197 = sphi 0, %s195
      %s198 = sphi 0, %s197
      %s212 = sphi 0, %s198
      %s216 = sphi 0, %s216
      %s218 = sphi 0, %s216
      %s219 = sphi 0, %s218
      %s233 = sphi 0, %s219
      %s237 = sphi 0, %s237
      %s239 = sphi 0, %s237
      %s240 = sphi 0, %s239
      %s254 = sphi 0, %s240
      %s262 = sphi 0, %s264
      %s265 = sphi 0, %s262
      %s266 = sphi 0, %s265
      %s282 = sphi 0, %s266
    $region4: #{net_forward.1} parent=1 // loop_header_branch
      %21 = sbr.rel (%p19) target = $region8
    $region5: #{net_forward.1} parent=1 // loop_body
      %s23 = ssub.s32 %s18, 1
      %s24 = ssub.s32 %s18, 2
      %s31 = sadd.s32 1, %s26
      %p32 = scmp.ge.s32.totalorder %s31, 3
      %s33 = scalar_select %p32, 0, %s31
      %s34 = sadd.s32 1, %s25
      %s35 = scalar_select %p32, %s34, %s25
      %p36 = scmp.ge.s32.totalorder %s35, 1
      %s37 = scalar_select %p36, 0, %s35
      %s38 = ssub.s32 %s25, %s37
      %p39 = scmp.eq.s32.totalorder %s38, 0
      %s41 = sadd.s32 %s40, 1
      %s42 = scalar_select %p39, %s40, %s41
      %p45 = pneg %p39
      %p46 = scmp.eq.s32.totalorder %s18, 2
      %p47 = por %p45, %p46
      %p48 = scmp.ne.s32.totalorder %s40, %s43
      %p49 = scmp.eq.s32.totalorder %s18, 0
      %p50 = por %p48, %p49
      %p51 = scmp.ne.s32.totalorder %s40, %s43
      %p52 = scmp.eq.s32.totalorder %s23, 2
      %p53 = por %p51, %p52
      %p54 = scmp.ne.s32.totalorder %s43, %s44
      %p55 = scmp.eq.s32.totalorder %s23, 0
      %p56 = por %p54, %p55
      %p57 = scmp.ne.s32.totalorder %s43, %s44
      %p58 = scmp.eq.s32.totalorder %s24, 2
      %p59 = por %p57, %p58
      %p61 = scmp.ne.s32.totalorder %s44, %s60
      %p62 = scmp.eq.s32.totalorder %s24, 0
      %p63 = por %p61, %p62
      %s64 = ssub.s32 %s25, %s37
      %p65 = scmp.eq.s32.totalorder %s64, 0
      %s67 = sadd.s32 %s66, 1
      %s68 = scalar_select %p65, %s66, %s67
      %p71 = pneg %p65
      %p72 = scmp.eq.s32.totalorder %s18, 2
      %p73 = por %p71, %p72
      %p74 = scmp.ne.s32.totalorder %s66, %s69
      %p75 = scmp.eq.s32.totalorder %s18, 0
      %p76 = por %p74, %p75
      %p77 = scmp.ne.s32.totalorder %s66, %s69
      %p78 = scmp.eq.s32.totalorder %s23, 2
      %p79 = por %p77, %p78
      %p80 = scmp.ne.s32.totalorder %s69, %s70
      %p81 = scmp.eq.s32.totalorder %s23, 0
      %p82 = por %p80, %p81
      %p83 = scmp.ne.s32.totalorder %s69, %s70
      %p84 = scmp.eq.s32.totalorder %s24, 2
      %p85 = por %p83, %p84
      %p87 = scmp.ne.s32.totalorder %s70, %s86
      %p88 = scmp.eq.s32.totalorder %s24, 0
      %p89 = por %p87, %p88
      %s91 = sadd.s32 %s90, 1
      %p94 = scmp.eq.s32.totalorder %s18, 2
      %p95 = scmp.ne.s32.totalorder %s90, %s92
      %p96 = scmp.eq.s32.totalorder %s18, 0
      %p97 = por %p95, %p96
      %p98 = scmp.ne.s32.totalorder %s90, %s92
      %p99 = scmp.eq.s32.totalorder %s23, 2
      %p100 = por %p98, %p99
      %p101 = scmp.ne.s32.totalorder %s92, %s93
      %p102 = scmp.eq.s32.totalorder %s23, 0
      %p103 = por %p101, %p102
      %p104 = scmp.ne.s32.totalorder %s92, %s93
      %p105 = scmp.eq.s32.totalorder %s24, 2
      %p106 = por %p104, %p105
      %p108 = scmp.ne.s32.totalorder %s93, %s107
      %p109 = scmp.eq.s32.totalorder %s24, 0
      %p110 = por %p108, %p109
      %s112 = sadd.s32 %s111, 1
      %p115 = scmp.eq.s32.totalorder %s18, 2
      %p116 = scmp.ne.s32.totalorder %s111, %s113
      %p117 = scmp.eq.s32.totalorder %s18, 0
      %p118 = por %p116, %p117
      %p119 = scmp.ne.s32.totalorder %s111, %s113
      %p120 = scmp.eq.s32.totalorder %s23, 2
      %p121 = por %p119, %p120
      %p122 = scmp.ne.s32.totalorder %s113, %s114
      %p123 = scmp.eq.s32.totalorder %s23, 0
      %p124 = por %p122, %p123
      %p125 = scmp.ne.s32.totalorder %s113, %s114
      %p126 = scmp.eq.s32.totalorder %s24, 2
      %p127 = por %p125, %p126
      %p129 = scmp.ne.s32.totalorder %s114, %s128
      %p130 = scmp.eq.s32.totalorder %s24, 0
      %p131 = por %p129, %p130
      %s133 = sadd.s32 %s132, 1
      %p136 = scmp.eq.s32.totalorder %s18, 2
      %p137 = scmp.ne.s32.totalorder %s132, %s134
      %p138 = scmp.eq.s32.totalorder %s18, 0
      %p139 = por %p137, %p138
      %p140 = scmp.ne.s32.totalorder %s132, %s134
      %p141 = scmp.eq.s32.totalorder %s23, 2
      %p142 = por %p140, %p141
      %p143 = scmp.ne.s32.totalorder %s134, %s135
      %p144 = scmp.eq.s32.totalorder %s23, 0
      %p145 = por %p143, %p144
      %p146 = scmp.ne.s32.totalorder %s134, %s135
      %p147 = scmp.eq.s32.totalorder %s24, 2
      %p148 = por %p146, %p147
      %p150 = scmp.ne.s32.totalorder %s135, %s149
      %p151 = scmp.eq.s32.totalorder %s24, 0
      %p152 = por %p150, %p151
      %s154 = sadd.s32 %s153, 1
      %p157 = scmp.eq.s32.totalorder %s18, 2
      %p158 = scmp.ne.s32.totalorder %s153, %s155
      %p159 = scmp.eq.s32.totalorder %s18, 0
      %p160 = por %p158, %p159
      %p161 = scmp.ne.s32.totalorder %s153, %s155
      %p162 = scmp.eq.s32.totalorder %s23, 2
      %p163 = por %p161, %p162
      %p164 = scmp.ne.s32.totalorder %s155, %s156
      %p165 = scmp.eq.s32.totalorder %s23, 0
      %p166 = por %p164, %p165
      %p167 = scmp.ne.s32.totalorder %s155, %s156
      %p168 = scmp.eq.s32.totalorder %s24, 2
      %p169 = por %p167, %p168
      %p171 = scmp.ne.s32.totalorder %s156, %s170
      %p172 = scmp.eq.s32.totalorder %s24, 0
      %p173 = por %p171, %p172
      %s175 = sadd.s32 %s174, 1
      %p178 = scmp.eq.s32.totalorder %s18, 2
      %p179 = scmp.ne.s32.totalorder %s174, %s176
      %p180 = scmp.eq.s32.totalorder %s18, 0
      %p181 = por %p179, %p180
      %p182 = scmp.ne.s32.totalorder %s174, %s176
      %p183 = scmp.eq.s32.totalorder %s23, 2
      %p184 = por %p182, %p183
      %p185 = scmp.ne.s32.totalorder %s176, %s177
      %p186 = scmp.eq.s32.totalorder %s23, 0
      %p187 = por %p185, %p186
      %p188 = scmp.ne.s32.totalorder %s176, %s177
      %p189 = scmp.eq.s32.totalorder %s24, 2
      %p190 = por %p188, %p189
      %p192 = scmp.ne.s32.totalorder %s177, %s191
      %p193 = scmp.eq.s32.totalorder %s24, 0
      %p194 = por %p192, %p193
      %s196 = sadd.s32 %s195, 1
      %p199 = scmp.eq.s32.totalorder %s18, 2
      %p200 = scmp.ne.s32.totalorder %s195, %s197
      %p201 = scmp.eq.s32.totalorder %s18, 0
      %p202 = por %p200, %p201
      %p203 = scmp.ne.s32.totalorder %s195, %s197
      %p204 = scmp.eq.s32.totalorder %s23, 2
      %p205 = por %p203, %p204
      %p206 = scmp.ne.s32.totalorder %s197, %s198
      %p207 = scmp.eq.s32.totalorder %s23, 0
      %p208 = por %p206, %p207
      %p209 = scmp.ne.s32.totalorder %s197, %s198
      %p210 = scmp.eq.s32.totalorder %s24, 2
      %p211 = por %p209, %p210
      %p213 = scmp.ne.s32.totalorder %s198, %s212
      %p214 = scmp.eq.s32.totalorder %s24, 0
      %p215 = por %p213, %p214
      %s217 = sadd.s32 %s216, 1
      %p220 = scmp.eq.s32.totalorder %s18, 2
      %p221 = scmp.ne.s32.totalorder %s216, %s218
      %p222 = scmp.eq.s32.totalorder %s18, 0
      %p223 = por %p221, %p222
      %p224 = scmp.ne.s32.totalorder %s216, %s218
      %p225 = scmp.eq.s32.totalorder %s23, 2
      %p226 = por %p224, %p225
      %p227 = scmp.ne.s32.totalorder %s218, %s219
      %p228 = scmp.eq.s32.totalorder %s23, 0
      %p229 = por %p227, %p228
      %p230 = scmp.ne.s32.totalorder %s218, %s219
      %p231 = scmp.eq.s32.totalorder %s24, 2
      %p232 = por %p230, %p231
      %p234 = scmp.ne.s32.totalorder %s219, %s233
      %p235 = scmp.eq.s32.totalorder %s24, 0
      %p236 = por %p234, %p235
      %s238 = sadd.s32 %s237, 1
      %p241 = scmp.eq.s32.totalorder %s18, 2
      %p242 = scmp.ne.s32.totalorder %s237, %s239
      %p243 = scmp.eq.s32.totalorder %s18, 0
      %p244 = por %p242, %p243
      %p245 = scmp.ne.s32.totalorder %s237, %s239
      %p246 = scmp.eq.s32.totalorder %s23, 2
      %p247 = por %p245, %p246
      %p248 = scmp.ne.s32.totalorder %s239, %s240
      %p249 = scmp.eq.s32.totalorder %s23, 0
      %p250 = por %p248, %p249
      %p251 = scmp.ne.s32.totalorder %s239, %s240
      %p252 = scmp.eq.s32.totalorder %s24, 2
      %p253 = por %p251, %p252
      %p255 = scmp.ne.s32.totalorder %s240, %s254
      %p256 = scmp.eq.s32.totalorder %s24, 0
      %p257 = por %p255, %p256
      %s258 = ssub.s32 %s26, %s33
      %s259 = ssub.s32 %s25, %s37
      %s260 = sor.u32 %s258, %s259
      %p261 = scmp.eq.s32.totalorder %s260, 0
      %s263 = sadd.s32 %s262, 1
      %s264 = scalar_select %p261, %s262, %s263
      %p267 = pneg %p261
      %p268 = scmp.eq.s32.totalorder %s18, 2
      %p269 = por %p267, %p268
      %p270 = scmp.ne.s32.totalorder %s262, %s265
      %p271 = scmp.eq.s32.totalorder %s18, 0
      %p272 = por %p270, %p271
      %p273 = scmp.ne.s32.totalorder %s262, %s265
      %p274 = scmp.eq.s32.totalorder %s23, 2
      %p275 = por %p273, %p274
      %p276 = scmp.ne.s32.totalorder %s265, %s266
      %p277 = scmp.eq.s32.totalorder %s23, 0
      %p278 = por %p276, %p277
      %p279 = scmp.ne.s32.totalorder %s265, %s266
      %p280 = scmp.eq.s32.totalorder %s24, 2
      %p281 = por %p279, %p280
      %p283 = scmp.ne.s32.totalorder %s266, %s282
      %p284 = scmp.eq.s32.totalorder %s24, 0
      %p285 = por %p283, %p284
      %p286 = scmp.le.s32.totalorder 1, %s18
      %p287 = scmp.lt.s32.totalorder %s18, 4
      %p288 = pnand %p286, %p287
      %p289 = pneg %p288
      // Predicated region
      $region9: #{net_forward.1} parent=5 // pred_check
        _
      $region10: #{net_forward.1} parent=5 // pred_check_branch
        %291 = sbr.rel (%p288) target = $region12
      $region11: #{net_forward.1} parent=5 // pred_region
        %s292 = ssub.s32 %s18, 1
        // Predicated region
        $region13: #{net_forward.1} parent=11 // pred_check
          %p293 = pneg %p56
        $region14: #{net_forward.1} parent=11 // pred_check_branch
          %295 = sbr.rel (%p293) target = $region16
        $region15: #{net_forward.1} parent=11 // pred_region
          %p296 = scmp.lt.s32.totalorder %s27, 0
          %s297 = scalar_select %p296, %s27, 0
          %s298 = smul.addr %s297, 4
          %s299 = smul.addr %s298, 8
          %s300 = scalar_lea.vmem %s0, %s299
        $region16: #{net_forward.1} parent=11 // pred_fallthru
          _
        // Predicated region
        $region17: #{net_forward.1} parent=11 // pred_check
          %p301 = pneg %p82
        $region18: #{net_forward.1} parent=11 // pred_check_branch
          %303 = sbr.rel (%p301) target = $region20
        $region19: #{net_forward.1} parent=11 // pred_region
          %p304 = scmp.lt.s32.totalorder %s27, 0
          %s305 = scalar_select %p304, %s27, 0
          %s306 = smul.addr %s305, 4
          %s307 = smul.addr %s306, 8
          %s308 = scalar_lea.vmem %s1, %s307
        $region20: #{net_forward.1} parent=11 // pred_fallthru
          _
        // Predicated region
        $region21: #{net_forward.1} parent=11 // pred_check
          %p309 = pneg %p103
        $region22: #{net_forward.1} parent=11 // pred_check_branch
          %311 = sbr.rel (%p309) target = $region24
        $region23: #{net_forward.1} parent=11 // pred_region
          %313 = vsyncadd [#allocation5], 0
          %s314 = sshll.u32 %s2, 4
          %s315 = int_to_ptr.hbm [resolvable:$true] %s314
          %s316 = sshll.u32 [#allocation4], 4
          %s317 = int_to_ptr.vmem [resolvable:$true] %s316
          %322 = dma.hbm_to_vmem [thread:$0]  %s315, 24576, %s317, [#allocation5], 256, 256, 16
        $region24: #{net_forward.1} parent=11 // pred_fallthru
          _
        // Predicated region
        $region25: #{net_forward.1} parent=11 // pred_check
          %p323 = pneg %p124
        $region26: #{net_forward.1} parent=11 // pred_check_branch
          %325 = sbr.rel (%p323) target = $region28
        $region27: #{net_forward.1} parent=11 // pred_region
          _
        $region28: #{net_forward.1} parent=11 // pred_fallthru
          _
        // Predicated region
        $region29: #{net_forward.1} parent=11 // pred_check
          %p326 = pneg %p145
        $region30: #{net_forward.1} parent=11 // pred_check_branch
          %328 = sbr.rel (%p326) target = $region32
        $region31: #{net_forward.1} parent=11 // pred_region
          _
        $region32: #{net_forward.1} parent=11 // pred_fallthru
          _
        // Predicated region
        $region33: #{net_forward.1} parent=11 // pred_check
          %p329 = pneg %p166
        $region34: #{net_forward.1} parent=11 // pred_check_branch
          %331 = sbr.rel (%p329) target = $region36
        $region35: #{net_forward.1} parent=11 // pred_region
          %333 = vsyncadd [#allocation7], 0
          %s334 = sshll.u32 %s5, 4
          %s335 = int_to_ptr.hbm [resolvable:$true] %s334
          %s336 = sshll.u32 [#allocation6], 4
          %s337 = int_to_ptr.vmem [resolvable:$true] %s336
          %342 = dma.hbm_to_vmem [thread:$0]  %s335, 24576, %s337, [#allocation7], 256, 256, 16
        $region36: #{net_forward.1} parent=11 // pred_fallthru
          _
        // Predicated region
        $region37: #{net_forward.1} parent=11 // pred_check
          %p343 = pneg %p187
        $region38: #{net_forward.1} parent=11 // pred_check_branch
          %345 = sbr.rel (%p343) target = $region40
        $region39: #{net_forward.1} parent=11 // pred_region
          _
        $region40: #{net_forward.1} parent=11 // pred_fallthru
          _
        // Predicated region
        $region41: #{net_forward.1} parent=11 // pred_check
          %p346 = pneg %p208
        $region42: #{net_forward.1} parent=11 // pred_check_branch
          %348 = sbr.rel (%p346) target = $region44
        $region43: #{net_forward.1} parent=11 // pred_region
          _
        $region44: #{net_forward.1} parent=11 // pred_fallthru
          _
        // Predicated region
        $region45: #{net_forward.1} parent=11 // pred_check
          %p349 = pneg %p229
        $region46: #{net_forward.1} parent=11 // pred_check_branch
          %351 = sbr.rel (%p349) target = $region48
        $region47: #{net_forward.1} parent=11 // pred_region
          _
        $region48: #{net_forward.1} parent=11 // pred_fallthru
          _
        // Predicated region
        $region49: #{net_forward.1} parent=11 // pred_check
          %p352 = pneg %p250
        $region50: #{net_forward.1} parent=11 // pred_check_branch
          %354 = sbr.rel (%p352) target = $region52
        $region51: #{net_forward.1} parent=11 // pred_region
          _
        $region52: #{net_forward.1} parent=11 // pred_fallthru
          _
      $region12: #{net_forward.1} parent=5 // pred_fallthru
        _
      %p355 = scmp.lt.s32.totalorder %s18, 3
      // Predicated region
      $region53: #{net_forward.1} parent=5 // pred_check
        %p356 = pneg %p355
      $region54: #{net_forward.1} parent=5 // pred_check_branch
        %358 = sbr.rel (%p356) target = $region56
      $region55: #{net_forward.1} parent=5 // pred_region
        _
      $region56: #{net_forward.1} parent=5 // pred_fallthru
        _
      %p359 = scmp.le.s32.totalorder 1, %s18
      %p360 = scmp.lt.s32.totalorder %s18, 4
      %p361 = pnand %p359, %p360
      %p362 = pneg %p361
      // Predicated region
      $region57: #{net_forward.1} parent=5 // pred_check
        _
      $region58: #{net_forward.1} parent=5 // pred_check_branch
        %364 = sbr.rel (%p361) target = $region60
      $region59: #{net_forward.1} parent=5 // pred_region
        %s365 = ssub.s32 %s18, 1
        // Predicated region
        $region61: #{net_forward.1} parent=59 // pred_check
          %p366 = pneg %p103
        $region62: #{net_forward.1} parent=59 // pred_check_branch
          %368 = sbr.rel (%p366) target = $region64
        $region63: #{net_forward.1} parent=59 // pred_region
          %370 = dma.done [#allocation5], 24576
        $region64: #{net_forward.1} parent=59 // pred_fallthru
          _
        // Predicated region
        $region65: #{net_forward.1} parent=59 // pred_check
          %p371 = pneg %p166
        $region66: #{net_forward.1} parent=59 // pred_check_branch
          %373 = sbr.rel (%p371) target = $region68
        $region67: #{net_forward.1} parent=59 // pred_region
          %375 = dma.done [#allocation7], 24576
        $region68: #{net_forward.1} parent=59 // pred_fallthru
          _
        %p376 = scmp.lt.s32.totalorder %s27, 0
        %s377 = scalar_select %p376, %s27, 0
        %s378 = smul.addr %s377, 4
        %s379 = smul.addr %s378, 8
        %s380 = scalar_lea.vmem %s0, %s379
        %p381 = pneg %p56
        %p382 = pneg %p53
        %p383 = scmp.lt.s32.totalorder %s27, 0
        %s384 = scalar_select %p383, %s27, 0
        %s385 = smul.addr %s384, 4
        %s386 = smul.addr %s385, 8
        %s387 = scalar_lea.vmem %s1, %s386
        %p388 = pneg %p82
        %p389 = pneg %p79
        %p390 = pneg %p103
        %p391 = pneg %p100
        %p392 = pneg %p124
        %p393 = pneg %p121
        %p394 = pneg %p145
        %p395 = pneg %p142
        %p396 = pneg %p166
        %p397 = pneg %p163
        %p398 = pneg %p187
        %p399 = pneg %p184
        %p400 = pneg %p208
        %p401 = pneg %p205
        %p402 = pneg %p229
        %p403 = pneg %p226
        %p404 = pneg %p250
        %p405 = pneg %p247
        %p406 = pneg %p278
        %p407 = pneg %p275
        %p408 = scmp.lt.s32.totalorder %s28, 2
        %s409 = scalar_select %p408, %s28, 2
        %p410 = scmp.lt.s32.totalorder %s27, 0
        %s411 = scalar_select %p410, %s27, 0
        %s412 = smul.addr %s411, 4
        %s413 = smul.addr %s409, 4
        %s414 = sadd.s32 %s412, %s413
        %s415 = smul.addr %s414, 8
        %s416 = scalar_lea.vmem %s10, %s415
        %p417 = scmp.lt.s32.totalorder %s27, 0
        %s418 = scalar_select %p417, %s27, 0
        %s419 = smul.addr %s418, 4
        %s420 = smul.addr %s419, 8
        %s421 = scalar_lea.vmem %s0, %s420
        %p422 = scmp.lt.s32.totalorder %s27, 0
        %s423 = scalar_select %p422, %s27, 0
        %s424 = smul.addr %s423, 4
        %s425 = smul.addr %s424, 8
        %s426 = scalar_lea.vmem %s1, %s425
        %p427 = scmp.lt.s32.totalorder %s28, 2
        %s428 = scalar_select %p427, %s28, 2
        %p429 = scmp.lt.s32.totalorder %s27, 0
        %s430 = scalar_select %p429, %s27, 0
        %s431 = smul.addr %s430, 4
        %s432 = smul.addr %s428, 4
        %s433 = sadd.s32 %s431, %s432
        %s434 = smul.addr %s433, 8
        %s435 = scalar_lea.vmem %s10, %s434
        %v436 = vld [vmem:[%s421] sm:$0xff]
        %v437 = vld [vmem:[%s421 + $0x8] sm:$0xff]
        %v438 = vld [vmem:[%s421 + $0x10] sm:$0xff]
        %v439 = vld [vmem:[%s421 + $0x18] sm:$0xff]
        %p440 = scmp.eq.s32.totalorder %s28, 0
        // Predicated region
        $region69: #{net_forward.1} parent=59 // pred_check
          %p441 = pneg %p440
        $region70: #{net_forward.1} parent=59 // pred_check_branch
          %443 = sbr.rel (%p441) target = $region72
        $region71: #{net_forward.1} parent=59 // pred_region
          %444 = vst [vmem:[#allocation2] sm:$0xff] %v436
          %445 = vst [vmem:[#allocation2 + $0x8] sm:$0xff] %v437
          %446 = vst [vmem:[#allocation2 + $0x10] sm:$0xff] %v438
          %447 = vst [vmem:[#allocation2 + $0x18] sm:$0xff] %v439
          %v448 = vld [vmem:[%s426] sm:$0xff]
          %v449 = vld [vmem:[%s426 + $0x8] sm:$0xff]
          %v450 = vld [vmem:[%s426 + $0x10] sm:$0xff]
          %v451 = vld [vmem:[%s426 + $0x18] sm:$0xff]
          %452 = vst [vmem:[#allocation3] sm:$0xff] %v448
          %453 = vst [vmem:[#allocation3 + $0x8] sm:$0xff] %v449
          %454 = vst [vmem:[#allocation3 + $0x10] sm:$0xff] %v450
          %455 = vst [vmem:[#allocation3 + $0x18] sm:$0xff] %v451
        $region72: #{net_forward.1} parent=59 // pred_fallthru
          _
        %v456 = vld [vmem:[#allocation2] sm:$0xff]
        %v457 = vld [vmem:[#allocation2 + $0x8] sm:$0xff]
        %v458 = vld [vmem:[#allocation2 + $0x10] sm:$0xff]
        %v459 = vld [vmem:[#allocation2 + $0x18] sm:$0xff]
        %v460 = vld [vmem:[#allocation3] sm:$0xff]
        %v461 = vld [vmem:[#allocation3 + $0x8] sm:$0xff]
        %v462 = vld [vmem:[#allocation3 + $0x10] sm:$0xff]
        %v463 = vld [vmem:[#allocation3 + $0x18] sm:$0xff]
        %v464 = vlaneseq
        %v465 = vshrl.u32 %v464, 7
        %v466 = vadd.s32 %v465, 8
        %v467 = vadd.s32 %v465, 16
        %v468 = vadd.s32 %v465, 24
        %vm469 = vcmp.lt.s32.totalorder %v465, 0
        %v470 = vsub.s32 0, %v465
        %v471 = vsel %vm469, %v470, %v465
        %v472 = vshrl.u32 %v471, 4
        %v473 = vand.u32 %v471, 15
        %v474 = vsub.s32 0, %v473
        %v475 = vsel %vm469, %v474, %v473
        %vm476 = vcmp.lt.s32.totalorder %v466, 0
        %v477 = vsub.s32 0, %v466
        %v478 = vsel %vm476, %v477, %v466
        %v479 = vshrl.u32 %v478, 4
        %v480 = vand.u32 %v478, 15
        %v481 = vsub.s32 0, %v480
        %v482 = vsel %vm476, %v481, %v480
        %vm483 = vcmp.lt.s32.totalorder %v467, 0
        %v484 = vsub.s32 0, %v467
        %v485 = vsel %vm483, %v484, %v467
        %v486 = vshrl.u32 %v485, 4
        %v487 = vand.u32 %v485, 15
        %v488 = vsub.s32 0, %v487
        %v489 = vsel %vm483, %v488, %v487
        %vm490 = vcmp.lt.s32.totalorder %v468, 0
        %v491 = vsub.s32 0, %v468
        %v492 = vsel %vm490, %v491, %v468
        %v493 = vshrl.u32 %v492, 4
        %v494 = vand.u32 %v492, 15
        %v495 = vsub.s32 0, %v494
        %v496 = vsel %vm490, %v495, %v494
        %vm497 = vcmp.ne.s32.totalorder %v475, 0
        %vm498 = vcmp.ne.s32.totalorder %v482, 0
        %vm499 = vcmp.ne.s32.totalorder %v489, 0
        %vm500 = vcmp.ne.s32.totalorder %v496, 0
        %vm501 = vcmp.lt.s32.totalorder %v475, 0
        %vm502 = vcmp.lt.s32.totalorder %v482, 0
        %vm503 = vcmp.lt.s32.totalorder %v489, 0
        %vm504 = vcmp.lt.s32.totalorder %v496, 0
        %vm505 = vmand %vm501, %vm497
        %vm506 = vmand %vm502, %vm498
        %vm507 = vmand %vm503, %vm499
        %vm508 = vmand %vm504, %vm500
        %v509 = vadd.s32 %v475, 16
        %v510 = vadd.s32 %v482, 16
        %v511 = vadd.s32 %v489, 16
        %v512 = vadd.s32 %v496, 16
        %v513 = vsel %vm505, %v509, %v475
        %v514 = vsel %vm506, %v510, %v482
        %v515 = vsel %vm507, %v511, %v489
        %v516 = vsel %vm508, %v512, %v496
        %v517 = vlaneseq
        %v518 = vand.u32 %v517, 127
        %vm519 = vcmp.lt.s32.totalorder %v518, 0
        %v520 = vsub.s32 0, %v518
        %v521 = vsel %vm519, %v520, %v518
        %v522 = vshrl.u32 %v521, 7
        %v523 = vand.u32 %v521, 127
        %v524 = vsub.s32 0, %v523
        %v525 = vsel %vm519, %v524, %v523
        %vm526 = vcmp.ne.s32.totalorder %v525, 0
        %vm527 = vcmp.lt.s32.totalorder %v525, 0
        %vm528 = vmand %vm527, %vm526
        %v529 = vadd.s32 %v525, 128
        %v530 = vsel %vm528, %v529, %v525
        %vm531 = vcmp.lt.s32.totalorder %v513, 15
        %vm532 = vcmp.lt.s32.totalorder %v514, 15
        %vm533 = vcmp.lt.s32.totalorder %v515, 15
        %vm534 = vcmp.lt.s32.totalorder %v516, 15
        %vm535 = vcmp.ge.s32.totalorder %v513, 1
        %vm536 = vcmp.ge.s32.totalorder %v514, 1
        %vm537 = vcmp.ge.s32.totalorder %v515, 1
        %vm538 = vcmp.ge.s32.totalorder %v516, 1
        %vm539 = vcmp.lt.s32.totalorder %v530, 120
        %vm540 = vcmp.ge.s32.totalorder %v530, 8
        %v541 = vadd.s32 %v518, 128
        %vm542 = vcmp.lt.s32.totalorder %v541, 0
        %v543 = vsub.s32 0, %v541
        %v544 = vsel %vm542, %v543, %v541
        %v545 = vshrl.u32 %v544, 7
        %v546 = vand.u32 %v544, 127
        %v547 = vsub.s32 0, %v546
        %v548 = vsel %vm542, %v547, %v546
        %vm549 = vcmp.ne.s32.totalorder %v548, 0
        %vm550 = vcmp.lt.s32.totalorder %v548, 0
        %vm551 = vmand %vm550, %vm549
        %v552 = vadd.s32 %v548, 128
        %v553 = vsel %vm551, %v552, %v548
        %vm554 = vcmp.lt.s32.totalorder %v553, 120
        %vm555 = vcmp.ge.s32.totalorder %v553, 8
        %s556 = smul.u32 %s28, 2
        %s557 = smul.addr %s556, 8
        %s558 = scalar_lea.vmem %s3, %s557
        %v559 = vld [vmem:[%s558] sm:$0xff]
        %v560 = vld [vmem:[%s558 + $0x8] sm:$0xff]
        %s561 = smul.u32 %s556, 32
        %s562 = smul.addr %s561, 8
        %s563 = scalar_lea.vmem [#allocation4], %s562
        %v564 = vld [vmem:[%s563] sm:$0xff]
        %v565 = vld [vmem:[%s563 + $0x8] sm:$0xff]
        %v566 = vld [vmem:[%s563 + $0x10] sm:$0xff]
        %v567 = vld [vmem:[%s563 + $0x18] sm:$0xff]
        %v568 = vld [vmem:[%s563 + $0x20] sm:$0xff]
        %v569 = vld [vmem:[%s563 + $0x28] sm:$0xff]
        %v570 = vld [vmem:[%s563 + $0x30] sm:$0xff]
        %v571 = vld [vmem:[%s563 + $0x38] sm:$0xff]
        %v572 = vld [vmem:[%s563 + $0x40] sm:$0xff]
        %v573 = vld [vmem:[%s563 + $0x48] sm:$0xff]
        %v574 = vld [vmem:[%s563 + $0x50] sm:$0xff]
        %v575 = vld [vmem:[%s563 + $0x58] sm:$0xff]
        %v576 = vld [vmem:[%s563 + $0x60] sm:$0xff]
        %v577 = vld [vmem:[%s563 + $0x68] sm:$0xff]
        %v578 = vld [vmem:[%s563 + $0x70] sm:$0xff]
        %v579 = vld [vmem:[%s563 + $0x78] sm:$0xff]
        %v580 = vld [vmem:[%s563 + $0x80] sm:$0xff]
        %v581 = vld [vmem:[%s563 + $0x88] sm:$0xff]
        %v582 = vld [vmem:[%s563 + $0x90] sm:$0xff]
        %v583 = vld [vmem:[%s563 + $0x98] sm:$0xff]
        %v584 = vld [vmem:[%s563 + $0xa0] sm:$0xff]
        %v585 = vld [vmem:[%s563 + $0xa8] sm:$0xff]
        %v586 = vld [vmem:[%s563 + $0xb0] sm:$0xff]
        %v587 = vld [vmem:[%s563 + $0xb8] sm:$0xff]
        %v588 = vld [vmem:[%s563 + $0xc0] sm:$0xff]
        %v589 = vld [vmem:[%s563 + $0xc8] sm:$0xff]
        %v590 = vld [vmem:[%s563 + $0xd0] sm:$0xff]
        %v591 = vld [vmem:[%s563 + $0xd8] sm:$0xff]
        %v592 = vld [vmem:[%s563 + $0xe0] sm:$0xff]
        %v593 = vld [vmem:[%s563 + $0xe8] sm:$0xff]
        %v594 = vld [vmem:[%s563 + $0xf0] sm:$0xff]
        %v595 = vld [vmem:[%s563 + $0xf8] sm:$0xff]
        %s596 = sadd.s32 %s556, 1
        %s597 = smul.u32 %s596, 32
        %s598 = smul.addr %s597, 8
        %s599 = scalar_lea.vmem [#allocation4], %s598
        %v600 = vld [vmem:[%s599] sm:$0xff]
        %v601 = vld [vmem:[%s599 + $0x8] sm:$0xff]
        %v602 = vld [vmem:[%s599 + $0x10] sm:$0xff]
        %v603 = vld [vmem:[%s599 + $0x18] sm:$0xff]
        %v604 = vld [vmem:[%s599 + $0x20] sm:$0xff]
        %v605 = vld [vmem:[%s599 + $0x28] sm:$0xff]
        %v606 = vld [vmem:[%s599 + $0x30] sm:$0xff]
        %v607 = vld [vmem:[%s599 + $0x38] sm:$0xff]
        %v608 = vld [vmem:[%s599 + $0x40] sm:$0xff]
        %v609 = vld [vmem:[%s599 + $0x48] sm:$0xff]
        %v610 = vld [vmem:[%s599 + $0x50] sm:$0xff]
        %v611 = vld [vmem:[%s599 + $0x58] sm:$0xff]
        %v612 = vld [vmem:[%s599 + $0x60] sm:$0xff]
        %v613 = vld [vmem:[%s599 + $0x68] sm:$0xff]
        %v614 = vld [vmem:[%s599 + $0x70] sm:$0xff]
        %v615 = vld [vmem:[%s599 + $0x78] sm:$0xff]
        %v616 = vld [vmem:[%s599 + $0x80] sm:$0xff]
        %v617 = vld [vmem:[%s599 + $0x88] sm:$0xff]
        %v618 = vld [vmem:[%s599 + $0x90] sm:$0xff]
        %v619 = vld [vmem:[%s599 + $0x98] sm:$0xff]
        %v620 = vld [vmem:[%s599 + $0xa0] sm:$0xff]
        %v621 = vld [vmem:[%s599 + $0xa8] sm:$0xff]
        %v622 = vld [vmem:[%s599 + $0xb0] sm:$0xff]
        %v623 = vld [vmem:[%s599 + $0xb8] sm:$0xff]
        %v624 = vld [vmem:[%s599 + $0xc0] sm:$0xff]
        %v625 = vld [vmem:[%s599 + $0xc8] sm:$0xff]
        %v626 = vld [vmem:[%s599 + $0xd0] sm:$0xff]
        %v627 = vld [vmem:[%s599 + $0xd8] sm:$0xff]
        %v628 = vld [vmem:[%s599 + $0xe0] sm:$0xff]
        %v629 = vld [vmem:[%s599 + $0xe8] sm:$0xff]
        %v630 = vld [vmem:[%s599 + $0xf0] sm:$0xff]
        %v631 = vld [vmem:[%s599 + $0xf8] sm:$0xff]
        %632 = vmatpush.msra.mxu0 %v630
        %633 = vmatpush.msra.mxu0 %v628
        %634 = vmatpush.msra.mxu0 %v626
        %635 = vmatpush.msra.mxu0 %v624
        %636 = vmatpush.msra.mxu0 %v622
        %637 = vmatpush.msra.mxu0 %v620
        %638 = vmatpush.msra.mxu0 %v618
        %639 = vmatpush.msra.mxu0 %v616
        %640 = vmatpush.msra.mxu0 %v614
        %641 = vmatpush.msra.mxu0 %v612
        %642 = vmatpush.msra.mxu0 %v610
        %643 = vmatpush.msra.mxu0 %v608
        %644 = vmatpush.msra.mxu0 %v606
        %645 = vmatpush.msra.mxu0 %v604
        %646 = vmatpush.msra.mxu0 %v602
        %647 = vmatpush.msra.mxu0 %v600
        %648 = vmatmul.f32.gmra.mxu0 %v460
        %v649 = vpop.f32.mrf.mxu0
        %v650 = vadd.f32 0.0, %v649
        %651 = vmatmul.f32.gmra.mxu0 %v461
        %v652 = vpop.f32.mrf.mxu0
        %v653 = vadd.f32 0.0, %v652
        %654 = vmatmul.f32.gmra.mxu0 %v462
        %v655 = vpop.f32.mrf.mxu0
        %v656 = vadd.f32 0.0, %v655
        %657 = vmatmul.f32.gmra.mxu0 %v463
        %v658 = vpop.f32.mrf.mxu0
        %v659 = vadd.f32 0.0, %v658
        %660 = vdwg.mxu0
        %661 = vmatpush.msra.mxu0 %v631
        %662 = vmatpush.msra.mxu0 %v629
        %663 = vmatpush.msra.mxu0 %v627
        %664 = vmatpush.msra.mxu0 %v625
        %665 = vmatpush.msra.mxu0 %v623
        %666 = vmatpush.msra.mxu0 %v621
        %667 = vmatpush.msra.mxu0 %v619
        %668 = vmatpush.msra.mxu0 %v617
        %669 = vmatpush.msra.mxu0 %v615
        %670 = vmatpush.msra.mxu0 %v613
        %671 = vmatpush.msra.mxu0 %v611
        %672 = vmatpush.msra.mxu0 %v609
        %673 = vmatpush.msra.mxu0 %v607
        %674 = vmatpush.msra.mxu0 %v605
        %675 = vmatpush.msra.mxu0 %v603
        %676 = vmatpush.msra.mxu0 %v601
        %677 = vmatmul.f32.gmra.mxu0 %v460
        %v678 = vpop.f32.mrf.mxu0
        %v679 = vadd.f32 0.0, %v678
        %680 = vmatmul.f32.gmra.mxu0 %v461
        %v681 = vpop.f32.mrf.mxu0
        %v682 = vadd.f32 0.0, %v681
        %683 = vmatmul.f32.gmra.mxu0 %v462
        %v684 = vpop.f32.mrf.mxu0
        %v685 = vadd.f32 0.0, %v684
        %686 = vmatmul.f32.gmra.mxu0 %v463
        %v687 = vpop.f32.mrf.mxu0
        %v688 = vadd.f32 0.0, %v687
        %689 = vdwg.mxu0
        %690 = vmatpush.msra.mxu0 %v594
        %691 = vmatpush.msra.mxu0 %v592
        %692 = vmatpush.msra.mxu0 %v590
        %693 = vmatpush.msra.mxu0 %v588
        %694 = vmatpush.msra.mxu0 %v586
        %695 = vmatpush.msra.mxu0 %v584
        %696 = vmatpush.msra.mxu0 %v582
        %697 = vmatpush.msra.mxu0 %v580
        %698 = vmatpush.msra.mxu0 %v578
        %699 = vmatpush.msra.mxu0 %v576
        %700 = vmatpush.msra.mxu0 %v574
        %701 = vmatpush.msra.mxu0 %v572
        %702 = vmatpush.msra.mxu0 %v570
        %703 = vmatpush.msra.mxu0 %v568
        %704 = vmatpush.msra.mxu0 %v566
        %705 = vmatpush.msra.mxu0 %v564
        %706 = vmatmul.f32.gmra.mxu0 %v456
        %v707 = vpop.f32.mrf.mxu0
        %v708 = vadd.f32 %v650, %v707
        %709 = vmatmul.f32.gmra.mxu0 %v457
        %v710 = vpop.f32.mrf.mxu0
        %v711 = vadd.f32 %v653, %v710
        %712 = vmatmul.f32.gmra.mxu0 %v458
        %v713 = vpop.f32.mrf.mxu0
        %v714 = vadd.f32 %v656, %v713
        %715 = vmatmul.f32.gmra.mxu0 %v459
        %v716 = vpop.f32.mrf.mxu0
        %v717 = vadd.f32 %v659, %v716
        %718 = vdwg.mxu0
        %719 = vmatpush.msra.mxu0 %v595
        %720 = vmatpush.msra.mxu0 %v593
        %721 = vmatpush.msra.mxu0 %v591
        %722 = vmatpush.msra.mxu0 %v589
        %723 = vmatpush.msra.mxu0 %v587
        %724 = vmatpush.msra.mxu0 %v585
        %725 = vmatpush.msra.mxu0 %v583
        %726 = vmatpush.msra.mxu0 %v581
        %727 = vmatpush.msra.mxu0 %v579
        %728 = vmatpush.msra.mxu0 %v577
        %729 = vmatpush.msra.mxu0 %v575
        %730 = vmatpush.msra.mxu0 %v573
        %731 = vmatpush.msra.mxu0 %v571
        %732 = vmatpush.msra.mxu0 %v569
        %733 = vmatpush.msra.mxu0 %v567
        %734 = vmatpush.msra.mxu0 %v565
        %735 = vmatmul.f32.gmra.mxu0 %v456
        %v736 = vpop.f32.mrf.mxu0
        %v737 = vadd.f32 %v679, %v736
        %738 = vmatmul.f32.gmra.mxu0 %v457
        %v739 = vpop.f32.mrf.mxu0
        %v740 = vadd.f32 %v682, %v739
        %741 = vmatmul.f32.gmra.mxu0 %v458
        %v742 = vpop.f32.mrf.mxu0
        %v743 = vadd.f32 %v685, %v742
        %744 = vmatmul.f32.gmra.mxu0 %v459
        %v745 = vpop.f32.mrf.mxu0
        %v746 = vadd.f32 %v688, %v745
        %747 = vdwg.mxu0
        %v748 = vperm.slane %v559, 0
        %v749 = vperm.slane %v560, 0
        %v750 = vadd.f32 %v708, %v748
        %v751 = vadd.f32 %v737, %v749
        %v752 = vadd.f32 %v711, %v748
        %v753 = vadd.f32 %v740, %v749
        %v754 = vadd.f32 %v714, %v748
        %v755 = vadd.f32 %v743, %v749
        %v756 = vadd.f32 %v717, %v748
        %v757 = vadd.f32 %v746, %v749
        %s758 = smul.u32 %s556, 4
        %s759 = smul.addr %s758, 8
        %s760 = scalar_lea.vmem %s4, %s759
        %v761 = vld [vmem:[%s760] sm:$0xff]
        %v762 = vld [vmem:[%s760 + $0x8] sm:$0xff]
        %v763 = vld [vmem:[%s760 + $0x10] sm:$0xff]
        %v764 = vld [vmem:[%s760 + $0x18] sm:$0xff]
        %v765 = vrot.slane %v750, 7
        %v766 = vrot.slane %v751, 7
        %v767 = vrot.slane %v752, 7
        %v768 = vrot.slane %v753, 7
        %v769 = vrot.slane %v754, 7
        %v770 = vrot.slane %v755, 7
        %v771 = vrot.slane %v756, 7
        %v772 = vrot.slane %v757, 7
        %vm773 = vcmp.lt.s32.totalorder %v465, 1
        %v774 = vsel %vm773, %v769, %v771
        %v775 = vsel %vm773, %v770, %v772
        %v776 = vsel %vm773, %v767, %v769
        %v777 = vsel %vm773, %v768, %v770
        %v778 = vsel %vm773, %v765, %v767
        %v779 = vsel %vm773, %v766, %v768
        %v780 = vsel %vm773, %v771, %v765
        %v781 = vsel %vm773, %v772, %v766
        %v782 = vsel %vm535, %v780, 0.0
        %v783 = vsel %vm535, %v781, 0.0
        %v784 = vsel %vm536, %v778, 0.0
        %v785 = vsel %vm536, %v779, 0.0
        %v786 = vsel %vm537, %v776, 0.0
        %v787 = vsel %vm537, %v777, 0.0
        %v788 = vsel %vm538, %v774, 0.0
        %v789 = vsel %vm538, %v775, 0.0
        %790 = vrot.lane.b32.xlu0 %v782, 8
        %v791 = vpop.permute.xlu0 %790
        %792 = vrot.lane.b32.xlu0 %v784, 8
        %v793 = vpop.permute.xlu0 %792
        %794 = vrot.lane.b32.xlu0 %v786, 8
        %v795 = vpop.permute.xlu0 %794
        %796 = vrot.lane.b32.xlu0 %v788, 8
        %v797 = vpop.permute.xlu0 %796
        %798 = vrot.lane.b32.xlu0 %v783, 8
        %v799 = vpop.permute.xlu0 %798
        %800 = vrot.lane.b32.xlu0 %v785, 8
        %v801 = vpop.permute.xlu0 %800
        %802 = vrot.lane.b32.xlu0 %v787, 8
        %v803 = vpop.permute.xlu0 %802
        %804 = vrot.lane.b32.xlu0 %v789, 8
        %v805 = vpop.permute.xlu0 %804
        %vm806 = vcmp.lt.s32.totalorder %v518, 8
        %v807 = vsel %vm806, %v791, %v799
        %v808 = vsel %vm806, %v793, %v801
        %v809 = vsel %vm806, %v795, %v803
        %v810 = vsel %vm806, %v797, %v805
        %v811 = vsel %vm806, %v799, %v791
        %v812 = vsel %vm806, %v801, %v793
        %v813 = vsel %vm806, %v803, %v795
        %v814 = vsel %vm806, %v805, %v797
        %v815 = vsel %vm540, %v811, 0.0
        %v816 = vsel %vm555, %v807, 0.0
        %v817 = vsel %vm540, %v812, 0.0
        %v818 = vsel %vm555, %v808, 0.0
        %v819 = vsel %vm540, %v813, 0.0
        %v820 = vsel %vm555, %v809, 0.0
        %v821 = vsel %vm540, %v814, 0.0
        %v822 = vsel %vm555, %v810, 0.0
        %v823 = vperm.slane %v761, 0
        %v824 = vperm.slane %v762, 0
        %v825 = vmul.f32 %v815, %v823
        %v826 = vmul.f32 %v816, %v824
        %v827 = vmul.f32 %v817, %v823
        %v828 = vmul.f32 %v818, %v824
        %v829 = vmul.f32 %v819, %v823
        %v830 = vmul.f32 %v820, %v824
        %v831 = vmul.f32 %v821, %v823
        %v832 = vmul.f32 %v822, %v824
        %v833 = vadd.f32 %v825, 0.0
        %v834 = vadd.f32 %v826, 0.0
        %v835 = vadd.f32 %v827, 0.0
        %v836 = vadd.f32 %v828, 0.0
        %v837 = vadd.f32 %v829, 0.0
        %v838 = vadd.f32 %v830, 0.0
        %v839 = vadd.f32 %v831, 0.0
        %v840 = vadd.f32 %v832, 0.0
        %v841 = vperm.slane %v761, 1
        %v842 = vperm.slane %v762, 1
        %v843 = vmul.f32 %v782, %v841
        %v844 = vmul.f32 %v783, %v842
        %v845 = vmul.f32 %v784, %v841
        %v846 = vmul.f32 %v785, %v842
        %v847 = vmul.f32 %v786, %v841
        %v848 = vmul.f32 %v787, %v842
        %v849 = vmul.f32 %v788, %v841
        %v850 = vmul.f32 %v789, %v842
        %v851 = vadd.f32 %v833, %v843
        %v852 = vadd.f32 %v834, %v844
        %v853 = vadd.f32 %v835, %v845
        %v854 = vadd.f32 %v836, %v846
        %v855 = vadd.f32 %v837, %v847
        %v856 = vadd.f32 %v838, %v848
        %v857 = vadd.f32 %v839, %v849
        %v858 = vadd.f32 %v840, %v850
        %859 = vrot.lane.b32.xlu0 %v782, 120
        %v860 = vpop.permute.xlu0 %859
        %861 = vrot.lane.b32.xlu0 %v784, 120
        %v862 = vpop.permute.xlu0 %861
        %863 = vrot.lane.b32.xlu0 %v786, 120
        %v864 = vpop.permute.xlu0 %863
        %865 = vrot.lane.b32.xlu0 %v788, 120
        %v866 = vpop.permute.xlu0 %865
        %867 = vrot.lane.b32.xlu0 %v783, 120
        %v868 = vpop.permute.xlu0 %867
        %869 = vrot.lane.b32.xlu0 %v785, 120
        %v870 = vpop.permute.xlu0 %869
        %871 = vrot.lane.b32.xlu0 %v787, 120
        %v872 = vpop.permute.xlu0 %871
        %873 = vrot.lane.b32.xlu0 %v789, 120
        %v874 = vpop.permute.xlu0 %873
        %vm875 = vcmp.lt.s32.totalorder %v518, 120
        %v876 = vsel %vm875, %v860, %v868
        %v877 = vsel %vm875, %v862, %v870
        %v878 = vsel %vm875, %v864, %v872
        %v879 = vsel %vm875, %v866, %v874
        %v880 = vsel %vm875, %v868, %v860
        %v881 = vsel %vm875, %v870, %v862
        %v882 = vsel %vm875, %v872, %v864
        %v883 = vsel %vm875, %v874, %v866
        %v884 = vsel %vm539, %v876, 0.0
        %v885 = vsel %vm554, %v880, 0.0
        %v886 = vsel %vm539, %v877, 0.0
        %v887 = vsel %vm554, %v881, 0.0
        %v888 = vsel %vm539, %v878, 0.0
        %v889 = vsel %vm554, %v882, 0.0
        %v890 = vsel %vm539, %v879, 0.0
        %v891 = vsel %vm554, %v883, 0.0
        %v892 = vperm.slane %v761, 2
        %v893 = vperm.slane %v762, 2
        %v894 = vmul.f32 %v884, %v892
        %v895 = vmul.f32 %v885, %v893
        %v896 = vmul.f32 %v886, %v892
        %v897 = vmul.f32 %v887, %v893
        %v898 = vmul.f32 %v888, %v892
        %v899 = vmul.f32 %v889, %v893
        %v900 = vmul.f32 %v890, %v892
        %v901 = vmul.f32 %v891, %v893
        %v902 = vadd.f32 %v851, %v894
        %v903 = vadd.f32 %v852, %v895
        %v904 = vadd.f32 %v853, %v896
        %v905 = vadd.f32 %v854, %v897
        %v906 = vadd.f32 %v855, %v898
        %v907 = vadd.f32 %v856, %v899
        %v908 = vadd.f32 %v857, %v900
        %v909 = vadd.f32 %v858, %v901
        %910 = vrot.lane.b32.xlu0 %v750, 8
        %v911 = vpop.permute.xlu0 %910
        %912 = vrot.lane.b32.xlu0 %v752, 8
        %v913 = vpop.permute.xlu0 %912
        %914 = vrot.lane.b32.xlu0 %v754, 8
        %v915 = vpop.permute.xlu0 %914
        %916 = vrot.lane.b32.xlu0 %v756, 8
        %v917 = vpop.permute.xlu0 %916
        %918 = vrot.lane.b32.xlu0 %v751, 8
        %v919 = vpop.permute.xlu0 %918
        %920 = vrot.lane.b32.xlu0 %v753, 8
        %v921 = vpop.permute.xlu0 %920
        %922 = vrot.lane.b32.xlu0 %v755, 8
        %v923 = vpop.permute.xlu0 %922
        %924 = vrot.lane.b32.xlu0 %v757, 8
        %v925 = vpop.permute.xlu0 %924
        %v926 = vsel %vm806, %v911, %v919
        %v927 = vsel %vm806, %v913, %v921
        %v928 = vsel %vm806, %v915, %v923
        %v929 = vsel %vm806, %v917, %v925
        %v930 = vsel %vm806, %v919, %v911
        %v931 = vsel %vm806, %v921, %v913
        %v932 = vsel %vm806, %v923, %v915
        %v933 = vsel %vm806, %v925, %v917
        %v934 = vsel %vm540, %v930, 0.0
        %v935 = vsel %vm555, %v926, 0.0
        %v936 = vsel %vm540, %v931, 0.0
        %v937 = vsel %vm555, %v927, 0.0
        %v938 = vsel %vm540, %v932, 0.0
        %v939 = vsel %vm555, %v928, 0.0
        %v940 = vsel %vm540, %v933, 0.0
        %v941 = vsel %vm555, %v929, 0.0
        %v942 = vperm.slane %v761, 3
        %v943 = vperm.slane %v762, 3
        %v944 = vmul.f32 %v934, %v942
        %v945 = vmul.f32 %v935, %v943
        %v946 = vmul.f32 %v936, %v942
        %v947 = vmul.f32 %v937, %v943
        %v948 = vmul.f32 %v938, %v942
        %v949 = vmul.f32 %v939, %v943
        %v950 = vmul.f32 %v940, %v942
        %v951 = vmul.f32 %v941, %v943
        %v952 = vadd.f32 %v902, %v944
        %v953 = vadd.f32 %v903, %v945
        %v954 = vadd.f32 %v904, %v946
        %v955 = vadd.f32 %v905, %v947
        %v956 = vadd.f32 %v906, %v948
        %v957 = vadd.f32 %v907, %v949
        %v958 = vadd.f32 %v908, %v950
        %v959 = vadd.f32 %v909, %v951
        %v960 = vperm.slane %v761, 4
        %v961 = vperm.slane %v762, 4
        %v962 = vmul.f32 %v750, %v960
        %v963 = vmul.f32 %v751, %v961
        %v964 = vmul.f32 %v752, %v960
        %v965 = vmul.f32 %v753, %v961
        %v966 = vmul.f32 %v754, %v960
        %v967 = vmul.f32 %v755, %v961
        %v968 = vmul.f32 %v756, %v960
        %v969 = vmul.f32 %v757, %v961
        %v970 = vadd.f32 %v952, %v962
        %v971 = vadd.f32 %v953, %v963
        %v972 = vadd.f32 %v954, %v964
        %v973 = vadd.f32 %v955, %v965
        %v974 = vadd.f32 %v956, %v966
        %v975 = vadd.f32 %v957, %v967
        %v976 = vadd.f32 %v958, %v968
        %v977 = vadd.f32 %v959, %v969
        %978 = vrot.lane.b32.xlu0 %v750, 120
        %v979 = vpop.permute.xlu0 %978
        %980 = vrot.lane.b32.xlu0 %v752, 120
        %v981 = vpop.permute.xlu0 %980
        %982 = vrot.lane.b32.xlu0 %v754, 120
        %v983 = vpop.permute.xlu0 %982
        %984 = vrot.lane.b32.xlu0 %v756, 120
        %v985 = vpop.permute.xlu0 %984
        %986 = vrot.lane.b32.xlu0 %v751, 120
        %v987 = vpop.permute.xlu0 %986
        %988 = vrot.lane.b32.xlu0 %v753, 120
        %v989 = vpop.permute.xlu0 %988
        %990 = vrot.lane.b32.xlu0 %v755, 120
        %v991 = vpop.permute.xlu0 %990
        %992 = vrot.lane.b32.xlu0 %v757, 120
        %v993 = vpop.permute.xlu0 %992
        %v994 = vsel %vm875, %v979, %v987
        %v995 = vsel %vm875, %v981, %v989
        %v996 = vsel %vm875, %v983, %v991
        %v997 = vsel %vm875, %v985, %v993
        %v998 = vsel %vm875, %v987, %v979
        %v999 = vsel %vm875, %v989, %v981
        %v1000 = vsel %vm875, %v991, %v983
        %v1001 = vsel %vm875, %v993, %v985
        %v1002 = vsel %vm539, %v994, 0.0
        %v1003 = vsel %vm554, %v998, 0.0
        %v1004 = vsel %vm539, %v995, 0.0
        %v1005 = vsel %vm554, %v999, 0.0
        %v1006 = vsel %vm539, %v996, 0.0
        %v1007 = vsel %vm554, %v1000, 0.0
        %v1008 = vsel %vm539, %v997, 0.0
        %v1009 = vsel %vm554, %v1001, 0.0
        %v1010 = vperm.slane %v761, 5
        %v1011 = vperm.slane %v762, 5
        %v1012 = vmul.f32 %v1002, %v1010
        %v1013 = vmul.f32 %v1003, %v1011
        %v1014 = vmul.f32 %v1004, %v1010
        %v1015 = vmul.f32 %v1005, %v1011
        %v1016 = vmul.f32 %v1006, %v1010
        %v1017 = vmul.f32 %v1007, %v1011
        %v1018 = vmul.f32 %v1008, %v1010
        %v1019 = vmul.f32 %v1009, %v1011
        %v1020 = vadd.f32 %v970, %v1012
        %v1021 = vadd.f32 %v971, %v1013
        %v1022 = vadd.f32 %v972, %v1014
        %v1023 = vadd.f32 %v973, %v1015
        %v1024 = vadd.f32 %v974, %v1016
        %v1025 = vadd.f32 %v975, %v1017
        %v1026 = vadd.f32 %v976, %v1018
        %v1027 = vadd.f32 %v977, %v1019
        %v1028 = vrot.slane %v750, 1
        %v1029 = vrot.slane %v751, 1
        %v1030 = vrot.slane %v752, 1
        %v1031 = vrot.slane %v753, 1
        %v1032 = vrot.slane %v754, 1
        %v1033 = vrot.slane %v755, 1
        %v1034 = vrot.slane %v756, 1
        %v1035 = vrot.slane %v757, 1
        %vm1036 = vcmp.lt.s32.totalorder %v465, 7
        %v1037 = vsel %vm1036, %v1032, %v1034
        %v1038 = vsel %vm1036, %v1033, %v1035
        %v1039 = vsel %vm1036, %v1030, %v1032
        %v1040 = vsel %vm1036, %v1031, %v1033
        %v1041 = vsel %vm1036, %v1028, %v1030
        %v1042 = vsel %vm1036, %v1029, %v1031
        %v1043 = vsel %vm1036, %v1034, %v1028
        %v1044 = vsel %vm1036, %v1035, %v1029
        %v1045 = vsel %vm531, %v1041, 0.0
        %v1046 = vsel %vm531, %v1042, 0.0
        %v1047 = vsel %vm532, %v1039, 0.0
        %v1048 = vsel %vm532, %v1040, 0.0
        %v1049 = vsel %vm533, %v1037, 0.0
        %v1050 = vsel %vm533, %v1038, 0.0
        %v1051 = vsel %vm534, %v1043, 0.0
        %v1052 = vsel %vm534, %v1044, 0.0
        %1053 = vrot.lane.b32.xlu0 %v1045, 8
        %v1054 = vpop.permute.xlu0 %1053
        %1055 = vrot.lane.b32.xlu0 %v1047, 8
        %v1056 = vpop.permute.xlu0 %1055
        %1057 = vrot.lane.b32.xlu0 %v1049, 8
        %v1058 = vpop.permute.xlu0 %1057
        %1059 = vrot.lane.b32.xlu0 %v1051, 8
        %v1060 = vpop.permute.xlu0 %1059
        %1061 = vrot.lane.b32.xlu0 %v1046, 8
        %v1062 = vpop.permute.xlu0 %1061
        %1063 = vrot.lane.b32.xlu0 %v1048, 8
        %v1064 = vpop.permute.xlu0 %1063
        %1065 = vrot.lane.b32.xlu0 %v1050, 8
        %v1066 = vpop.permute.xlu0 %1065
        %1067 = vrot.lane.b32.xlu0 %v1052, 8
        %v1068 = vpop.permute.xlu0 %1067
        %v1069 = vsel %vm806, %v1054, %v1062
        %v1070 = vsel %vm806, %v1056, %v1064
        %v1071 = vsel %vm806, %v1058, %v1066
        %v1072 = vsel %vm806, %v1060, %v1068
        %v1073 = vsel %vm806, %v1062, %v1054
        %v1074 = vsel %vm806, %v1064, %v1056
        %v1075 = vsel %vm806, %v1066, %v1058
        %v1076 = vsel %vm806, %v1068, %v1060
        %v1077 = vsel %vm540, %v1073, 0.0
        %v1078 = vsel %vm555, %v1069, 0.0
        %v1079 = vsel %vm540, %v1074, 0.0
        %v1080 = vsel %vm555, %v1070, 0.0
        %v1081 = vsel %vm540, %v1075, 0.0
        %v1082 = vsel %vm555, %v1071, 0.0
        %v1083 = vsel %vm540, %v1076, 0.0
        %v1084 = vsel %vm555, %v1072, 0.0
        %v1085 = vperm.slane %v761, 6
        %v1086 = vperm.slane %v762, 6
        %v1087 = vmul.f32 %v1077, %v1085
        %v1088 = vmul.f32 %v1078, %v1086
        %v1089 = vmul.f32 %v1079, %v1085
        %v1090 = vmul.f32 %v1080, %v1086
        %v1091 = vmul.f32 %v1081, %v1085
        %v1092 = vmul.f32 %v1082, %v1086
        %v1093 = vmul.f32 %v1083, %v1085
        %v1094 = vmul.f32 %v1084, %v1086
        %v1095 = vadd.f32 %v1020, %v1087
        %v1096 = vadd.f32 %v1021, %v1088
        %v1097 = vadd.f32 %v1022, %v1089
        %v1098 = vadd.f32 %v1023, %v1090
        %v1099 = vadd.f32 %v1024, %v1091
        %v1100 = vadd.f32 %v1025, %v1092
        %v1101 = vadd.f32 %v1026, %v1093
        %v1102 = vadd.f32 %v1027, %v1094
        %v1103 = vperm.slane %v761, 7
        %v1104 = vperm.slane %v762, 7
        %v1105 = vmul.f32 %v1045, %v1103
        %v1106 = vmul.f32 %v1046, %v1104
        %v1107 = vmul.f32 %v1047, %v1103
        %v1108 = vmul.f32 %v1048, %v1104
        %v1109 = vmul.f32 %v1049, %v1103
        %v1110 = vmul.f32 %v1050, %v1104
        %v1111 = vmul.f32 %v1051, %v1103
        %v1112 = vmul.f32 %v1052, %v1104
        %v1113 = vadd.f32 %v1095, %v1105
        %v1114 = vadd.f32 %v1096, %v1106
        %v1115 = vadd.f32 %v1097, %v1107
        %v1116 = vadd.f32 %v1098, %v1108
        %v1117 = vadd.f32 %v1099, %v1109
        %v1118 = vadd.f32 %v1100, %v1110
        %v1119 = vadd.f32 %v1101, %v1111
        %v1120 = vadd.f32 %v1102, %v1112
        %1121 = vrot.lane.b32.xlu0 %v1045, 120
        %v1122 = vpop.permute.xlu0 %1121
        %1123 = vrot.lane.b32.xlu0 %v1047, 120
        %v1124 = vpop.permute.xlu0 %1123
        %1125 = vrot.lane.b32.xlu0 %v1049, 120
        %v1126 = vpop.permute.xlu0 %1125
        %1127 = vrot.lane.b32.xlu0 %v1051, 120
        %v1128 = vpop.permute.xlu0 %1127
        %1129 = vrot.lane.b32.xlu0 %v1046, 120
        %v1130 = vpop.permute.xlu0 %1129
        %1131 = vrot.lane.b32.xlu0 %v1048, 120
        %v1132 = vpop.permute.xlu0 %1131
        %1133 = vrot.lane.b32.xlu0 %v1050, 120
        %v1134 = vpop.permute.xlu0 %1133
        %1135 = vrot.lane.b32.xlu0 %v1052, 120
        %v1136 = vpop.permute.xlu0 %1135
        %v1137 = vsel %vm875, %v1122, %v1130
        %v1138 = vsel %vm875, %v1124, %v1132
        %v1139 = vsel %vm875, %v1126, %v1134
        %v1140 = vsel %vm875, %v1128, %v1136
        %v1141 = vsel %vm875, %v1130, %v1122
        %v1142 = vsel %vm875, %v1132, %v1124
        %v1143 = vsel %vm875, %v1134, %v1126
        %v1144 = vsel %vm875, %v1136, %v1128
        %v1145 = vsel %vm539, %v1137, 0.0
        %v1146 = vsel %vm554, %v1141, 0.0
        %v1147 = vsel %vm539, %v1138, 0.0
        %v1148 = vsel %vm554, %v1142, 0.0
        %v1149 = vsel %vm539, %v1139, 0.0
        %v1150 = vsel %vm554, %v1143, 0.0
        %v1151 = vsel %vm539, %v1140, 0.0
        %v1152 = vsel %vm554, %v1144, 0.0
        %v1153 = vperm.slane %v763, 0
        %v1154 = vperm.slane %v764, 0
        %v1155 = vmul.f32 %v1145, %v1153
        %v1156 = vmul.f32 %v1146, %v1154
        %v1157 = vmul.f32 %v1147, %v1153
        %v1158 = vmul.f32 %v1148, %v1154
        %v1159 = vmul.f32 %v1149, %v1153
        %v1160 = vmul.f32 %v1150, %v1154
        %v1161 = vmul.f32 %v1151, %v1153
        %v1162 = vmul.f32 %v1152, %v1154
        %v1163 = vadd.f32 %v1113, %v1155
        %v1164 = vadd.f32 %v1114, %v1156
        %v1165 = vadd.f32 %v1115, %v1157
        %v1166 = vadd.f32 %v1116, %v1158
        %v1167 = vadd.f32 %v1117, %v1159
        %v1168 = vadd.f32 %v1118, %v1160
        %v1169 = vadd.f32 %v1119, %v1161
        %v1170 = vadd.f32 %v1120, %v1162
        %v1171 = vperm.slane %v559, 1
        %v1172 = vperm.slane %v560, 1
        %v1173 = vadd.f32 %v1163, %v1171
        %v1174 = vadd.f32 %v1164, %v1172
        %v1175 = vadd.f32 %v1165, %v1171
        %v1176 = vadd.f32 %v1166, %v1172
        %v1177 = vadd.f32 %v1167, %v1171
        %v1178 = vadd.f32 %v1168, %v1172
        %v1179 = vadd.f32 %v1169, %v1171
        %v1180 = vadd.f32 %v1170, %v1172
        %vm1181 = vcmp.gt.f32.partialorder %v1173, 0.0
        %vm1182 = vcmp.gt.f32.partialorder %v1174, 0.0
        %vm1183 = vcmp.gt.f32.partialorder %v1175, 0.0
        %vm1184 = vcmp.gt.f32.partialorder %v1176, 0.0
        %vm1185 = vcmp.gt.f32.partialorder %v1177, 0.0
        %vm1186 = vcmp.gt.f32.partialorder %v1178, 0.0
        %vm1187 = vcmp.gt.f32.partialorder %v1179, 0.0
        %vm1188 = vcmp.gt.f32.partialorder %v1180, 0.0
        %v1189 = vmul.f32 %v1173, 0.2
        %v1190 = vmul.f32 %v1174, 0.2
        %v1191 = vmul.f32 %v1175, 0.2
        %v1192 = vmul.f32 %v1176, 0.2
        %v1193 = vmul.f32 %v1177, 0.2
        %v1194 = vmul.f32 %v1178, 0.2
        %v1195 = vmul.f32 %v1179, 0.2
        %v1196 = vmul.f32 %v1180, 0.2
        %v1197 = vsel %vm1181, %v1173, %v1189
        %v1198 = vsel %vm1182, %v1174, %v1190
        %v1199 = vsel %vm1183, %v1175, %v1191
        %v1200 = vsel %vm1184, %v1176, %v1192
        %v1201 = vsel %vm1185, %v1177, %v1193
        %v1202 = vsel %vm1186, %v1178, %v1194
        %v1203 = vsel %vm1187, %v1179, %v1195
        %v1204 = vsel %vm1188, %v1180, %v1196
        %s1205 = smul.u32 %s28, 64
        %s1206 = smul.addr %s1205, 8
        %s1207 = scalar_lea.vmem [#allocation6], %s1206
        %v1208 = vld [vmem:[%s1207] sm:$0xff]
        %v1209 = vld [vmem:[%s1207 + $0x8] sm:$0xff]
        %v1210 = vld [vmem:[%s1207 + $0x10] sm:$0xff]
        %v1211 = vld [vmem:[%s1207 + $0x18] sm:$0xff]
        %v1212 = vld [vmem:[%s1207 + $0x20] sm:$0xff]
        %v1213 = vld [vmem:[%s1207 + $0x28] sm:$0xff]
        %v1214 = vld [vmem:[%s1207 + $0x30] sm:$0xff]
        %v1215 = vld [vmem:[%s1207 + $0x38] sm:$0xff]
        %v1216 = vld [vmem:[%s1207 + $0x40] sm:$0xff]
        %v1217 = vld [vmem:[%s1207 + $0x48] sm:$0xff]
        %v1218 = vld [vmem:[%s1207 + $0x50] sm:$0xff]
        %v1219 = vld [vmem:[%s1207 + $0x58] sm:$0xff]
        %v1220 = vld [vmem:[%s1207 + $0x60] sm:$0xff]
        %v1221 = vld [vmem:[%s1207 + $0x68] sm:$0xff]
        %v1222 = vld [vmem:[%s1207 + $0x70] sm:$0xff]
        %v1223 = vld [vmem:[%s1207 + $0x78] sm:$0xff]
        %v1224 = vld [vmem:[%s1207 + $0x80] sm:$0xff]
        %v1225 = vld [vmem:[%s1207 + $0x88] sm:$0xff]
        %v1226 = vld [vmem:[%s1207 + $0x90] sm:$0xff]
        %v1227 = vld [vmem:[%s1207 + $0x98] sm:$0xff]
        %v1228 = vld [vmem:[%s1207 + $0xa0] sm:$0xff]
        %v1229 = vld [vmem:[%s1207 + $0xa8] sm:$0xff]
        %v1230 = vld [vmem:[%s1207 + $0xb0] sm:$0xff]
        %v1231 = vld [vmem:[%s1207 + $0xb8] sm:$0xff]
        %v1232 = vld [vmem:[%s1207 + $0xc0] sm:$0xff]
        %v1233 = vld [vmem:[%s1207 + $0xc8] sm:$0xff]
        %v1234 = vld [vmem:[%s1207 + $0xd0] sm:$0xff]
        %v1235 = vld [vmem:[%s1207 + $0xd8] sm:$0xff]
        %v1236 = vld [vmem:[%s1207 + $0xe0] sm:$0xff]
        %v1237 = vld [vmem:[%s1207 + $0xe8] sm:$0xff]
        %v1238 = vld [vmem:[%s1207 + $0xf0] sm:$0xff]
        %v1239 = vld [vmem:[%s1207 + $0xf8] sm:$0xff]
        %v1240 = vld [vmem:[%s1207 + $0x100] sm:$0xff]
        %v1241 = vld [vmem:[%s1207 + $0x108] sm:$0xff]
        %v1242 = vld [vmem:[%s1207 + $0x110] sm:$0xff]
        %v1243 = vld [vmem:[%s1207 + $0x118] sm:$0xff]
        %v1244 = vld [vmem:[%s1207 + $0x120] sm:$0xff]
        %v1245 = vld [vmem:[%s1207 + $0x128] sm:$0xff]
        %v1246 = vld [vmem:[%s1207 + $0x130] sm:$0xff]
        %v1247 = vld [vmem:[%s1207 + $0x138] sm:$0xff]
        %v1248 = vld [vmem:[%s1207 + $0x140] sm:$0xff]
        %v1249 = vld [vmem:[%s1207 + $0x148] sm:$0xff]
        %v1250 = vld [vmem:[%s1207 + $0x150] sm:$0xff]
        %v1251 = vld [vmem:[%s1207 + $0x158] sm:$0xff]
        %v1252 = vld [vmem:[%s1207 + $0x160] sm:$0xff]
        %v1253 = vld [vmem:[%s1207 + $0x168] sm:$0xff]
        %v1254 = vld [vmem:[%s1207 + $0x170] sm:$0xff]
        %v1255 = vld [vmem:[%s1207 + $0x178] sm:$0xff]
        %v1256 = vld [vmem:[%s1207 + $0x180] sm:$0xff]
        %v1257 = vld [vmem:[%s1207 + $0x188] sm:$0xff]
        %v1258 = vld [vmem:[%s1207 + $0x190] sm:$0xff]
        %v1259 = vld [vmem:[%s1207 + $0x198] sm:$0xff]
        %v1260 = vld [vmem:[%s1207 + $0x1a0] sm:$0xff]
        %v1261 = vld [vmem:[%s1207 + $0x1a8] sm:$0xff]
        %v1262 = vld [vmem:[%s1207 + $0x1b0] sm:$0xff]
        %v1263 = vld [vmem:[%s1207 + $0x1b8] sm:$0xff]
        %v1264 = vld [vmem:[%s1207 + $0x1c0] sm:$0xff]
        %v1265 = vld [vmem:[%s1207 + $0x1c8] sm:$0xff]
        %v1266 = vld [vmem:[%s1207 + $0x1d0] sm:$0xff]
        %v1267 = vld [vmem:[%s1207 + $0x1d8] sm:$0xff]
        %v1268 = vld [vmem:[%s1207 + $0x1e0] sm:$0xff]
        %v1269 = vld [vmem:[%s1207 + $0x1e8] sm:$0xff]
        %v1270 = vld [vmem:[%s1207 + $0x1f0] sm:$0xff]
        %v1271 = vld [vmem:[%s1207 + $0x1f8] sm:$0xff]
        %v1272 = vperm.slane %v559, 2
        %v1273 = vperm.slane %v560, 2
        %1274 = vmatpush.msra.mxu0 %v1238
        %1275 = vmatpush.msra.mxu0 %v1236
        %1276 = vmatpush.msra.mxu0 %v1234
        %1277 = vmatpush.msra.mxu0 %v1232
        %1278 = vmatpush.msra.mxu0 %v1230
        %1279 = vmatpush.msra.mxu0 %v1228
        %1280 = vmatpush.msra.mxu0 %v1226
        %1281 = vmatpush.msra.mxu0 %v1224
        %1282 = vmatpush.msra.mxu0 %v1222
        %1283 = vmatpush.msra.mxu0 %v1220
        %1284 = vmatpush.msra.mxu0 %v1218
        %1285 = vmatpush.msra.mxu0 %v1216
        %1286 = vmatpush.msra.mxu0 %v1214
        %1287 = vmatpush.msra.mxu0 %v1212
        %1288 = vmatpush.msra.mxu0 %v1210
        %1289 = vmatpush.msra.mxu0 %v1208
        %1290 = vmatmul.f32.gmra.mxu0 %v1197
        %v1291 = vpop.f32.mrf.mxu0
        %v1292 = vadd.f32 %v1272, %v1291
        %1293 = vmatmul.f32.gmra.mxu0 %v1199
        %v1294 = vpop.f32.mrf.mxu0
        %v1295 = vadd.f32 %v1272, %v1294
        %1296 = vmatmul.f32.gmra.mxu0 %v1201
        %v1297 = vpop.f32.mrf.mxu0
        %v1298 = vadd.f32 %v1272, %v1297
        %1299 = vmatmul.f32.gmra.mxu0 %v1203
        %v1300 = vpop.f32.mrf.mxu0
        %v1301 = vadd.f32 %v1272, %v1300
        %1302 = vdwg.mxu0
        %1303 = vmatpush.msra.mxu0 %v1270
        %1304 = vmatpush.msra.mxu0 %v1268
        %1305 = vmatpush.msra.mxu0 %v1266
        %1306 = vmatpush.msra.mxu0 %v1264
        %1307 = vmatpush.msra.mxu0 %v1262
        %1308 = vmatpush.msra.mxu0 %v1260
        %1309 = vmatpush.msra.mxu0 %v1258
        %1310 = vmatpush.msra.mxu0 %v1256
        %1311 = vmatpush.msra.mxu0 %v1254
        %1312 = vmatpush.msra.mxu0 %v1252
        %1313 = vmatpush.msra.mxu0 %v1250
        %1314 = vmatpush.msra.mxu0 %v1248
        %1315 = vmatpush.msra.mxu0 %v1246
        %1316 = vmatpush.msra.mxu0 %v1244
        %1317 = vmatpush.msra.mxu0 %v1242
        %1318 = vmatpush.msra.mxu0 %v1240
        %1319 = vmatmul.f32.gmra.mxu0 %v1198
        %v1320 = vpop.f32.mrf.mxu0
        %v1321 = vadd.f32 %v1292, %v1320
        %1322 = vmatmul.f32.gmra.mxu0 %v1200
        %v1323 = vpop.f32.mrf.mxu0
        %v1324 = vadd.f32 %v1295, %v1323
        %1325 = vmatmul.f32.gmra.mxu0 %v1202
        %v1326 = vpop.f32.mrf.mxu0
        %v1327 = vadd.f32 %v1298, %v1326
        %1328 = vmatmul.f32.gmra.mxu0 %v1204
        %v1329 = vpop.f32.mrf.mxu0
        %v1330 = vadd.f32 %v1301, %v1329
        %1331 = vdwg.mxu0
        %1332 = vmatpush.msra.mxu0 %v1239
        %1333 = vmatpush.msra.mxu0 %v1237
        %1334 = vmatpush.msra.mxu0 %v1235
        %1335 = vmatpush.msra.mxu0 %v1233
        %1336 = vmatpush.msra.mxu0 %v1231
        %1337 = vmatpush.msra.mxu0 %v1229
        %1338 = vmatpush.msra.mxu0 %v1227
        %1339 = vmatpush.msra.mxu0 %v1225
        %1340 = vmatpush.msra.mxu0 %v1223
        %1341 = vmatpush.msra.mxu0 %v1221
        %1342 = vmatpush.msra.mxu0 %v1219
        %1343 = vmatpush.msra.mxu0 %v1217
        %1344 = vmatpush.msra.mxu0 %v1215
        %1345 = vmatpush.msra.mxu0 %v1213
        %1346 = vmatpush.msra.mxu0 %v1211
        %1347 = vmatpush.msra.mxu0 %v1209
        %1348 = vmatmul.f32.gmra.mxu0 %v1197
        %v1349 = vpop.f32.mrf.mxu0
        %v1350 = vadd.f32 %v1273, %v1349
        %1351 = vmatmul.f32.gmra.mxu0 %v1199
        %v1352 = vpop.f32.mrf.mxu0
        %v1353 = vadd.f32 %v1273, %v1352
        %1354 = vmatmul.f32.gmra.mxu0 %v1201
        %v1355 = vpop.f32.mrf.mxu0
        %v1356 = vadd.f32 %v1273, %v1355
        %1357 = vmatmul.f32.gmra.mxu0 %v1203
        %v1358 = vpop.f32.mrf.mxu0
        %v1359 = vadd.f32 %v1273, %v1358
        %1360 = vdwg.mxu0
        %1361 = vmatpush.msra.mxu0 %v1271
        %1362 = vmatpush.msra.mxu0 %v1269
        %1363 = vmatpush.msra.mxu0 %v1267
        %1364 = vmatpush.msra.mxu0 %v1265
        %1365 = vmatpush.msra.mxu0 %v1263
        %1366 = vmatpush.msra.mxu0 %v1261
        %1367 = vmatpush.msra.mxu0 %v1259
        %1368 = vmatpush.msra.mxu0 %v1257
        %1369 = vmatpush.msra.mxu0 %v1255
        %1370 = vmatpush.msra.mxu0 %v1253
        %1371 = vmatpush.msra.mxu0 %v1251
        %1372 = vmatpush.msra.mxu0 %v1249
        %1373 = vmatpush.msra.mxu0 %v1247
        %1374 = vmatpush.msra.mxu0 %v1245
        %1375 = vmatpush.msra.mxu0 %v1243
        %1376 = vmatpush.msra.mxu0 %v1241
        %1377 = vmatmul.f32.gmra.mxu0 %v1198
        %v1378 = vpop.f32.mrf.mxu0
        %v1379 = vadd.f32 %v1350, %v1378
        %1380 = vmatmul.f32.gmra.mxu0 %v1200
        %v1381 = vpop.f32.mrf.mxu0
        %v1382 = vadd.f32 %v1353, %v1381
        %1383 = vmatmul.f32.gmra.mxu0 %v1202
        %v1384 = vpop.f32.mrf.mxu0
        %v1385 = vadd.f32 %v1356, %v1384
        %1386 = vmatmul.f32.gmra.mxu0 %v1204
        %v1387 = vpop.f32.mrf.mxu0
        %v1388 = vadd.f32 %v1359, %v1387
        %1389 = vdwg.mxu0
        %s1390 = smul.u32 %s596, 4
        %s1391 = smul.addr %s1390, 8
        %s1392 = scalar_lea.vmem %s4, %s1391
        %v1393 = vld [vmem:[%s1392] sm:$0xff]
        %v1394 = vld [vmem:[%s1392 + $0x8] sm:$0xff]
        %v1395 = vld [vmem:[%s1392 + $0x10] sm:$0xff]
        %v1396 = vld [vmem:[%s1392 + $0x18] sm:$0xff]
        %v1397 = vrot.slane %v1321, 7
        %v1398 = vrot.slane %v1379, 7
        %v1399 = vrot.slane %v1324, 7
        %v1400 = vrot.slane %v1382, 7
        %v1401 = vrot.slane %v1327, 7
        %v1402 = vrot.slane %v1385, 7
        %v1403 = vrot.slane %v1330, 7
        %v1404 = vrot.slane %v1388, 7
        %v1405 = vsel %vm773, %v1401, %v1403
        %v1406 = vsel %vm773, %v1402, %v1404
        %v1407 = vsel %vm773, %v1399, %v1401
        %v1408 = vsel %vm773, %v1400, %v1402
        %v1409 = vsel %vm773, %v1397, %v1399
        %v1410 = vsel %vm773, %v1398, %v1400
        %v1411 = vsel %vm773, %v1403, %v1397
        %v1412 = vsel %vm773, %v1404, %v1398
        %v1413 = vsel %vm535, %v1411, 0.0
        %v1414 = vsel %vm535, %v1412, 0.0
        %v1415 = vsel %vm536, %v1409, 0.0
        %v1416 = vsel %vm536, %v1410, 0.0
        %v1417 = vsel %vm537, %v1407, 0.0
        %v1418 = vsel %vm537, %v1408, 0.0
        %v1419 = vsel %vm538, %v1405, 0.0
        %v1420 = vsel %vm538, %v1406, 0.0
        %1421 = vrot.lane.b32.xlu0 %v1413, 8
        %v1422 = vpop.permute.xlu0 %1421
        %1423 = vrot.lane.b32.xlu0 %v1415, 8
        %v1424 = vpop.permute.xlu0 %1423
        %1425 = vrot.lane.b32.xlu0 %v1417, 8
        %v1426 = vpop.permute.xlu0 %1425
        %1427 = vrot.lane.b32.xlu0 %v1419, 8
        %v1428 = vpop.permute.xlu0 %1427
        %1429 = vrot.lane.b32.xlu0 %v1414, 8
        %v1430 = vpop.permute.xlu0 %1429
        %1431 = vrot.lane.b32.xlu0 %v1416, 8
        %v1432 = vpop.permute.xlu0 %1431
        %1433 = vrot.lane.b32.xlu0 %v1418, 8
        %v1434 = vpop.permute.xlu0 %1433
        %1435 = vrot.lane.b32.xlu0 %v1420, 8
        %v1436 = vpop.permute.xlu0 %1435
        %v1437 = vsel %vm806, %v1422, %v1430
        %v1438 = vsel %vm806, %v1424, %v1432
        %v1439 = vsel %vm806, %v1426, %v1434
        %v1440 = vsel %vm806, %v1428, %v1436
        %v1441 = vsel %vm806, %v1430, %v1422
        %v1442 = vsel %vm806, %v1432, %v1424
        %v1443 = vsel %vm806, %v1434, %v1426
        %v1444 = vsel %vm806, %v1436, %v1428
        %v1445 = vsel %vm540, %v1441, 0.0
        %v1446 = vsel %vm555, %v1437, 0.0
        %v1447 = vsel %vm540, %v1442, 0.0
        %v1448 = vsel %vm555, %v1438, 0.0
        %v1449 = vsel %vm540, %v1443, 0.0
        %v1450 = vsel %vm555, %v1439, 0.0
        %v1451 = vsel %vm540, %v1444, 0.0
        %v1452 = vsel %vm555, %v1440, 0.0
        %v1453 = vperm.slane %v1393, 0
        %v1454 = vperm.slane %v1394, 0
        %v1455 = vmul.f32 %v1445, %v1453
        %v1456 = vmul.f32 %v1446, %v1454
        %v1457 = vmul.f32 %v1447, %v1453
        %v1458 = vmul.f32 %v1448, %v1454
        %v1459 = vmul.f32 %v1449, %v1453
        %v1460 = vmul.f32 %v1450, %v1454
        %v1461 = vmul.f32 %v1451, %v1453
        %v1462 = vmul.f32 %v1452, %v1454
        %v1463 = vadd.f32 %v1455, 0.0
        %v1464 = vadd.f32 %v1456, 0.0
        %v1465 = vadd.f32 %v1457, 0.0
        %v1466 = vadd.f32 %v1458, 0.0
        %v1467 = vadd.f32 %v1459, 0.0
        %v1468 = vadd.f32 %v1460, 0.0
        %v1469 = vadd.f32 %v1461, 0.0
        %v1470 = vadd.f32 %v1462, 0.0
        %v1471 = vperm.slane %v1393, 1
        %v1472 = vperm.slane %v1394, 1
        %v1473 = vmul.f32 %v1413, %v1471
        %v1474 = vmul.f32 %v1414, %v1472
        %v1475 = vmul.f32 %v1415, %v1471
        %v1476 = vmul.f32 %v1416, %v1472
        %v1477 = vmul.f32 %v1417, %v1471
        %v1478 = vmul.f32 %v1418, %v1472
        %v1479 = vmul.f32 %v1419, %v1471
        %v1480 = vmul.f32 %v1420, %v1472
        %v1481 = vadd.f32 %v1463, %v1473
        %v1482 = vadd.f32 %v1464, %v1474
        %v1483 = vadd.f32 %v1465, %v1475
        %v1484 = vadd.f32 %v1466, %v1476
        %v1485 = vadd.f32 %v1467, %v1477
        %v1486 = vadd.f32 %v1468, %v1478
        %v1487 = vadd.f32 %v1469, %v1479
        %v1488 = vadd.f32 %v1470, %v1480
        %1489 = vrot.lane.b32.xlu0 %v1413, 120
        %v1490 = vpop.permute.xlu0 %1489
        %1491 = vrot.lane.b32.xlu0 %v1415, 120
        %v1492 = vpop.permute.xlu0 %1491
        %1493 = vrot.lane.b32.xlu0 %v1417, 120
        %v1494 = vpop.permute.xlu0 %1493
        %1495 = vrot.lane.b32.xlu0 %v1419, 120
        %v1496 = vpop.permute.xlu0 %1495
        %1497 = vrot.lane.b32.xlu0 %v1414, 120
        %v1498 = vpop.permute.xlu0 %1497
        %1499 = vrot.lane.b32.xlu0 %v1416, 120
        %v1500 = vpop.permute.xlu0 %1499
        %1501 = vrot.lane.b32.xlu0 %v1418, 120
        %v1502 = vpop.permute.xlu0 %1501
        %1503 = vrot.lane.b32.xlu0 %v1420, 120
        %v1504 = vpop.permute.xlu0 %1503
        %v1505 = vsel %vm875, %v1490, %v1498
        %v1506 = vsel %vm875, %v1492, %v1500
        %v1507 = vsel %vm875, %v1494, %v1502
        %v1508 = vsel %vm875, %v1496, %v1504
        %v1509 = vsel %vm875, %v1498, %v1490
        %v1510 = vsel %vm875, %v1500, %v1492
        %v1511 = vsel %vm875, %v1502, %v1494
        %v1512 = vsel %vm875, %v1504, %v1496
        %v1513 = vsel %vm539, %v1505, 0.0
        %v1514 = vsel %vm554, %v1509, 0.0
        %v1515 = vsel %vm539, %v1506, 0.0
        %v1516 = vsel %vm554, %v1510, 0.0
        %v1517 = vsel %vm539, %v1507, 0.0
        %v1518 = vsel %vm554, %v1511, 0.0
        %v1519 = vsel %vm539, %v1508, 0.0
        %v1520 = vsel %vm554, %v1512, 0.0
        %v1521 = vperm.slane %v1393, 2
        %v1522 = vperm.slane %v1394, 2
        %v1523 = vmul.f32 %v1513, %v1521
        %v1524 = vmul.f32 %v1514, %v1522
        %v1525 = vmul.f32 %v1515, %v1521
        %v1526 = vmul.f32 %v1516, %v1522
        %v1527 = vmul.f32 %v1517, %v1521
        %v1528 = vmul.f32 %v1518, %v1522
        %v1529 = vmul.f32 %v1519, %v1521
        %v1530 = vmul.f32 %v1520, %v1522
        %v1531 = vadd.f32 %v1481, %v1523
        %v1532 = vadd.f32 %v1482, %v1524
        %v1533 = vadd.f32 %v1483, %v1525
        %v1534 = vadd.f32 %v1484, %v1526
        %v1535 = vadd.f32 %v1485, %v1527
        %v1536 = vadd.f32 %v1486, %v1528
        %v1537 = vadd.f32 %v1487, %v1529
        %v1538 = vadd.f32 %v1488, %v1530
        %1539 = vrot.lane.b32.xlu0 %v1321, 8
        %v1540 = vpop.permute.xlu0 %1539
        %1541 = vrot.lane.b32.xlu0 %v1324, 8
        %v1542 = vpop.permute.xlu0 %1541
        %1543 = vrot.lane.b32.xlu0 %v1327, 8
        %v1544 = vpop.permute.xlu0 %1543
        %1545 = vrot.lane.b32.xlu0 %v1330, 8
        %v1546 = vpop.permute.xlu0 %1545
        %1547 = vrot.lane.b32.xlu0 %v1379, 8
        %v1548 = vpop.permute.xlu0 %1547
        %1549 = vrot.lane.b32.xlu0 %v1382, 8
        %v1550 = vpop.permute.xlu0 %1549
        %1551 = vrot.lane.b32.xlu0 %v1385, 8
        %v1552 = vpop.permute.xlu0 %1551
        %1553 = vrot.lane.b32.xlu0 %v1388, 8
        %v1554 = vpop.permute.xlu0 %1553
        %v1555 = vsel %vm806, %v1540, %v1548
        %v1556 = vsel %vm806, %v1542, %v1550
        %v1557 = vsel %vm806, %v1544, %v1552
        %v1558 = vsel %vm806, %v1546, %v1554
        %v1559 = vsel %vm806, %v1548, %v1540
        %v1560 = vsel %vm806, %v1550, %v1542
        %v1561 = vsel %vm806, %v1552, %v1544
        %v1562 = vsel %vm806, %v1554, %v1546
        %v1563 = vsel %vm540, %v1559, 0.0
        %v1564 = vsel %vm555, %v1555, 0.0
        %v1565 = vsel %vm540, %v1560, 0.0
        %v1566 = vsel %vm555, %v1556, 0.0
        %v1567 = vsel %vm540, %v1561, 0.0
        %v1568 = vsel %vm555, %v1557, 0.0
        %v1569 = vsel %vm540, %v1562, 0.0
        %v1570 = vsel %vm555, %v1558, 0.0
        %v1571 = vperm.slane %v1393, 3
        %v1572 = vperm.slane %v1394, 3
        %v1573 = vmul.f32 %v1563, %v1571
        %v1574 = vmul.f32 %v1564, %v1572
        %v1575 = vmul.f32 %v1565, %v1571
        %v1576 = vmul.f32 %v1566, %v1572
        %v1577 = vmul.f32 %v1567, %v1571
        %v1578 = vmul.f32 %v1568, %v1572
        %v1579 = vmul.f32 %v1569, %v1571
        %v1580 = vmul.f32 %v1570, %v1572
        %v1581 = vadd.f32 %v1531, %v1573
        %v1582 = vadd.f32 %v1532, %v1574
        %v1583 = vadd.f32 %v1533, %v1575
        %v1584 = vadd.f32 %v1534, %v1576
        %v1585 = vadd.f32 %v1535, %v1577
        %v1586 = vadd.f32 %v1536, %v1578
        %v1587 = vadd.f32 %v1537, %v1579
        %v1588 = vadd.f32 %v1538, %v1580
        %v1589 = vperm.slane %v1393, 4
        %v1590 = vperm.slane %v1394, 4
        %v1591 = vmul.f32 %v1321, %v1589
        %v1592 = vmul.f32 %v1379, %v1590
        %v1593 = vmul.f32 %v1324, %v1589
        %v1594 = vmul.f32 %v1382, %v1590
        %v1595 = vmul.f32 %v1327, %v1589
        %v1596 = vmul.f32 %v1385, %v1590
        %v1597 = vmul.f32 %v1330, %v1589
        %v1598 = vmul.f32 %v1388, %v1590
        %v1599 = vadd.f32 %v1581, %v1591
        %v1600 = vadd.f32 %v1582, %v1592
        %v1601 = vadd.f32 %v1583, %v1593
        %v1602 = vadd.f32 %v1584, %v1594
        %v1603 = vadd.f32 %v1585, %v1595
        %v1604 = vadd.f32 %v1586, %v1596
        %v1605 = vadd.f32 %v1587, %v1597
        %v1606 = vadd.f32 %v1588, %v1598
        %1607 = vrot.lane.b32.xlu0 %v1321, 120
        %v1608 = vpop.permute.xlu0 %1607
        %1609 = vrot.lane.b32.xlu0 %v1324, 120
        %v1610 = vpop.permute.xlu0 %1609
        %1611 = vrot.lane.b32.xlu0 %v1327, 120
        %v1612 = vpop.permute.xlu0 %1611
        %1613 = vrot.lane.b32.xlu0 %v1330, 120
        %v1614 = vpop.permute.xlu0 %1613
        %1615 = vrot.lane.b32.xlu0 %v1379, 120
        %v1616 = vpop.permute.xlu0 %1615
        %1617 = vrot.lane.b32.xlu0 %v1382, 120
        %v1618 = vpop.permute.xlu0 %1617
        %1619 = vrot.lane.b32.xlu0 %v1385, 120
        %v1620 = vpop.permute.xlu0 %1619
        %1621 = vrot.lane.b32.xlu0 %v1388, 120
        %v1622 = vpop.permute.xlu0 %1621
        %v1623 = vsel %vm875, %v1608, %v1616
        %v1624 = vsel %vm875, %v1610, %v1618
        %v1625 = vsel %vm875, %v1612, %v1620
        %v1626 = vsel %vm875, %v1614, %v1622
        %v1627 = vsel %vm875, %v1616, %v1608
        %v1628 = vsel %vm875, %v1618, %v1610
        %v1629 = vsel %vm875, %v1620, %v1612
        %v1630 = vsel %vm875, %v1622, %v1614
        %v1631 = vsel %vm539, %v1623, 0.0
        %v1632 = vsel %vm554, %v1627, 0.0
        %v1633 = vsel %vm539, %v1624, 0.0
        %v1634 = vsel %vm554, %v1628, 0.0
        %v1635 = vsel %vm539, %v1625, 0.0
        %v1636 = vsel %vm554, %v1629, 0.0
        %v1637 = vsel %vm539, %v1626, 0.0
        %v1638 = vsel %vm554, %v1630, 0.0
        %v1639 = vperm.slane %v1393, 5
        %v1640 = vperm.slane %v1394, 5
        %v1641 = vmul.f32 %v1631, %v1639
        %v1642 = vmul.f32 %v1632, %v1640
        %v1643 = vmul.f32 %v1633, %v1639
        %v1644 = vmul.f32 %v1634, %v1640
        %v1645 = vmul.f32 %v1635, %v1639
        %v1646 = vmul.f32 %v1636, %v1640
        %v1647 = vmul.f32 %v1637, %v1639
        %v1648 = vmul.f32 %v1638, %v1640
        %v1649 = vadd.f32 %v1599, %v1641
        %v1650 = vadd.f32 %v1600, %v1642
        %v1651 = vadd.f32 %v1601, %v1643
        %v1652 = vadd.f32 %v1602, %v1644
        %v1653 = vadd.f32 %v1603, %v1645
        %v1654 = vadd.f32 %v1604, %v1646
        %v1655 = vadd.f32 %v1605, %v1647
        %v1656 = vadd.f32 %v1606, %v1648
        %v1657 = vrot.slane %v1321, 1
        %v1658 = vrot.slane %v1379, 1
        %v1659 = vrot.slane %v1324, 1
        %v1660 = vrot.slane %v1382, 1
        %v1661 = vrot.slane %v1327, 1
        %v1662 = vrot.slane %v1385, 1
        %v1663 = vrot.slane %v1330, 1
        %v1664 = vrot.slane %v1388, 1
        %v1665 = vsel %vm1036, %v1661, %v1663
        %v1666 = vsel %vm1036, %v1662, %v1664
        %v1667 = vsel %vm1036, %v1659, %v1661
        %v1668 = vsel %vm1036, %v1660, %v1662
        %v1669 = vsel %vm1036, %v1657, %v1659
        %v1670 = vsel %vm1036, %v1658, %v1660
        %v1671 = vsel %vm1036, %v1663, %v1657
        %v1672 = vsel %vm1036, %v1664, %v1658
        %v1673 = vsel %vm531, %v1669, 0.0
        %v1674 = vsel %vm531, %v1670, 0.0
        %v1675 = vsel %vm532, %v1667, 0.0
        %v1676 = vsel %vm532, %v1668, 0.0
        %v1677 = vsel %vm533, %v1665, 0.0
        %v1678 = vsel %vm533, %v1666, 0.0
        %v1679 = vsel %vm534, %v1671, 0.0
        %v1680 = vsel %vm534, %v1672, 0.0
        %1681 = vrot.lane.b32.xlu0 %v1673, 8
        %v1682 = vpop.permute.xlu0 %1681
        %1683 = vrot.lane.b32.xlu0 %v1675, 8
        %v1684 = vpop.permute.xlu0 %1683
        %1685 = vrot.lane.b32.xlu0 %v1677, 8
        %v1686 = vpop.permute.xlu0 %1685
        %1687 = vrot.lane.b32.xlu0 %v1679, 8
        %v1688 = vpop.permute.xlu0 %1687
        %1689 = vrot.lane.b32.xlu0 %v1674, 8
        %v1690 = vpop.permute.xlu0 %1689
        %1691 = vrot.lane.b32.xlu0 %v1676, 8
        %v1692 = vpop.permute.xlu0 %1691
        %1693 = vrot.lane.b32.xlu0 %v1678, 8
        %v1694 = vpop.permute.xlu0 %1693
        %1695 = vrot.lane.b32.xlu0 %v1680, 8
        %v1696 = vpop.permute.xlu0 %1695
        %v1697 = vsel %vm806, %v1682, %v1690
        %v1698 = vsel %vm806, %v1684, %v1692
        %v1699 = vsel %vm806, %v1686, %v1694
        %v1700 = vsel %vm806, %v1688, %v1696
        %v1701 = vsel %vm806, %v1690, %v1682
        %v1702 = vsel %vm806, %v1692, %v1684
        %v1703 = vsel %vm806, %v1694, %v1686
        %v1704 = vsel %vm806, %v1696, %v1688
        %v1705 = vsel %vm540, %v1701, 0.0
        %v1706 = vsel %vm555, %v1697, 0.0
        %v1707 = vsel %vm540, %v1702, 0.0
        %v1708 = vsel %vm555, %v1698, 0.0
        %v1709 = vsel %vm540, %v1703, 0.0
        %v1710 = vsel %vm555, %v1699, 0.0
        %v1711 = vsel %vm540, %v1704, 0.0
        %v1712 = vsel %vm555, %v1700, 0.0
        %v1713 = vperm.slane %v1393, 6
        %v1714 = vperm.slane %v1394, 6
        %v1715 = vmul.f32 %v1705, %v1713
        %v1716 = vmul.f32 %v1706, %v1714
        %v1717 = vmul.f32 %v1707, %v1713
        %v1718 = vmul.f32 %v1708, %v1714
        %v1719 = vmul.f32 %v1709, %v1713
        %v1720 = vmul.f32 %v1710, %v1714
        %v1721 = vmul.f32 %v1711, %v1713
        %v1722 = vmul.f32 %v1712, %v1714
        %v1723 = vadd.f32 %v1649, %v1715
        %v1724 = vadd.f32 %v1650, %v1716
        %v1725 = vadd.f32 %v1651, %v1717
        %v1726 = vadd.f32 %v1652, %v1718
        %v1727 = vadd.f32 %v1653, %v1719
        %v1728 = vadd.f32 %v1654, %v1720
        %v1729 = vadd.f32 %v1655, %v1721
        %v1730 = vadd.f32 %v1656, %v1722
        %v1731 = vperm.slane %v1393, 7
        %v1732 = vperm.slane %v1394, 7
        %v1733 = vmul.f32 %v1673, %v1731
        %v1734 = vmul.f32 %v1674, %v1732
        %v1735 = vmul.f32 %v1675, %v1731
        %v1736 = vmul.f32 %v1676, %v1732
        %v1737 = vmul.f32 %v1677, %v1731
        %v1738 = vmul.f32 %v1678, %v1732
        %v1739 = vmul.f32 %v1679, %v1731
        %v1740 = vmul.f32 %v1680, %v1732
        %v1741 = vadd.f32 %v1723, %v1733
        %v1742 = vadd.f32 %v1724, %v1734
        %v1743 = vadd.f32 %v1725, %v1735
        %v1744 = vadd.f32 %v1726, %v1736
        %v1745 = vadd.f32 %v1727, %v1737
        %v1746 = vadd.f32 %v1728, %v1738
        %v1747 = vadd.f32 %v1729, %v1739
        %v1748 = vadd.f32 %v1730, %v1740
        %1749 = vrot.lane.b32.xlu0 %v1673, 120
        %v1750 = vpop.permute.xlu0 %1749
        %1751 = vrot.lane.b32.xlu0 %v1675, 120
        %v1752 = vpop.permute.xlu0 %1751
        %1753 = vrot.lane.b32.xlu0 %v1677, 120
        %v1754 = vpop.permute.xlu0 %1753
        %1755 = vrot.lane.b32.xlu0 %v1679, 120
        %v1756 = vpop.permute.xlu0 %1755
        %1757 = vrot.lane.b32.xlu0 %v1674, 120
        %v1758 = vpop.permute.xlu0 %1757
        %1759 = vrot.lane.b32.xlu0 %v1676, 120
        %v1760 = vpop.permute.xlu0 %1759
        %1761 = vrot.lane.b32.xlu0 %v1678, 120
        %v1762 = vpop.permute.xlu0 %1761
        %1763 = vrot.lane.b32.xlu0 %v1680, 120
        %v1764 = vpop.permute.xlu0 %1763
        %v1765 = vsel %vm875, %v1750, %v1758
        %v1766 = vsel %vm875, %v1752, %v1760
        %v1767 = vsel %vm875, %v1754, %v1762
        %v1768 = vsel %vm875, %v1756, %v1764
        %v1769 = vsel %vm875, %v1758, %v1750
        %v1770 = vsel %vm875, %v1760, %v1752
        %v1771 = vsel %vm875, %v1762, %v1754
        %v1772 = vsel %vm875, %v1764, %v1756
        %v1773 = vsel %vm539, %v1765, 0.0
        %v1774 = vsel %vm554, %v1769, 0.0
        %v1775 = vsel %vm539, %v1766, 0.0
        %v1776 = vsel %vm554, %v1770, 0.0
        %v1777 = vsel %vm539, %v1767, 0.0
        %v1778 = vsel %vm554, %v1771, 0.0
        %v1779 = vsel %vm539, %v1768, 0.0
        %v1780 = vsel %vm554, %v1772, 0.0
        %v1781 = vperm.slane %v1395, 0
        %v1782 = vperm.slane %v1396, 0
        %v1783 = vmul.f32 %v1773, %v1781
        %v1784 = vmul.f32 %v1774, %v1782
        %v1785 = vmul.f32 %v1775, %v1781
        %v1786 = vmul.f32 %v1776, %v1782
        %v1787 = vmul.f32 %v1777, %v1781
        %v1788 = vmul.f32 %v1778, %v1782
        %v1789 = vmul.f32 %v1779, %v1781
        %v1790 = vmul.f32 %v1780, %v1782
        %v1791 = vadd.f32 %v1741, %v1783
        %v1792 = vadd.f32 %v1742, %v1784
        %v1793 = vadd.f32 %v1743, %v1785
        %v1794 = vadd.f32 %v1744, %v1786
        %v1795 = vadd.f32 %v1745, %v1787
        %v1796 = vadd.f32 %v1746, %v1788
        %v1797 = vadd.f32 %v1747, %v1789
        %v1798 = vadd.f32 %v1748, %v1790
        %v1799 = vperm.slane %v559, 3
        %v1800 = vperm.slane %v560, 3
        %v1801 = vadd.f32 %v1791, %v1799
        %v1802 = vadd.f32 %v1792, %v1800
        %v1803 = vadd.f32 %v1793, %v1799
        %v1804 = vadd.f32 %v1794, %v1800
        %v1805 = vadd.f32 %v1795, %v1799
        %v1806 = vadd.f32 %v1796, %v1800
        %v1807 = vadd.f32 %v1797, %v1799
        %v1808 = vadd.f32 %v1798, %v1800
        %s1809 = smul.u32 %s28, 8
        %s1810 = scalar_lea.vmem %s7, %s1809
        %v1811 = vld [vmem:[%s1810] sm:$0xff]
        %s1812 = smul.u32 %s28, 128
        %s1813 = scalar_lea.vmem %s6, %s1812
        %v1814 = vld [vmem:[%s1813] sm:$0xff]
        %v1815 = vld [vmem:[%s1813 + $0x8] sm:$0xff]
        %v1816 = vld [vmem:[%s1813 + $0x10] sm:$0xff]
        %v1817 = vld [vmem:[%s1813 + $0x18] sm:$0xff]
        %v1818 = vld [vmem:[%s1813 + $0x20] sm:$0xff]
        %v1819 = vld [vmem:[%s1813 + $0x28] sm:$0xff]
        %v1820 = vld [vmem:[%s1813 + $0x30] sm:$0xff]
        %v1821 = vld [vmem:[%s1813 + $0x38] sm:$0xff]
        %v1822 = vld [vmem:[%s1813 + $0x40] sm:$0xff]
        %v1823 = vld [vmem:[%s1813 + $0x48] sm:$0xff]
        %v1824 = vld [vmem:[%s1813 + $0x50] sm:$0xff]
        %v1825 = vld [vmem:[%s1813 + $0x58] sm:$0xff]
        %v1826 = vld [vmem:[%s1813 + $0x60] sm:$0xff]
        %v1827 = vld [vmem:[%s1813 + $0x68] sm:$0xff]
        %v1828 = vld [vmem:[%s1813 + $0x70] sm:$0xff]
        %v1829 = vld [vmem:[%s1813 + $0x78] sm:$0xff]
        %v1830 = vperm.slane %v1811, 0
        %1831 = vmatpush.msra.mxu0 %v1829
        %1832 = vmatpush.msra.mxu0 %v1828
        %1833 = vmatpush.msra.mxu0 %v1827
        %1834 = vmatpush.msra.mxu0 %v1826
        %1835 = vmatpush.msra.mxu0 %v1825
        %1836 = vmatpush.msra.mxu0 %v1824
        %1837 = vmatpush.msra.mxu0 %v1823
        %1838 = vmatpush.msra.mxu0 %v1822
        %1839 = vmatpush.msra.mxu0 %v1821
        %1840 = vmatpush.msra.mxu0 %v1820
        %1841 = vmatpush.msra.mxu0 %v1819
        %1842 = vmatpush.msra.mxu0 %v1818
        %1843 = vmatpush.msra.mxu0 %v1817
        %1844 = vmatpush.msra.mxu0 %v1816
        %1845 = vmatpush.msra.mxu0 %v1815
        %1846 = vmatpush.msra.mxu0 %v1814
        %1847 = vmatmul.f32.gmra.mxu0 %v1801
        %v1848 = vpop.f32.mrf.mxu0
        %v1849 = vadd.f32 %v1830, %v1848
        %1850 = vmatmul.f32.gmra.mxu0 %v1803
        %v1851 = vpop.f32.mrf.mxu0
        %v1852 = vadd.f32 %v1830, %v1851
        %1853 = vmatmul.f32.gmra.mxu0 %v1805
        %v1854 = vpop.f32.mrf.mxu0
        %v1855 = vadd.f32 %v1830, %v1854
        %1856 = vmatmul.f32.gmra.mxu0 %v1807
        %v1857 = vpop.f32.mrf.mxu0
        %v1858 = vadd.f32 %v1830, %v1857
        %1859 = vdwg.mxu0
        %s1860 = smul.u32 %s556, 16
        %s1861 = scalar_lea.vmem %s8, %s1860
        %v1862 = vld [vmem:[%s1861] sm:$0xff]
        %v1863 = vld [vmem:[%s1861 + $0x8] sm:$0xff]
        %v1864 = vrot.slane %v1849, 7
        %v1865 = vrot.slane %v1852, 7
        %v1866 = vrot.slane %v1855, 7
        %v1867 = vrot.slane %v1858, 7
        %v1868 = vsel %vm773, %v1866, %v1867
        %v1869 = vsel %vm773, %v1865, %v1866
        %v1870 = vsel %vm773, %v1864, %v1865
        %v1871 = vsel %vm773, %v1867, %v1864
        %v1872 = vsel %vm535, %v1871, 0.0
        %v1873 = vsel %vm536, %v1870, 0.0
        %v1874 = vsel %vm537, %v1869, 0.0
        %v1875 = vsel %vm538, %v1868, 0.0
        %1876 = vrot.lane.b32.xlu0 %v1872, 8
        %v1877 = vpop.permute.xlu0 %1876
        %1878 = vrot.lane.b32.xlu0 %v1873, 8
        %v1879 = vpop.permute.xlu0 %1878
        %1880 = vrot.lane.b32.xlu0 %v1874, 8
        %v1881 = vpop.permute.xlu0 %1880
        %1882 = vrot.lane.b32.xlu0 %v1875, 8
        %v1883 = vpop.permute.xlu0 %1882
        %v1884 = vsel %vm540, %v1877, 0.0
        %v1885 = vsel %vm540, %v1879, 0.0
        %v1886 = vsel %vm540, %v1881, 0.0
        %v1887 = vsel %vm540, %v1883, 0.0
        %v1888 = vperm.slane %v1862, 0
        %v1889 = vmul.f32 %v1884, %v1888
        %v1890 = vmul.f32 %v1885, %v1888
        %v1891 = vmul.f32 %v1886, %v1888
        %v1892 = vmul.f32 %v1887, %v1888
        %v1893 = vadd.f32 %v1889, 0.0
        %v1894 = vadd.f32 %v1890, 0.0
        %v1895 = vadd.f32 %v1891, 0.0
        %v1896 = vadd.f32 %v1892, 0.0
        %v1897 = vperm.slane %v1862, 1
        %v1898 = vmul.f32 %v1872, %v1897
        %v1899 = vmul.f32 %v1873, %v1897
        %v1900 = vmul.f32 %v1874, %v1897
        %v1901 = vmul.f32 %v1875, %v1897
        %v1902 = vadd.f32 %v1893, %v1898
        %v1903 = vadd.f32 %v1894, %v1899
        %v1904 = vadd.f32 %v1895, %v1900
        %v1905 = vadd.f32 %v1896, %v1901
        %1906 = vrot.lane.b32.xlu0 %v1872, 120
        %v1907 = vpop.permute.xlu0 %1906
        %1908 = vrot.lane.b32.xlu0 %v1873, 120
        %v1909 = vpop.permute.xlu0 %1908
        %1910 = vrot.lane.b32.xlu0 %v1874, 120
        %v1911 = vpop.permute.xlu0 %1910
        %1912 = vrot.lane.b32.xlu0 %v1875, 120
        %v1913 = vpop.permute.xlu0 %1912
        %v1914 = vsel %vm539, %v1907, 0.0
        %v1915 = vsel %vm539, %v1909, 0.0
        %v1916 = vsel %vm539, %v1911, 0.0
        %v1917 = vsel %vm539, %v1913, 0.0
        %v1918 = vperm.slane %v1862, 2
        %v1919 = vmul.f32 %v1914, %v1918
        %v1920 = vmul.f32 %v1915, %v1918
        %v1921 = vmul.f32 %v1916, %v1918
        %v1922 = vmul.f32 %v1917, %v1918
        %v1923 = vadd.f32 %v1902, %v1919
        %v1924 = vadd.f32 %v1903, %v1920
        %v1925 = vadd.f32 %v1904, %v1921
        %v1926 = vadd.f32 %v1905, %v1922
        %1927 = vrot.lane.b32.xlu0 %v1849, 8
        %v1928 = vpop.permute.xlu0 %1927
        %1929 = vrot.lane.b32.xlu0 %v1852, 8
        %v1930 = vpop.permute.xlu0 %1929
        %1931 = vrot.lane.b32.xlu0 %v1855, 8
        %v1932 = vpop.permute.xlu0 %1931
        %1933 = vrot.lane.b32.xlu0 %v1858, 8
        %v1934 = vpop.permute.xlu0 %1933
        %v1935 = vsel %vm540, %v1928, 0.0
        %v1936 = vsel %vm540, %v1930, 0.0
        %v1937 = vsel %vm540, %v1932, 0.0
        %v1938 = vsel %vm540, %v1934, 0.0
        %v1939 = vperm.slane %v1862, 3
        %v1940 = vmul.f32 %v1935, %v1939
        %v1941 = vmul.f32 %v1936, %v1939
        %v1942 = vmul.f32 %v1937, %v1939
        %v1943 = vmul.f32 %v1938, %v1939
        %v1944 = vadd.f32 %v1923, %v1940
        %v1945 = vadd.f32 %v1924, %v1941
        %v1946 = vadd.f32 %v1925, %v1942
        %v1947 = vadd.f32 %v1926, %v1943
        %v1948 = vperm.slane %v1862, 4
        %v1949 = vmul.f32 %v1849, %v1948
        %v1950 = vmul.f32 %v1852, %v1948
        %v1951 = vmul.f32 %v1855, %v1948
        %v1952 = vmul.f32 %v1858, %v1948
        %v1953 = vadd.f32 %v1944, %v1949
        %v1954 = vadd.f32 %v1945, %v1950
        %v1955 = vadd.f32 %v1946, %v1951
        %v1956 = vadd.f32 %v1947, %v1952
        %1957 = vrot.lane.b32.xlu0 %v1849, 120
        %v1958 = vpop.permute.xlu0 %1957
        %1959 = vrot.lane.b32.xlu0 %v1852, 120
        %v1960 = vpop.permute.xlu0 %1959
        %1961 = vrot.lane.b32.xlu0 %v1855, 120
        %v1962 = vpop.permute.xlu0 %1961
        %1963 = vrot.lane.b32.xlu0 %v1858, 120
        %v1964 = vpop.permute.xlu0 %1963
        %v1965 = vsel %vm539, %v1958, 0.0
        %v1966 = vsel %vm539, %v1960, 0.0
        %v1967 = vsel %vm539, %v1962, 0.0
        %v1968 = vsel %vm539, %v1964, 0.0
        %v1969 = vperm.slane %v1862, 5
        %v1970 = vmul.f32 %v1965, %v1969
        %v1971 = vmul.f32 %v1966, %v1969
        %v1972 = vmul.f32 %v1967, %v1969
        %v1973 = vmul.f32 %v1968, %v1969
        %v1974 = vadd.f32 %v1953, %v1970
        %v1975 = vadd.f32 %v1954, %v1971
        %v1976 = vadd.f32 %v1955, %v1972
        %v1977 = vadd.f32 %v1956, %v1973
        %v1978 = vrot.slane %v1849, 1
        %v1979 = vrot.slane %v1852, 1
        %v1980 = vrot.slane %v1855, 1
        %v1981 = vrot.slane %v1858, 1
        %v1982 = vsel %vm1036, %v1980, %v1981
        %v1983 = vsel %vm1036, %v1979, %v1980
        %v1984 = vsel %vm1036, %v1978, %v1979
        %v1985 = vsel %vm1036, %v1981, %v1978
        %v1986 = vsel %vm531, %v1984, 0.0
        %v1987 = vsel %vm532, %v1983, 0.0
        %v1988 = vsel %vm533, %v1982, 0.0
        %v1989 = vsel %vm534, %v1985, 0.0
        %1990 = vrot.lane.b32.xlu0 %v1986, 8
        %v1991 = vpop.permute.xlu0 %1990
        %1992 = vrot.lane.b32.xlu0 %v1987, 8
        %v1993 = vpop.permute.xlu0 %1992
        %1994 = vrot.lane.b32.xlu0 %v1988, 8
        %v1995 = vpop.permute.xlu0 %1994
        %1996 = vrot.lane.b32.xlu0 %v1989, 8
        %v1997 = vpop.permute.xlu0 %1996
        %v1998 = vsel %vm540, %v1991, 0.0
        %v1999 = vsel %vm540, %v1993, 0.0
        %v2000 = vsel %vm540, %v1995, 0.0
        %v2001 = vsel %vm540, %v1997, 0.0
        %v2002 = vperm.slane %v1862, 6
        %v2003 = vmul.f32 %v1998, %v2002
        %v2004 = vmul.f32 %v1999, %v2002
        %v2005 = vmul.f32 %v2000, %v2002
        %v2006 = vmul.f32 %v2001, %v2002
        %v2007 = vadd.f32 %v1974, %v2003
        %v2008 = vadd.f32 %v1975, %v2004
        %v2009 = vadd.f32 %v1976, %v2005
        %v2010 = vadd.f32 %v1977, %v2006
        %v2011 = vperm.slane %v1862, 7
        %v2012 = vmul.f32 %v1986, %v2011
        %v2013 = vmul.f32 %v1987, %v2011
        %v2014 = vmul.f32 %v1988, %v2011
        %v2015 = vmul.f32 %v1989, %v2011
        %v2016 = vadd.f32 %v2007, %v2012
        %v2017 = vadd.f32 %v2008, %v2013
        %v2018 = vadd.f32 %v2009, %v2014
        %v2019 = vadd.f32 %v2010, %v2015
        %2020 = vrot.lane.b32.xlu0 %v1986, 120
        %v2021 = vpop.permute.xlu0 %2020
        %2022 = vrot.lane.b32.xlu0 %v1987, 120
        %v2023 = vpop.permute.xlu0 %2022
        %2024 = vrot.lane.b32.xlu0 %v1988, 120
        %v2025 = vpop.permute.xlu0 %2024
        %2026 = vrot.lane.b32.xlu0 %v1989, 120
        %v2027 = vpop.permute.xlu0 %2026
        %v2028 = vsel %vm539, %v2021, 0.0
        %v2029 = vsel %vm539, %v2023, 0.0
        %v2030 = vsel %vm539, %v2025, 0.0
        %v2031 = vsel %vm539, %v2027, 0.0
        %v2032 = vperm.slane %v1863, 0
        %v2033 = vmul.f32 %v2028, %v2032
        %v2034 = vmul.f32 %v2029, %v2032
        %v2035 = vmul.f32 %v2030, %v2032
        %v2036 = vmul.f32 %v2031, %v2032
        %v2037 = vadd.f32 %v2016, %v2033
        %v2038 = vadd.f32 %v2017, %v2034
        %v2039 = vadd.f32 %v2018, %v2035
        %v2040 = vadd.f32 %v2019, %v2036
        %v2041 = vperm.slane %v1811, 1
        %v2042 = vadd.f32 %v2037, %v2041
        %v2043 = vadd.f32 %v2038, %v2041
        %v2044 = vadd.f32 %v2039, %v2041
        %v2045 = vadd.f32 %v2040, %v2041
        %vm2046 = vcmp.gt.f32.partialorder %v2042, 0.0
        %vm2047 = vcmp.gt.f32.partialorder %v2043, 0.0
        %vm2048 = vcmp.gt.f32.partialorder %v2044, 0.0
        %vm2049 = vcmp.gt.f32.partialorder %v2045, 0.0
        %v2050 = vmul.f32 %v2042, 0.2
        %v2051 = vmul.f32 %v2043, 0.2
        %v2052 = vmul.f32 %v2044, 0.2
        %v2053 = vmul.f32 %v2045, 0.2
        %v2054 = vsel %vm2046, %v2042, %v2050
        %v2055 = vsel %vm2047, %v2043, %v2051
        %v2056 = vsel %vm2048, %v2044, %v2052
        %v2057 = vsel %vm2049, %v2045, %v2053
        %s2058 = scalar_lea.vmem %s9, %s1812
        %v2059 = vld [vmem:[%s2058] sm:$0xff]
        %v2060 = vld [vmem:[%s2058 + $0x8] sm:$0xff]
        %v2061 = vld [vmem:[%s2058 + $0x10] sm:$0xff]
        %v2062 = vld [vmem:[%s2058 + $0x18] sm:$0xff]
        %v2063 = vld [vmem:[%s2058 + $0x20] sm:$0xff]
        %v2064 = vld [vmem:[%s2058 + $0x28] sm:$0xff]
        %v2065 = vld [vmem:[%s2058 + $0x30] sm:$0xff]
        %v2066 = vld [vmem:[%s2058 + $0x38] sm:$0xff]
        %v2067 = vld [vmem:[%s2058 + $0x40] sm:$0xff]
        %v2068 = vld [vmem:[%s2058 + $0x48] sm:$0xff]
        %v2069 = vld [vmem:[%s2058 + $0x50] sm:$0xff]
        %v2070 = vld [vmem:[%s2058 + $0x58] sm:$0xff]
        %v2071 = vld [vmem:[%s2058 + $0x60] sm:$0xff]
        %v2072 = vld [vmem:[%s2058 + $0x68] sm:$0xff]
        %v2073 = vld [vmem:[%s2058 + $0x70] sm:$0xff]
        %v2074 = vld [vmem:[%s2058 + $0x78] sm:$0xff]
        %v2075 = vperm.slane %v1811, 2
        %2076 = vmatpush.msra.mxu0 %v2074
        %2077 = vmatpush.msra.mxu0 %v2073
        %2078 = vmatpush.msra.mxu0 %v2072
        %2079 = vmatpush.msra.mxu0 %v2071
        %2080 = vmatpush.msra.mxu0 %v2070
        %2081 = vmatpush.msra.mxu0 %v2069
        %2082 = vmatpush.msra.mxu0 %v2068
        %2083 = vmatpush.msra.mxu0 %v2067
        %2084 = vmatpush.msra.mxu0 %v2066
        %2085 = vmatpush.msra.mxu0 %v2065
        %2086 = vmatpush.msra.mxu0 %v2064
        %2087 = vmatpush.msra.mxu0 %v2063
        %2088 = vmatpush.msra.mxu0 %v2062
        %2089 = vmatpush.msra.mxu0 %v2061
        %2090 = vmatpush.msra.mxu0 %v2060
        %2091 = vmatpush.msra.mxu0 %v2059
        %2092 = vmatmul.f32.gmra.mxu0 %v2054
        %v2093 = vpop.f32.mrf.mxu0
        %v2094 = vadd.f32 %v2075, %v2093
        %2095 = vmatmul.f32.gmra.mxu0 %v2055
        %v2096 = vpop.f32.mrf.mxu0
        %v2097 = vadd.f32 %v2075, %v2096
        %2098 = vmatmul.f32.gmra.mxu0 %v2056
        %v2099 = vpop.f32.mrf.mxu0
        %v2100 = vadd.f32 %v2075, %v2099
        %2101 = vmatmul.f32.gmra.mxu0 %v2057
        %v2102 = vpop.f32.mrf.mxu0
        %v2103 = vadd.f32 %v2075, %v2102
        %2104 = vdwg.mxu0
        %s2105 = smul.u32 %s596, 16
        %s2106 = scalar_lea.vmem %s8, %s2105
        %v2107 = vld [vmem:[%s2106] sm:$0xff]
        %v2108 = vld [vmem:[%s2106 + $0x8] sm:$0xff]
        %v2109 = vrot.slane %v2094, 7
        %v2110 = vrot.slane %v2097, 7
        %v2111 = vrot.slane %v2100, 7
        %v2112 = vrot.slane %v2103, 7
        %v2113 = vsel %vm773, %v2111, %v2112
        %v2114 = vsel %vm773, %v2110, %v2111
        %v2115 = vsel %vm773, %v2109, %v2110
        %v2116 = vsel %vm773, %v2112, %v2109
        %v2117 = vsel %vm535, %v2116, 0.0
        %v2118 = vsel %vm536, %v2115, 0.0
        %v2119 = vsel %vm537, %v2114, 0.0
        %v2120 = vsel %vm538, %v2113, 0.0
        %2121 = vrot.lane.b32.xlu0 %v2117, 8
        %v2122 = vpop.permute.xlu0 %2121
        %2123 = vrot.lane.b32.xlu0 %v2118, 8
        %v2124 = vpop.permute.xlu0 %2123
        %2125 = vrot.lane.b32.xlu0 %v2119, 8
        %v2126 = vpop.permute.xlu0 %2125
        %2127 = vrot.lane.b32.xlu0 %v2120, 8
        %v2128 = vpop.permute.xlu0 %2127
        %v2129 = vsel %vm540, %v2122, 0.0
        %v2130 = vsel %vm540, %v2124, 0.0
        %v2131 = vsel %vm540, %v2126, 0.0
        %v2132 = vsel %vm540, %v2128, 0.0
        %v2133 = vperm.slane %v2107, 0
        %v2134 = vmul.f32 %v2129, %v2133
        %v2135 = vmul.f32 %v2130, %v2133
        %v2136 = vmul.f32 %v2131, %v2133
        %v2137 = vmul.f32 %v2132, %v2133
        %v2138 = vadd.f32 %v2134, 0.0
        %v2139 = vadd.f32 %v2135, 0.0
        %v2140 = vadd.f32 %v2136, 0.0
        %v2141 = vadd.f32 %v2137, 0.0
        %v2142 = vperm.slane %v2107, 1
        %v2143 = vmul.f32 %v2117, %v2142
        %v2144 = vmul.f32 %v2118, %v2142
        %v2145 = vmul.f32 %v2119, %v2142
        %v2146 = vmul.f32 %v2120, %v2142
        %v2147 = vadd.f32 %v2138, %v2143
        %v2148 = vadd.f32 %v2139, %v2144
        %v2149 = vadd.f32 %v2140, %v2145
        %v2150 = vadd.f32 %v2141, %v2146
        %2151 = vrot.lane.b32.xlu0 %v2117, 120
        %v2152 = vpop.permute.xlu0 %2151
        %2153 = vrot.lane.b32.xlu0 %v2118, 120
        %v2154 = vpop.permute.xlu0 %2153
        %2155 = vrot.lane.b32.xlu0 %v2119, 120
        %v2156 = vpop.permute.xlu0 %2155
        %2157 = vrot.lane.b32.xlu0 %v2120, 120
        %v2158 = vpop.permute.xlu0 %2157
        %v2159 = vsel %vm539, %v2152, 0.0
        %v2160 = vsel %vm539, %v2154, 0.0
        %v2161 = vsel %vm539, %v2156, 0.0
        %v2162 = vsel %vm539, %v2158, 0.0
        %v2163 = vperm.slane %v2107, 2
        %v2164 = vmul.f32 %v2159, %v2163
        %v2165 = vmul.f32 %v2160, %v2163
        %v2166 = vmul.f32 %v2161, %v2163
        %v2167 = vmul.f32 %v2162, %v2163
        %v2168 = vadd.f32 %v2147, %v2164
        %v2169 = vadd.f32 %v2148, %v2165
        %v2170 = vadd.f32 %v2149, %v2166
        %v2171 = vadd.f32 %v2150, %v2167
        %2172 = vrot.lane.b32.xlu0 %v2094, 8
        %v2173 = vpop.permute.xlu0 %2172
        %2174 = vrot.lane.b32.xlu0 %v2097, 8
        %v2175 = vpop.permute.xlu0 %2174
        %2176 = vrot.lane.b32.xlu0 %v2100, 8
        %v2177 = vpop.permute.xlu0 %2176
        %2178 = vrot.lane.b32.xlu0 %v2103, 8
        %v2179 = vpop.permute.xlu0 %2178
        %v2180 = vsel %vm540, %v2173, 0.0
        %v2181 = vsel %vm540, %v2175, 0.0
        %v2182 = vsel %vm540, %v2177, 0.0
        %v2183 = vsel %vm540, %v2179, 0.0
        %v2184 = vperm.slane %v2107, 3
        %v2185 = vmul.f32 %v2180, %v2184
        %v2186 = vmul.f32 %v2181, %v2184
        %v2187 = vmul.f32 %v2182, %v2184
        %v2188 = vmul.f32 %v2183, %v2184
        %v2189 = vadd.f32 %v2168, %v2185
        %v2190 = vadd.f32 %v2169, %v2186
        %v2191 = vadd.f32 %v2170, %v2187
        %v2192 = vadd.f32 %v2171, %v2188
        %v2193 = vperm.slane %v2107, 4
        %v2194 = vmul.f32 %v2094, %v2193
        %v2195 = vmul.f32 %v2097, %v2193
        %v2196 = vmul.f32 %v2100, %v2193
        %v2197 = vmul.f32 %v2103, %v2193
        %v2198 = vadd.f32 %v2189, %v2194
        %v2199 = vadd.f32 %v2190, %v2195
        %v2200 = vadd.f32 %v2191, %v2196
        %v2201 = vadd.f32 %v2192, %v2197
        %2202 = vrot.lane.b32.xlu0 %v2094, 120
        %v2203 = vpop.permute.xlu0 %2202
        %2204 = vrot.lane.b32.xlu0 %v2097, 120
        %v2205 = vpop.permute.xlu0 %2204
        %2206 = vrot.lane.b32.xlu0 %v2100, 120
        %v2207 = vpop.permute.xlu0 %2206
        %2208 = vrot.lane.b32.xlu0 %v2103, 120
        %v2209 = vpop.permute.xlu0 %2208
        %v2210 = vsel %vm539, %v2203, 0.0
        %v2211 = vsel %vm539, %v2205, 0.0
        %v2212 = vsel %vm539, %v2207, 0.0
        %v2213 = vsel %vm539, %v2209, 0.0
        %v2214 = vperm.slane %v2107, 5
        %v2215 = vmul.f32 %v2210, %v2214
        %v2216 = vmul.f32 %v2211, %v2214
        %v2217 = vmul.f32 %v2212, %v2214
        %v2218 = vmul.f32 %v2213, %v2214
        %v2219 = vadd.f32 %v2198, %v2215
        %v2220 = vadd.f32 %v2199, %v2216
        %v2221 = vadd.f32 %v2200, %v2217
        %v2222 = vadd.f32 %v2201, %v2218
        %v2223 = vrot.slane %v2094, 1
        %v2224 = vrot.slane %v2097, 1
        %v2225 = vrot.slane %v2100, 1
        %v2226 = vrot.slane %v2103, 1
        %v2227 = vsel %vm1036, %v2225, %v2226
        %v2228 = vsel %vm1036, %v2224, %v2225
        %v2229 = vsel %vm1036, %v2223, %v2224
        %v2230 = vsel %vm1036, %v2226, %v2223
        %v2231 = vsel %vm531, %v2229, 0.0
        %v2232 = vsel %vm532, %v2228, 0.0
        %v2233 = vsel %vm533, %v2227, 0.0
        %v2234 = vsel %vm534, %v2230, 0.0
        %2235 = vrot.lane.b32.xlu0 %v2231, 8
        %v2236 = vpop.permute.xlu0 %2235
        %2237 = vrot.lane.b32.xlu0 %v2232, 8
        %v2238 = vpop.permute.xlu0 %2237
        %2239 = vrot.lane.b32.xlu0 %v2233, 8
        %v2240 = vpop.permute.xlu0 %2239
        %2241 = vrot.lane.b32.xlu0 %v2234, 8
        %v2242 = vpop.permute.xlu0 %2241
        %v2243 = vsel %vm540, %v2236, 0.0
        %v2244 = vsel %vm540, %v2238, 0.0
        %v2245 = vsel %vm540, %v2240, 0.0
        %v2246 = vsel %vm540, %v2242, 0.0
        %v2247 = vperm.slane %v2107, 6
        %v2248 = vmul.f32 %v2243, %v2247
        %v2249 = vmul.f32 %v2244, %v2247
        %v2250 = vmul.f32 %v2245, %v2247
        %v2251 = vmul.f32 %v2246, %v2247
        %v2252 = vadd.f32 %v2219, %v2248
        %v2253 = vadd.f32 %v2220, %v2249
        %v2254 = vadd.f32 %v2221, %v2250
        %v2255 = vadd.f32 %v2222, %v2251
        %v2256 = vperm.slane %v2107, 7
        %v2257 = vmul.f32 %v2231, %v2256
        %v2258 = vmul.f32 %v2232, %v2256
        %v2259 = vmul.f32 %v2233, %v2256
        %v2260 = vmul.f32 %v2234, %v2256
        %v2261 = vadd.f32 %v2252, %v2257
        %v2262 = vadd.f32 %v2253, %v2258
        %v2263 = vadd.f32 %v2254, %v2259
        %v2264 = vadd.f32 %v2255, %v2260
        %2265 = vrot.lane.b32.xlu0 %v2231, 120
        %v2266 = vpop.permute.xlu0 %2265
        %2267 = vrot.lane.b32.xlu0 %v2232, 120
        %v2268 = vpop.permute.xlu0 %2267
        %2269 = vrot.lane.b32.xlu0 %v2233, 120
        %v2270 = vpop.permute.xlu0 %2269
        %2271 = vrot.lane.b32.xlu0 %v2234, 120
        %v2272 = vpop.permute.xlu0 %2271
        %v2273 = vsel %vm539, %v2266, 0.0
        %v2274 = vsel %vm539, %v2268, 0.0
        %v2275 = vsel %vm539, %v2270, 0.0
        %v2276 = vsel %vm539, %v2272, 0.0
        %v2277 = vperm.slane %v2108, 0
        %v2278 = vmul.f32 %v2273, %v2277
        %v2279 = vmul.f32 %v2274, %v2277
        %v2280 = vmul.f32 %v2275, %v2277
        %v2281 = vmul.f32 %v2276, %v2277
        %v2282 = vadd.f32 %v2261, %v2278
        %v2283 = vadd.f32 %v2262, %v2279
        %v2284 = vadd.f32 %v2263, %v2280
        %v2285 = vadd.f32 %v2264, %v2281
        %v2286 = vperm.slane %v1811, 3
        %v2287 = vadd.f32 %v2282, %v2286
        %v2288 = vadd.f32 %v2283, %v2286
        %v2289 = vadd.f32 %v2284, %v2286
        %v2290 = vadd.f32 %v2285, %v2286
        %v2291 = vadd.f32 %v456, %v1802
        %v2292 = vadd.f32 %v457, %v1804
        %v2293 = vadd.f32 %v458, %v1806
        %v2294 = vadd.f32 %v459, %v1808
        %v2295 = vmul.f32 %v2287, %v2291
        %v2296 = vmul.f32 %v2288, %v2292
        %v2297 = vmul.f32 %v2289, %v2293
        %v2298 = vmul.f32 %v2290, %v2294
        %v2299 = vmul.f32 %v1802, %v2287
        %v2300 = vmul.f32 %v1804, %v2288
        %v2301 = vmul.f32 %v1806, %v2289
        %v2302 = vmul.f32 %v1808, %v2290
        %v2303 = vmul.f32 %v1801, %v456
        %v2304 = vmul.f32 %v1803, %v457
        %v2305 = vmul.f32 %v1805, %v458
        %v2306 = vmul.f32 %v1807, %v459
        %v2307 = vsub.f32 %v2303, %v436
        %v2308 = vsub.f32 %v2304, %v437
        %v2309 = vsub.f32 %v2305, %v438
        %v2310 = vsub.f32 %v2306, %v439
        %v2311 = vmul.f32 %v2299, %v2307
        %v2312 = vmul.f32 %v2300, %v2308
        %v2313 = vmul.f32 %v2301, %v2309
        %v2314 = vmul.f32 %v2302, %v2310
        %v2315 = vsub.f32 %v456, %v2311
        %v2316 = vsub.f32 %v457, %v2312
        %v2317 = vsub.f32 %v458, %v2313
        %v2318 = vsub.f32 %v459, %v2314
        %s2319 = scalar_select %p440, 1, 0
        %s2320 = scvt.s32.f32 %s2319
        %v2321 = vsub.f32 %v2295, %v2315
        %v2322 = vsub.f32 %v2296, %v2316
        %v2323 = vsub.f32 %v2297, %v2317
        %v2324 = vsub.f32 %v2298, %v2318
        %v2325 = vstv %s2320
        %v2326 = vmul.f32 %v2325, %v2321
        %v2327 = vmul.f32 %v2325, %v2322
        %v2328 = vmul.f32 %v2325, %v2323
        %v2329 = vmul.f32 %v2325, %v2324
        %v2330 = vadd.f32 %v2315, %v2326
        %v2331 = vadd.f32 %v2316, %v2327
        %v2332 = vadd.f32 %v2317, %v2328
        %v2333 = vadd.f32 %v2318, %v2329
        %2334 = vst [vmem:[#allocation2] sm:$0xff] %v2330
        %2335 = vst [vmem:[#allocation2 + $0x8] sm:$0xff] %v2331
        %2336 = vst [vmem:[#allocation2 + $0x10] sm:$0xff] %v2332
        %2337 = vst [vmem:[#allocation2 + $0x18] sm:$0xff] %v2333
        %2338 = vst [vmem:[#allocation3] sm:$0xff] %v1801
        %2339 = vst [vmem:[#allocation3 + $0x8] sm:$0xff] %v1803
        %2340 = vst [vmem:[#allocation3 + $0x10] sm:$0xff] %v1805
        %2341 = vst [vmem:[#allocation3 + $0x18] sm:$0xff] %v1807
        %2342 = vst [vmem:[%s435] sm:$0xff] %v2330
        %2343 = vst [vmem:[%s435 + $0x8] sm:$0xff] %v2331
        %2344 = vst [vmem:[%s435 + $0x10] sm:$0xff] %v2332
        %2345 = vst [vmem:[%s435 + $0x18] sm:$0xff] %v2333
        %p2346 = scmp.lt.s32.totalorder %s28, 2
        %s2347 = scalar_select %p2346, %s28, 2
        %p2348 = scmp.lt.s32.totalorder %s27, 0
        %s2349 = scalar_select %p2348, %s27, 0
        %s2350 = smul.addr %s2349, 4
        %s2351 = smul.addr %s2347, 4
        %s2352 = sadd.s32 %s2350, %s2351
        %s2353 = smul.addr %s2352, 8
        %s2354 = scalar_lea.vmem %s10, %s2353
        // Predicated region
        $region73: #{net_forward.1} parent=59 // pred_check
          %p2355 = pneg %p275
        $region74: #{net_forward.1} parent=59 // pred_check_branch
          %2357 = sbr.rel (%p2355) target = $region76
        $region75: #{net_forward.1} parent=59 // pred_region
          _
        $region76: #{net_forward.1} parent=59 // pred_fallthru
          _
      $region60: #{net_forward.1} parent=5 // pred_fallthru
        _
      %p2358 = scmp.le.s32.totalorder 2, %s18
      // Predicated region
      $region77: #{net_forward.1} parent=5 // pred_check
        %p2359 = pneg %p2358
      $region78: #{net_forward.1} parent=5 // pred_check_branch
        %2361 = sbr.rel (%p2359) target = $region80
      $region79: #{net_forward.1} parent=5 // pred_region
        %s2362 = ssub.s32 %s18, 2
        // Predicated region
        $region81: #{net_forward.1} parent=79 // pred_check
          %p2363 = pneg %p281
        $region82: #{net_forward.1} parent=79 // pred_check_branch
          %2365 = sbr.rel (%p2363) target = $region84
        $region83: #{net_forward.1} parent=79 // pred_region
          %p2366 = scmp.lt.s32.totalorder %s30, 2
          %s2367 = scalar_select %p2366, %s30, 2
          %p2368 = scmp.lt.s32.totalorder %s29, 0
          %s2369 = scalar_select %p2368, %s29, 0
          %s2370 = smul.addr %s2369, 4
          %s2371 = smul.addr %s2367, 4
          %s2372 = sadd.s32 %s2370, %s2371
          %s2373 = smul.addr %s2372, 8
          %s2374 = scalar_lea.vmem %s10, %s2373
        $region84: #{net_forward.1} parent=79 // pred_fallthru
          _
      $region80: #{net_forward.1} parent=5 // pred_fallthru
        _
    $region6: #{net_forward.1} parent=1 // loop_footer
      %s22 = sadd.s32 1, %s18
    $region7: #{net_forward.1} parent=1 // loop_footer_branch
      %17 = sbr.rel target = $region3
    $region8: #{net_forward.1} parent=1 // loop_exit
      _
    %2375 = vsyncpa [#allocation5], 1
    %s2376 = scalar_lea.sflag [#allocation5], 1
    %2377 = vsyncpa %s2376, 1
    %2378 = vsyncpa [#allocation7], 1

</llo_original>
